<compile_context>
chip_gen: v6e
topology: v6e:2x2x1
jax: 0.10.0
libtpu: 0.0.40
codegen_flags: <defaults>
</compile_context>

<pallas_src>
import functools

import jax
import jax.numpy as jnp
from jax.experimental import pallas as pl
from jax.experimental.pallas import tpu as pltpu

EPS = 1e-6                      # matches nn.LayerNorm(eps=1e-6)
_VMEM_LIMIT = 48 * 1024 * 1024  # under v7x 64 MiB / TC, harmless on v5e/v6e


# ---------------------------------------------------------------------------
# helpers
# ---------------------------------------------------------------------------
def _round_up(x, m):
    return ((x + m - 1) // m) * m


def _pick_tile(dim, target, quantum):
    """Largest tile <= target that divides dim and is a multiple of quantum.
    Falls back to the whole dim (a full-extent block is always legal)."""
    if dim <= target:
        return dim
    best = None
    t = quantum
    while t <= target:
        if dim % t == 0:
            best = t
        t += quantum
    return best if best is not None else dim


def _erf_poly(x):
    # Abramowitz & Stegun 7.1.26 erf approximation, |err| < 1.5e-7 in f32.
    # Keeps exact-erf GELU fully fused without relying on a Mosaic lax.erf
    # lowering; exp() goes to the EUP slot.
    a1, a2, a3, a4, a5 = 0.254829592, -0.284496736, 1.421413741, -1.453152027, 1.061405429
    p = 0.3275911
    ax = jnp.abs(x)
    t = 1.0 / (1.0 + p * ax)
    poly = ((((a5 * t + a4) * t + a3) * t + a2) * t + a1) * t
    y = 1.0 - poly * jnp.exp(-(ax * ax))
    return jnp.where(x < 0.0, -y, y)


def _gelu_exact(x):
    return 0.5 * x * (1.0 + _erf_poly(x * 0.7071067811865476))


def _layernorm_f32(x, g, b):
    mu = jnp.mean(x, axis=-1, keepdims=True)
    xc = x - mu
    var = jnp.mean(xc * xc, axis=-1, keepdims=True)
    return xc * jax.lax.rsqrt(var + EPS) * g + b


# ---------------------------------------------------------------------------
# fused  LN -> matmul -> bias -> (GELU) -> (+residual)  kernel
# ---------------------------------------------------------------------------
def _fused_linear_kernel(*refs, has_ln1, has_ln2, gelu, has_res):
    it = iter(refs)
    x_ref = next(it)
    g1 = b1 = g2 = b2 = None
    if has_ln1:
        g1, b1 = next(it), next(it)
    if has_ln2:
        g2, b2 = next(it), next(it)
    w_ref = next(it)
    bias_ref = next(it)
    res_ref = next(it) if has_res else None
    o_ref = next(it)
    acc_ref = next(it)

    k = pl.program_id(2)

    @pl.when(k == 0)
    def _():
        acc_ref[...] = jnp.zeros_like(acc_ref)

    x = x_ref[...]
    if has_ln1 or has_ln2:
        xf = x.astype(jnp.float32)                      # LN statistics in f32
        if has_ln1:
            xf = _layernorm_f32(xf, g1[...], b1[...])
        if has_ln2:
            xf = _layernorm_f32(xf, g2[...], b2[...])
        x = xf
    x = x.astype(jnp.bfloat16)                          # bf16 MXU operands

    acc_ref[...] += jnp.dot(x, w_ref[...].astype(jnp.bfloat16),
                            preferred_element_type=jnp.float32)

    @pl.when(k == pl.num_programs(2) - 1)
    def _():
        r = acc_ref[...] + bias_ref[...].astype(jnp.float32)
        if gelu:
            r = _gelu_exact(r)                          # fused epilogue
        if has_res:
            r = r + res_ref[...].astype(jnp.float32)    # fused residual add
        o_ref[...] = r.astype(o_ref.dtype)


def fused_linear(x, w, b, *, ln1=None, ln2=None, residual=None, gelu=False,
                 out_dtype=jnp.bfloat16,
                 tm_target=256, tn_target=512, tk_target=512):
    M, K = x.shape
    Kw, N = w.shape
    assert K == Kw
    has_ln = (ln1 is not None) or (ln2 is not None)

    # sublane-pad rows
    M_pad = _round_up(M, 8)
    if M_pad != M:
        x = jnp.pad(x, ((0, M_pad - M), (0, 0)))
        if residual is not None:
            residual = jnp.pad(residual, ((0, M_pad - M), (0, 0)))

    if has_ln:
        K_pad = K          # LayerNorm needs the whole feature row in one K block
        tk = K
    else:
        K_pad = _round_up(K, 128)     # lane-densify narrow contraction dims
        if K_pad != K:
            x = jnp.pad(x, ((0, 0), (0, K_pad - K)))
            w = jnp.pad(w, ((0, K_pad - K), (0, 0)))
        tk = _pick_tile(K_pad, tk_target, 128)

    tm = _pick_tile(M_pad, tm_target, 8)
    tn = _pick_tile(N, tn_target, 128)
    grid = (M_pad // tm, N // tn, K_pad // tk)

    in_specs = [pl.BlockSpec((tm, tk), lambda i, j, k: (i, k))]
    inputs = [x]
    if ln1 is not None:
        g1, b1 = ln1
        in_specs += [pl.BlockSpec((1, K), lambda i, j, k: (0, 0))] * 2
        inputs += [g1.reshape(1, K).astype(jnp.float32),
                   b1.reshape(1, K).astype(jnp.float32)]
    if ln2 is not None:
        g2, b2 = ln2
        in_specs += [pl.BlockSpec((1, K), lambda i, j, k: (0, 0))] * 2
        inputs += [g2.reshape(1, K).astype(jnp.float32),
                   b2.reshape(1, K).astype(jnp.float32)]
    # weight/bias index_maps ignore the row index -> tiles stay resident
    in_specs += [pl.BlockSpec((tk, tn), lambda i, j, k: (k, j)),
                 pl.BlockSpec((1, tn), lambda i, j, k: (0, j))]
    inputs += [w, b.reshape(1, N).astype(jnp.float32)]
    if residual is not None:
        in_specs += [pl.BlockSpec((tm, tn), lambda i, j, k: (i, j))]
        inputs += [residual]

    kernel = functools.partial(
        _fused_linear_kernel,
        has_ln1=ln1 is not None, has_ln2=ln2 is not None,
        gelu=gelu, has_res=residual is not None)

    out = pl.pallas_call(
        kernel,
        out_shape=jax.ShapeDtypeStruct((M_pad, N), out_dtype),
        grid=grid,
        in_specs=in_specs,
        out_specs=pl.BlockSpec((tm, tn), lambda i, j, k: (i, j)),
        scratch_shapes=[pltpu.VMEM((tm, tn), jnp.float32)],
        compiler_params=pltpu.CompilerParams(
            dimension_semantics=("parallel", "parallel", "arbitrary"),
            vmem_limit_bytes=_VMEM_LIMIT),
    )(*inputs)

    return out[:M] if M_pad != M else out


# ---------------------------------------------------------------------------
# flash-attention kernel (online softmax, no [BH,T,T] materialization)
# ---------------------------------------------------------------------------
def _flash_attn_kernel(q_ref, k_ref, v_ref, o_ref, m_sc, l_sc, acc_sc,
                       *, scale, kv_len, tk):
    ki = pl.program_id(2)

    @pl.when(ki == 0)
    def _():
        m_sc[...] = jnp.full_like(m_sc, -1e30)
        l_sc[...] = jnp.zeros_like(l_sc)
        acc_sc[...] = jnp.zeros_like(acc_sc)

    # scores for this (q tile, kv tile): bf16 MXU, f32 accumulate
    s = jax.lax.dot_general(
        q_ref[...], k_ref[...],
        dimension_numbers=(((1,), (1,)), ((), ())),
        preferred_element_type=jnp.float32) * scale           # [tq, tk]

    # mask padded kv tokens (sequence was padded to a sublane multiple)
    col = ki * tk + jax.lax.broadcasted_iota(jnp.int32, s.shape, 1)
    s = jnp.where(col < kv_len, s, -1e30)

    m_prev = m_sc[...]
    m_new = jnp.maximum(m_prev, jnp.max(s, axis=-1, keepdims=True))
    alpha = jnp.exp(m_prev - m_new)
    p = jnp.exp(s - m_new)
    l_sc[...] = alpha * l_sc[...] + jnp.sum(p, axis=-1, keepdims=True)
    acc_sc[...] = alpha * acc_sc[...] + jnp.dot(
        p.astype(v_ref.dtype), v_ref[...], preferred_element_type=jnp.float32)
    m_sc[...] = m_new

    @pl.when(ki == pl.num_programs(2) - 1)
    def _():
        inv = pl.reciprocal(l_sc[...], approx=True)
        o_ref[...] = (acc_sc[...] * inv).astype(o_ref.dtype)


def flash_attention(q, k, v, *, kv_len, scale, tq_target=256, tk_target=256):
    BH, T_pad, Dh = q.shape
    tq = _pick_tile(T_pad, tq_target, 8)
    tk = _pick_tile(T_pad, tk_target, 8)
    grid = (BH, T_pad // tq, T_pad // tk)

    kernel = functools.partial(_flash_attn_kernel, scale=scale,
                               kv_len=kv_len, tk=tk)
    return pl.pallas_call(
        kernel,
        out_shape=jax.ShapeDtypeStruct((BH, T_pad, Dh), jnp.bfloat16),
        grid=grid,
        in_specs=[
            pl.BlockSpec((None, tq, Dh), lambda b, qi, ki: (b, qi, 0)),
            pl.BlockSpec((None, tk, Dh), lambda b, qi, ki: (b, ki, 0)),
            pl.BlockSpec((None, tk, Dh), lambda b, qi, ki: (b, ki, 0)),
        ],
        out_specs=pl.BlockSpec((None, tq, Dh), lambda b, qi, ki: (b, qi, 0)),
        scratch_shapes=[
            pltpu.VMEM((tq, 1), jnp.float32),    # running max m
            pltpu.VMEM((tq, 1), jnp.float32),    # running denom l
            pltpu.VMEM((tq, Dh), jnp.float32),   # output accumulator
        ],
        compiler_params=pltpu.CompilerParams(
            dimension_semantics=("parallel", "parallel", "arbitrary"),
            vmem_limit_bytes=_VMEM_LIMIT),
    )(q, k, v)


# ---------------------------------------------------------------------------
# parameters (deterministic synthetic init, module-consistent shapes)
# ---------------------------------------------------------------------------
def init_params(key, input_dim, outputdim, embed_dim, num_patches, depth, mlp_ratio):
    hidden = int(embed_dim * mlp_ratio)
    keys = iter(jax.random.split(key, 3 + 4 * depth))

    def lin(in_d, out_d):
        # weights stored in bf16 once at init (MXU operand dtype)
        w = (jax.random.normal(next(keys), (in_d, out_d), jnp.float32) * 0.02)
        return {"w": w.astype(jnp.bfloat16), "b": jnp.zeros((out_d,), jnp.float32)}

    def ln(d):
        return {"g": jnp.ones((d,), jnp.float32), "b": jnp.zeros((d,), jnp.float32)}

    params = {
        "input_proj": lin(input_dim, embed_dim),
        "mask_token": jax.random.normal(next(keys), (1, 1, embed_dim), jnp.float32) * 0.02,
        "pos_embed": jnp.zeros((1, num_patches + 1, embed_dim), jnp.float32),
        "blocks": [],
        "norm": ln(embed_dim),
        "out_ln": ln(embed_dim),
        "out_lin": lin(embed_dim, outputdim),
    }
    for _ in range(depth):
        params["blocks"].append({
            "norm1": ln(embed_dim),
            "qkv": lin(embed_dim, 3 * embed_dim),
            "proj": lin(embed_dim, embed_dim),
            "norm2": ln(embed_dim),
            "fc1": lin(embed_dim, hidden),
            "fc2": lin(hidden, embed_dim),
        })
    return params


# ---------------------------------------------------------------------------
# forward pass
# ---------------------------------------------------------------------------
def _block_forward(x_flat, B, T_pad, T_true, p, num_heads):
    D = x_flat.shape[1]
    Dh = D // num_heads
    scale = Dh ** -0.5

    # LN1 fused into the qkv matmul (single pallas_call)
    qkv = fused_linear(x_flat, p["qkv"]["w"], p["qkv"]["b"],
                       ln1=(p["norm1"]["g"], p["norm1"]["b"]))

    # TODO(synk): head split/merge still goes through XLA transposes; folding it
    # into the qkv/proj kernels needs a lane-aligned per-head layout (Dh >= 128).
    qkv = qkv.reshape(B, T_pad, 3, num_heads, Dh).transpose(2, 0, 3, 1, 4)
    q = qkv[0].reshape(B * num_heads, T_pad, Dh)
    k = qkv[1].reshape(B * num_heads, T_pad, Dh)
    v = qkv[2].reshape(B * num_heads, T_pad, Dh)

    o = flash_attention(q, k, v, kv_len=T_true, scale=scale)
    o = o.reshape(B, num_heads, T_pad, Dh).transpose(0, 2, 1, 3).reshape(B * T_pad, D)

    # attention output projection with fused residual add
    x_flat = fused_linear(o, p["proj"]["w"], p["proj"]["b"], residual=x_flat)

    # MLP: LN2 + fc1 + exact GELU fused; fc2 + residual fused
    h = fused_linear(x_flat, p["fc1"]["w"], p["fc1"]["b"],
                     ln1=(p["norm2"]["g"], p["norm2"]["b"]), gelu=True)
    x_flat = fused_linear(h, p["fc2"]["w"], p["fc2"]["b"], residual=x_flat)
    return x_flat


def mae_decoder_forward(params, x, restore_idxs, num_heads):
    B, Nvis, Cin = x.shape
    D = params["input_proj"]["w"].shape[1]
    Dout = params["out_lin"]["w"].shape[1]

    # input projection (tiled Pallas matmul)
    x = fused_linear(x.reshape(B * Nvis, Cin),
                     params["input_proj"]["w"], params["input_proj"]["b"],
                     out_dtype=jnp.float32).reshape(B, Nvis, D)

    # un-shuffle with mask tokens + positional embedding (gather glue in JAX)
    L = restore_idxs.shape[1]
    n_mask = L + 1 - Nvis
    mask_tokens = jnp.broadcast_to(params["mask_token"], (B, n_mask, D))
    x_ = jnp.concatenate([x[:, 1:, :], mask_tokens], axis=1)
    x_ = jnp.take_along_axis(x_, restore_idxs[:, :, None].astype(jnp.int32), axis=1)
    x = jnp.concatenate([x[:, :1, :], x_], axis=1)            # (B, L+1, D)

    T = x.shape[1]
    x = x + params["pos_embed"][:, :T, :]                     # pos_drop = identity (p=0)

    # pad sequence for sublane alignment; activations flow as bf16
    T_pad = _round_up(T, 8)
    if T_pad != T:
        x = jnp.pad(x, ((0, 0), (0, T_pad - T), (0, 0)))
    x_flat = x.reshape(B * T_pad, D).astype(jnp.bfloat16)

    for bp in params["blocks"]:
        x_flat = _block_forward(x_flat, B, T_pad, T, bp, num_heads)

    # final norm -> output LayerNorm -> output Linear fused into one kernel
    out = fused_linear(x_flat, params["out_lin"]["w"], params["out_lin"]["b"],
                       ln1=(params["norm"]["g"], params["norm"]["b"]),
                       ln2=(params["out_ln"]["g"], params["out_ln"]["b"]),
                       out_dtype=jnp.float32)
    out = out.reshape(B, T_pad, Dout)
    return out[:, 1:T, :]                                      # drop CLS + padding


# ---------------------------------------------------------------------------
if __name__ == "__main__":
    key = jax.random.PRNGKey(0)

    # small, module-consistent shapes (head_dim = 64 -> MXU-friendly attention)
    B = 2
    input_dim = 16
    outputdim = 8
    embed_dim = 128
    num_heads = 2
    depth = 2
    mlp_ratio = 4.0
    num_patches = 10          # full (restored) sequence length L
    n_visible_tokens = 5      # 4 visible patches + 1 cls token

    k_params, k_x, k_perm = jax.random.split(key, 3)
    params = init_params(k_params, input_dim, outputdim, embed_dim,
                         num_patches, depth, mlp_ratio)

    x = jax.random.normal(k_x, (B, n_visible_tokens, input_dim), jnp.float32)
    restore_idxs = jnp.stack(
        [jax.random.permutation(jax.random.fold_in(k_perm, b), num_patches)
         for b in range(B)]).astype(jnp.int32)                # (B, L)

    fwd = jax.jit(functools.partial(mae_decoder_forward, num_heads=num_heads))
    out = fwd(params, x, restore_idxs)
    out = jax.block_until_ready(out)
    assert out.shape == (B, num_patches, outputdim), out.shape
    assert bool(jnp.all(jnp.isfinite(out)))
    print("KERNEL_OK")
</pallas_src>

<mosaic_0001>
module attributes {stable_mosaic.version = 11 : i64} {
  func.func @_fused_linear_kernel(%arg0: i32, %arg1: i32, %arg2: i32, %arg3: memref<16x128xf32, #tpu.memory_space<vmem>>, %arg4: memref<128x128xbf16, #tpu.memory_space<vmem>>, %arg5: memref<1x128xf32, #tpu.memory_space<vmem>>, %arg6: memref<16x128xf32, #tpu.memory_space<vmem>>, %arg7: memref<16x128xf32, #tpu.memory_space<vmem>>) attributes {dimension_semantics = [#tpu.dimension_semantics<parallel>, #tpu.dimension_semantics<parallel>, #tpu.dimension_semantics<arbitrary>], iteration_bounds = array<i64: 1, 1, 1>, scalar_prefetch = 0 : i64, scratch_operands = 1 : i64, tpu.core_type = #tpu.core_type<tc>, window_params = [{transform_indices = @transform_0, window_bounds = array<i64: 16, 128>}, {transform_indices = @transform_1, window_bounds = array<i64: 128, 128>}, {transform_indices = @transform_2, window_bounds = array<i64: 1, 128>}, {transform_indices = @transform_3, window_bounds = array<i64: 16, 128>}]} {
    %c0_i32 = arith.constant 0 : i32
    %0 = arith.cmpi eq, %arg2, %c0_i32 : i32
    %1 = arith.extui %0 : i1 to i32
    %c0_i32_0 = arith.constant 0 : i32
    %2 = arith.cmpi ne, %1, %c0_i32_0 : i32
    scf.if %2 {
      %cst_10 = arith.constant 0.000000e+00 : f32
      %13 = vector.broadcast %cst_10 : f32 to vector<16x128xf32>
      %c0_11 = arith.constant 0 : index
      %c0_12 = arith.constant 0 : index
      %14 = vector.load %arg7[%c0_11, %c0_12] : memref<16x128xf32, #tpu.memory_space<vmem>>, vector<16x128xf32>
      tpu.vector_store %arg7[%c0_11, %c0_12], %13 {strides = array<i32>} : memref<16x128xf32, #tpu.memory_space<vmem>>, vector<16x128xf32>,
    } else {
    }
    %c0 = arith.constant 0 : index
    %c0_1 = arith.constant 0 : index
    %3 = vector.load %arg3[%c0, %c0_1] : memref<16x128xf32, #tpu.memory_space<vmem>>, vector<16x128xf32>
    %4 = arith.truncf %3 : vector<16x128xf32> to vector<16x128xbf16>
    %c0_2 = arith.constant 0 : index
    %c0_3 = arith.constant 0 : index
    %5 = vector.load %arg7[%c0_2, %c0_3] : memref<16x128xf32, #tpu.memory_space<vmem>>, vector<16x128xf32>
    %c0_4 = arith.constant 0 : index
    %c0_5 = arith.constant 0 : index
    %6 = vector.load %arg4[%c0_4, %c0_5] : memref<128x128xbf16, #tpu.memory_space<vmem>>, vector<128x128xbf16>
    %cst = arith.constant dense<0.000000e+00> : vector<16x128xf32>
    %7 = tpu.matmul %4, %6, %cst {dimension_numbers = #tpu.dot_dimension_numbers<[1], [0], [0], [1], [0, 0, 1, 1], [], []>} : vector<16x128xbf16>, vector<128x128xbf16>, vector<16x128xf32> -> vector<16x128xf32>
    %8 = arith.addf %5, %7 : vector<16x128xf32>
    %c0_6 = arith.constant 0 : index
    %c0_7 = arith.constant 0 : index
    %9 = vector.load %arg7[%c0_6, %c0_7] : memref<16x128xf32, #tpu.memory_space<vmem>>, vector<16x128xf32>
    tpu.vector_store %arg7[%c0_6, %c0_7], %8 {strides = array<i32>} : memref<16x128xf32, #tpu.memory_space<vmem>>, vector<16x128xf32>,
    %c0_i32_8 = arith.constant 0 : i32
    %10 = arith.cmpi eq, %arg2, %c0_i32_8 : i32
    %11 = arith.extui %10 : i1 to i32
    %c0_i32_9 = arith.constant 0 : i32
    %12 = arith.cmpi ne, %11, %c0_i32_9 : i32
    scf.if %12 {
      %c0_10 = arith.constant 0 : index
      %c0_11 = arith.constant 0 : index
      %13 = vector.load %arg7[%c0_10, %c0_11] : memref<16x128xf32, #tpu.memory_space<vmem>>, vector<16x128xf32>
      %c0_12 = arith.constant 0 : index
      %c0_13 = arith.constant 0 : index
      %14 = vector.load %arg5[%c0_12, %c0_13] : memref<1x128xf32, #tpu.memory_space<vmem>>, vector<1x128xf32>
      %15 = vector.broadcast %14 : vector<1x128xf32> to vector<16x128xf32>
      %16 = arith.addf %13, %15 : vector<16x128xf32>
      %c0_14 = arith.constant 0 : index
      %c0_15 = arith.constant 0 : index
      %17 = vector.load %arg6[%c0_14, %c0_15] : memref<16x128xf32, #tpu.memory_space<vmem>>, vector<16x128xf32>
      tpu.vector_store %arg6[%c0_14, %c0_15], %16 {strides = array<i32>} : memref<16x128xf32, #tpu.memory_space<vmem>>, vector<16x128xf32>,
    } else {
    }
    return
  }
  func.func @transform_0(%arg0: i32, %arg1: i32, %arg2: i32) -> (i32, i32) {
    %c0_i32 = arith.constant 0 : i32
    return %arg0, %arg2 : i32, i32
  }
  func.func @transform_1(%arg0: i32, %arg1: i32, %arg2: i32) -> (i32, i32) {
    %c0_i32 = arith.constant 0 : i32
    return %arg2, %arg1 : i32, i32
  }
  func.func @transform_2(%arg0: i32, %arg1: i32, %arg2: i32) -> (i32, i32) {
    %c0_i32 = arith.constant 0 : i32
    %c0_i32_0 = arith.constant 0 : i32
    return %c0_i32, %arg1 : i32, i32
  }
  func.func @transform_3(%arg0: i32, %arg1: i32, %arg2: i32) -> (i32, i32) {
    %c0_i32 = arith.constant 0 : i32
    return %arg0, %arg1 : i32, i32
  }
}

module attributes {stable_mosaic.version = 11 : i64} {
  func.func @_fused_linear_kernel(%arg0: i32, %arg1: i32, %arg2: i32, %arg3: memref<32x128xbf16, #tpu.memory_space<vmem>>, %arg4: memref<1x128xf32, #tpu.memory_space<vmem>>, %arg5: memref<1x128xf32, #tpu.memory_space<vmem>>, %arg6: memref<128x384xbf16, #tpu.memory_space<vmem>>, %arg7: memref<1x384xf32, #tpu.memory_space<vmem>>, %arg8: memref<32x384xbf16, #tpu.memory_space<vmem>>, %arg9: memref<32x384xf32, #tpu.memory_space<vmem>>) attributes {dimension_semantics = [#tpu.dimension_semantics<parallel>, #tpu.dimension_semantics<parallel>, #tpu.dimension_semantics<arbitrary>], iteration_bounds = array<i64: 1, 1, 1>, scalar_prefetch = 0 : i64, scratch_operands = 1 : i64, tpu.core_type = #tpu.core_type<tc>, window_params = [{transform_indices = @transform_0, window_bounds = array<i64: 32, 128>}, {pipeline_mode = #tpu.pipeline_mode<synchronous>, transform_indices = @transform_1, window_bounds = array<i64: 1, 128>}, {pipeline_mode = #tpu.pipeline_mode<synchronous>, transform_indices = @transform_2, window_bounds = array<i64: 1, 128>}, {transform_indices = @transform_3, window_bounds = array<i64: 128, 384>}, {transform_indices = @transform_4, window_bounds = array<i64: 1, 384>}, {transform_indices = @transform_5, window_bounds = array<i64: 32, 384>}]} {
    %c0_i32 = arith.constant 0 : i32
    %0 = arith.cmpi eq, %arg2, %c0_i32 : i32
    %1 = arith.extui %0 : i1 to i32
    %c0_i32_0 = arith.constant 0 : i32
    %2 = arith.cmpi ne, %1, %c0_i32_0 : i32
    scf.if %2 {
      %cst_19 = arith.constant 0.000000e+00 : f32
      %36 = vector.broadcast %cst_19 : f32 to vector<32x384xf32>
      %c0_20 = arith.constant 0 : index
      %c0_21 = arith.constant 0 : index
      %37 = vector.load %arg9[%c0_20, %c0_21] : memref<32x384xf32, #tpu.memory_space<vmem>>, vector<32x384xf32>
      tpu.vector_store %arg9[%c0_20, %c0_21], %36 {strides = array<i32>} : memref<32x384xf32, #tpu.memory_space<vmem>>, vector<32x384xf32>,
    } else {
    }
    %c0 = arith.constant 0 : index
    %c0_1 = arith.constant 0 : index
    %3 = vector.load %arg3[%c0, %c0_1] : memref<32x128xbf16, #tpu.memory_space<vmem>>, vector<32x128xbf16>
    %4 = arith.extf %3 : vector<32x128xbf16> to vector<32x128xf32>
    %c0_2 = arith.constant 0 : index
    %c0_3 = arith.constant 0 : index
    %5 = vector.load %arg4[%c0_2, %c0_3] : memref<1x128xf32, #tpu.memory_space<vmem>>, vector<1x128xf32>
    %c0_4 = arith.constant 0 : index
    %c0_5 = arith.constant 0 : index
    %6 = vector.load %arg5[%c0_4, %c0_5] : memref<1x128xf32, #tpu.memory_space<vmem>>, vector<1x128xf32>
    %cst = arith.constant dense<0.000000e+00> : vector<32xf32>
    %7 = vector.multi_reduction <add>, %4, %cst [1] : vector<32x128xf32> to vector<32xf32>
    %8 = vector.shape_cast %7 : vector<32xf32> to vector<32x1xf32>
    %cst_6 = arith.constant 1.280000e+02 : f32
    %9 = vector.broadcast %cst_6 : f32 to vector<32x1xf32>
    %10 = arith.divf %8, %9 : vector<32x1xf32>
    %11 = vector.broadcast %10 : vector<32x1xf32> to vector<32x128xf32>
    %12 = arith.subf %4, %11 : vector<32x128xf32>
    %13 = arith.mulf %12, %12 : vector<32x128xf32>
    %cst_7 = arith.constant dense<0.000000e+00> : vector<32xf32>
    %14 = vector.multi_reduction <add>, %13, %cst_7 [1] : vector<32x128xf32> to vector<32xf32>
    %15 = vector.shape_cast %14 : vector<32xf32> to vector<32x1xf32>
    %cst_8 = arith.constant 1.280000e+02 : f32
    %16 = vector.broadcast %cst_8 : f32 to vector<32x1xf32>
    %17 = arith.divf %15, %16 : vector<32x1xf32>
    %cst_9 = arith.constant 9.99999997E-7 : f32
    %18 = vector.broadcast %cst_9 : f32 to vector<32x1xf32>
    %19 = arith.addf %17, %18 : vector<32x1xf32>
    %20 = math.rsqrt %19 : vector<32x1xf32>
    %21 = vector.broadcast %20 : vector<32x1xf32> to vector<32x128xf32>
    %22 = arith.mulf %12, %21 : vector<32x128xf32>
    %23 = vector.broadcast %5 : vector<1x128xf32> to vector<32x128xf32>
    %24 = arith.mulf %22, %23 : vector<32x128xf32>
    %25 = vector.broadcast %6 : vector<1x128xf32> to vector<32x128xf32>
    %26 = arith.addf %24, %25 : vector<32x128xf32>
    %27 = arith.truncf %26 : vector<32x128xf32> to vector<32x128xbf16>
    %c0_10 = arith.constant 0 : index
    %c0_11 = arith.constant 0 : index
    %28 = vector.load %arg9[%c0_10, %c0_11] : memref<32x384xf32, #tpu.memory_space<vmem>>, vector<32x384xf32>
    %c0_12 = arith.constant 0 : index
    %c0_13 = arith.constant 0 : index
    %29 = vector.load %arg6[%c0_12, %c0_13] : memref<128x384xbf16, #tpu.memory_space<vmem>>, vector<128x384xbf16>
    %cst_14 = arith.constant dense<0.000000e+00> : vector<32x384xf32>
    %30 = tpu.matmul %27, %29, %cst_14 {dimension_numbers = #tpu.dot_dimension_numbers<[1], [0], [0], [1], [0, 0, 1, 1], [], []>} : vector<32x128xbf16>, vector<128x384xbf16>, vector<32x384xf32> -> vector<32x384xf32>
    %31 = arith.addf %28, %30 : vector<32x384xf32>
    %c0_15 = arith.constant 0 : index
    %c0_16 = arith.constant 0 : index
    %32 = vector.load %arg9[%c0_15, %c0_16] : memref<32x384xf32, #tpu.memory_space<vmem>>, vector<32x384xf32>
    tpu.vector_store %arg9[%c0_15, %c0_16], %31 {strides = array<i32>} : memref<32x384xf32, #tpu.memory_space<vmem>>, vector<32x384xf32>,
    %c0_i32_17 = arith.constant 0 : i32
    %33 = arith.cmpi eq, %arg2, %c0_i32_17 : i32
    %34 = arith.extui %33 : i1 to i32
    %c0_i32_18 = arith.constant 0 : i32
    %35 = arith.cmpi ne, %34, %c0_i32_18 : i32
    scf.if %35 {
      %c0_19 = arith.constant 0 : index
      %c0_20 = arith.constant 0 : index
      %36 = vector.load %arg9[%c0_19, %c0_20] : memref<32x384xf32, #tpu.memory_space<vmem>>, vector<32x384xf32>
      %c0_21 = arith.constant 0 : index
      %c0_22 = arith.constant 0 : index
      %37 = vector.load %arg7[%c0_21, %c0_22] : memref<1x384xf32, #tpu.memory_space<vmem>>, vector<1x384xf32>
      %38 = vector.broadcast %37 : vector<1x384xf32> to vector<32x384xf32>
      %39 = arith.addf %36, %38 : vector<32x384xf32>
      %40 = arith.truncf %39 : vector<32x384xf32> to vector<32x384xbf16>
      %c0_23 = arith.constant 0 : index
      %c0_24 = arith.constant 0 : index
      %41 = vector.load %arg8[%c0_23, %c0_24] : memref<32x384xbf16, #tpu.memory_space<vmem>>, vector<32x384xbf16>
      tpu.vector_store %arg8[%c0_23, %c0_24], %40 {strides = array<i32>} : memref<32x384xbf16, #tpu.memory_space<vmem>>, vector<32x384xbf16>,
    } else {
    }
    return
  }
  func.func @transform_0(%arg0: i32, %arg1: i32, %arg2: i32) -> (i32, i32) {
    %c0_i32 = arith.constant 0 : i32
    return %arg0, %arg2 : i32, i32
  }
  func.func @transform_1(%arg0: i32, %arg1: i32, %arg2: i32) -> (i32, i32) {
    %c0_i32 = arith.constant 0 : i32
    %c0_i32_0 = arith.constant 0 : i32
    %c0_i32_1 = arith.constant 0 : i32
    return %c0_i32, %c0_i32_0 : i32, i32
  }
  func.func @transform_2(%arg0: i32, %arg1: i32, %arg2: i32) -> (i32, i32) {
    %c0_i32 = arith.constant 0 : i32
    %c0_i32_0 = arith.constant 0 : i32
    %c0_i32_1 = arith.constant 0 : i32
    return %c0_i32, %c0_i32_0 : i32, i32
  }
  func.func @transform_3(%arg0: i32, %arg1: i32, %arg2: i32) -> (i32, i32) {
    %c0_i32 = arith.constant 0 : i32
    return %arg2, %arg1 : i32, i32
  }
  func.func @transform_4(%arg0: i32, %arg1: i32, %arg2: i32) -> (i32, i32) {
    %c0_i32 = arith.constant 0 : i32
    %c0_i32_0 = arith.constant 0 : i32
    return %c0_i32, %arg1 : i32, i32
  }
  func.func @transform_5(%arg0: i32, %arg1: i32, %arg2: i32) -> (i32, i32) {
    %c0_i32 = arith.constant 0 : i32
    return %arg0, %arg1 : i32, i32
  }
}

module attributes {stable_mosaic.version = 11 : i64} {
  func.func @_flash_attn_kernel(%arg0: i32, %arg1: i32, %arg2: i32, %arg3: memref<1x16x64xbf16, #tpu.memory_space<vmem>>, %arg4: memref<1x16x64xbf16, #tpu.memory_space<vmem>>, %arg5: memref<1x16x64xbf16, #tpu.memory_space<vmem>>, %arg6: memref<1x16x64xbf16, #tpu.memory_space<vmem>>, %arg7: memref<16x1xf32, #tpu.memory_space<vmem>>, %arg8: memref<16x1xf32, #tpu.memory_space<vmem>>, %arg9: memref<16x64xf32, #tpu.memory_space<vmem>>) attributes {dimension_semantics = [#tpu.dimension_semantics<parallel>, #tpu.dimension_semantics<parallel>, #tpu.dimension_semantics<arbitrary>], iteration_bounds = array<i64: 4, 1, 1>, scalar_prefetch = 0 : i64, scratch_operands = 3 : i64, tpu.core_type = #tpu.core_type<tc>, window_params = [{transform_indices = @transform_0, window_bounds = array<i64: 1, 16, 64>}, {transform_indices = @transform_1, window_bounds = array<i64: 1, 16, 64>}, {transform_indices = @transform_2, window_bounds = array<i64: 1, 16, 64>}, {transform_indices = @transform_3, window_bounds = array<i64: 1, 16, 64>}]} {
    %c0_i32 = arith.constant 0 : i32
    %0 = arith.cmpi eq, %arg2, %c0_i32 : i32
    %1 = arith.extui %0 : i1 to i32
    %c0_i32_0 = arith.constant 0 : i32
    %2 = arith.cmpi ne, %1, %c0_i32_0 : i32
    scf.if %2 {
      %cst_28 = arith.constant -1.000000e+30 : f32
      %46 = vector.broadcast %cst_28 : f32 to vector<16x1xf32>
      %c0_29 = arith.constant 0 : index
      %c0_30 = arith.constant 0 : index
      %47 = vector.load %arg7[%c0_29, %c0_30] : memref<16x1xf32, #tpu.memory_space<vmem>>, vector<16x1xf32>
      tpu.vector_store %arg7[%c0_29, %c0_30], %46 {strides = array<i32>} : memref<16x1xf32, #tpu.memory_space<vmem>>, vector<16x1xf32>,
      %cst_31 = arith.constant 0.000000e+00 : f32
      %48 = vector.broadcast %cst_31 : f32 to vector<16x1xf32>
      %c0_32 = arith.constant 0 : index
      %c0_33 = arith.constant 0 : index
      %49 = vector.load %arg8[%c0_32, %c0_33] : memref<16x1xf32, #tpu.memory_space<vmem>>, vector<16x1xf32>
      tpu.vector_store %arg8[%c0_32, %c0_33], %48 {strides = array<i32>} : memref<16x1xf32, #tpu.memory_space<vmem>>, vector<16x1xf32>,
      %cst_34 = arith.constant 0.000000e+00 : f32
      %50 = vector.broadcast %cst_34 : f32 to vector<16x64xf32>
      %c0_35 = arith.constant 0 : index
      %c0_36 = arith.constant 0 : index
      %51 = vector.load %arg9[%c0_35, %c0_36] : memref<16x64xf32, #tpu.memory_space<vmem>>, vector<16x64xf32>
      tpu.vector_store %arg9[%c0_35, %c0_36], %50 {strides = array<i32>} : memref<16x64xf32, #tpu.memory_space<vmem>>, vector<16x64xf32>,
    } else {
    }
    %c0 = arith.constant 0 : index
    %c0_1 = arith.constant 0 : index
    %c0_2 = arith.constant 0 : index
    %3 = vector.load %arg3[%c0, %c0_1, %c0_2] : memref<1x16x64xbf16, #tpu.memory_space<vmem>>, vector<1x16x64xbf16>
    %4 = vector.shape_cast %3 : vector<1x16x64xbf16> to vector<16x64xbf16>
    %c0_3 = arith.constant 0 : index
    %c0_4 = arith.constant 0 : index
    %c0_5 = arith.constant 0 : index
    %5 = vector.load %arg4[%c0_3, %c0_4, %c0_5] : memref<1x16x64xbf16, #tpu.memory_space<vmem>>, vector<1x16x64xbf16>
    %6 = vector.shape_cast %5 : vector<1x16x64xbf16> to vector<16x64xbf16>
    %cst = arith.constant dense<0.000000e+00> : vector<16x16xf32>
    %7 = tpu.matmul %4, %6, %cst {dimension_numbers = #tpu.dot_dimension_numbers<[1], [1], [0], [0], [0, 0, 1, 0], [], []>} : vector<16x64xbf16>, vector<16x64xbf16>, vector<16x16xf32> -> vector<16x16xf32>
    %cst_6 = arith.constant 1.250000e-01 : f32
    %8 = vector.broadcast %cst_6 : f32 to vector<16x16xf32>
    %9 = arith.mulf %7, %8 : vector<16x16xf32>
    %c16_i32 = arith.constant 16 : i32
    %10 = arith.muli %arg2, %c16_i32 : i32
    %11 = tpu.iota {dimensions = array<i32: 1>} : vector<16x16xi32>
    %12 = vector.broadcast %10 : i32 to vector<16x16xi32>
    %13 = arith.addi %12, %11 : vector<16x16xi32>
    %c11_i32 = arith.constant 11 : i32
    %14 = vector.broadcast %c11_i32 : i32 to vector<16x16xi32>
    %15 = arith.cmpi slt, %13, %14 : vector<16x16xi32>
    %cst_7 = arith.constant -1.000000e+30 : f32
    %16 = vector.broadcast %cst_7 : f32 to vector<16x16xf32>
    %17 = arith.select %15, %9, %16 : vector<16x16xi1>, vector<16x16xf32>
    %c0_8 = arith.constant 0 : index
    %c0_9 = arith.constant 0 : index
    %18 = vector.load %arg7[%c0_8, %c0_9] : memref<16x1xf32, #tpu.memory_space<vmem>>, vector<16x1xf32>
    %cst_10 = arith.constant dense<0xFF800000> : vector<16xf32>
    %19 = vector.multi_reduction <maximumf>, %17, %cst_10 [1] : vector<16x16xf32> to vector<16xf32>
    %20 = vector.shape_cast %19 : vector<16xf32> to vector<16x1xf32>
    %21 = arith.maximumf %18, %20 : vector<16x1xf32>
    %22 = arith.subf %18, %21 : vector<16x1xf32>
    %23 = math.exp %22 : vector<16x1xf32>
    %24 = vector.broadcast %21 : vector<16x1xf32> to vector<16x16xf32>
    %25 = arith.subf %17, %24 : vector<16x16xf32>
    %26 = math.exp %25 : vector<16x16xf32>
    %c0_11 = arith.constant 0 : index
    %c0_12 = arith.constant 0 : index
    %27 = vector.load %arg8[%c0_11, %c0_12] : memref<16x1xf32, #tpu.memory_space<vmem>>, vector<16x1xf32>
    %28 = arith.mulf %23, %27 : vector<16x1xf32>
    %cst_13 = arith.constant dense<0.000000e+00> : vector<16xf32>
    %29 = vector.multi_reduction <add>, %26, %cst_13 [1] : vector<16x16xf32> to vector<16xf32>
    %30 = vector.shape_cast %29 : vector<16xf32> to vector<16x1xf32>
    %31 = arith.addf %28, %30 : vector<16x1xf32>
    %c0_14 = arith.constant 0 : index
    %c0_15 = arith.constant 0 : index
    %32 = vector.load %arg8[%c0_14, %c0_15] : memref<16x1xf32, #tpu.memory_space<vmem>>, vector<16x1xf32>
    tpu.vector_store %arg8[%c0_14, %c0_15], %31 {strides = array<i32>} : memref<16x1xf32, #tpu.memory_space<vmem>>, vector<16x1xf32>,
    %c0_16 = arith.constant 0 : index
    %c0_17 = arith.constant 0 : index
    %33 = vector.load %arg9[%c0_16, %c0_17] : memref<16x64xf32, #tpu.memory_space<vmem>>, vector<16x64xf32>
    %34 = vector.broadcast %23 : vector<16x1xf32> to vector<16x64xf32>
    %35 = arith.mulf %34, %33 : vector<16x64xf32>
    %36 = arith.truncf %26 : vector<16x16xf32> to vector<16x16xbf16>
    %c0_18 = arith.constant 0 : index
    %c0_19 = arith.constant 0 : index
    %c0_20 = arith.constant 0 : index
    %37 = vector.load %arg5[%c0_18, %c0_19, %c0_20] : memref<1x16x64xbf16, #tpu.memory_space<vmem>>, vector<1x16x64xbf16>
    %38 = vector.shape_cast %37 : vector<1x16x64xbf16> to vector<16x64xbf16>
    %cst_21 = arith.constant dense<0.000000e+00> : vector<16x64xf32>
    %39 = tpu.matmul %36, %38, %cst_21 {dimension_numbers = #tpu.dot_dimension_numbers<[1], [0], [0], [1], [0, 0, 1, 1], [], []>} : vector<16x16xbf16>, vector<16x64xbf16>, vector<16x64xf32> -> vector<16x64xf32>
    %40 = arith.addf %35, %39 : vector<16x64xf32>
    %c0_22 = arith.constant 0 : index
    %c0_23 = arith.constant 0 : index
    %41 = vector.load %arg9[%c0_22, %c0_23] : memref<16x64xf32, #tpu.memory_space<vmem>>, vector<16x64xf32>
    tpu.vector_store %arg9[%c0_22, %c0_23], %40 {strides = array<i32>} : memref<16x64xf32, #tpu.memory_space<vmem>>, vector<16x64xf32>,
    %c0_24 = arith.constant 0 : index
    %c0_25 = arith.constant 0 : index
    %42 = vector.load %arg7[%c0_24, %c0_25] : memref<16x1xf32, #tpu.memory_space<vmem>>, vector<16x1xf32>
    tpu.vector_store %arg7[%c0_24, %c0_25], %21 {strides = array<i32>} : memref<16x1xf32, #tpu.memory_space<vmem>>, vector<16x1xf32>,
    %c0_i32_26 = arith.constant 0 : i32
    %43 = arith.cmpi eq, %arg2, %c0_i32_26 : i32
    %44 = arith.extui %43 : i1 to i32
    %c0_i32_27 = arith.constant 0 : i32
    %45 = arith.cmpi ne, %44, %c0_i32_27 : i32
    scf.if %45 {
      %c0_28 = arith.constant 0 : index
      %c0_29 = arith.constant 0 : index
      %46 = vector.load %arg8[%c0_28, %c0_29] : memref<16x1xf32, #tpu.memory_space<vmem>>, vector<16x1xf32>
      %47 = tpu.reciprocal %46 {approx = true} : vector<16x1xf32> -> vector<16x1xf32>
      %c0_30 = arith.constant 0 : index
      %c0_31 = arith.constant 0 : index
      %48 = vector.load %arg9[%c0_30, %c0_31] : memref<16x64xf32, #tpu.memory_space<vmem>>, vector<16x64xf32>
      %49 = vector.broadcast %47 : vector<16x1xf32> to vector<16x64xf32>
      %50 = arith.mulf %48, %49 : vector<16x64xf32>
      %51 = arith.truncf %50 : vector<16x64xf32> to vector<16x64xbf16>
      %c0_32 = arith.constant 0 : index
      %c0_33 = arith.constant 0 : index
      %c0_34 = arith.constant 0 : index
      %52 = vector.load %arg6[%c0_32, %c0_33, %c0_34] : memref<1x16x64xbf16, #tpu.memory_space<vmem>>, vector<1x16x64xbf16>
      %53 = vector.shape_cast %52 : vector<1x16x64xbf16> to vector<16x64xbf16>
      %54 = vector.shape_cast %51 : vector<16x64xbf16> to vector<1x16x64xbf16>
      tpu.vector_store %arg6[%c0_32, %c0_33, %c0_34], %54 {strides = array<i32>} : memref<1x16x64xbf16, #tpu.memory_space<vmem>>, vector<1x16x64xbf16>,
    } else {
    }
    return
  }
  func.func @transform_0(%arg0: i32, %arg1: i32, %arg2: i32) -> (i32, i32, i32) {
    %c0_i32 = arith.constant 0 : i32
    %c0_i32_0 = arith.constant 0 : i32
    return %arg0, %arg1, %c0_i32 : i32, i32, i32
  }
  func.func @transform_1(%arg0: i32, %arg1: i32, %arg2: i32) -> (i32, i32, i32) {
    %c0_i32 = arith.constant 0 : i32
    %c0_i32_0 = arith.constant 0 : i32
    return %arg0, %arg2, %c0_i32 : i32, i32, i32
  }
  func.func @transform_2(%arg0: i32, %arg1: i32, %arg2: i32) -> (i32, i32, i32) {
    %c0_i32 = arith.constant 0 : i32
    %c0_i32_0 = arith.constant 0 : i32
    return %arg0, %arg2, %c0_i32 : i32, i32, i32
  }
  func.func @transform_3(%arg0: i32, %arg1: i32, %arg2: i32) -> (i32, i32, i32) {
    %c0_i32 = arith.constant 0 : i32
    %c0_i32_0 = arith.constant 0 : i32
    return %arg0, %arg1, %c0_i32 : i32, i32, i32
  }
}

module attributes {stable_mosaic.version = 11 : i64} {
  func.func @_fused_linear_kernel(%arg0: i32, %arg1: i32, %arg2: i32, %arg3: memref<32x128xbf16, #tpu.memory_space<vmem>>, %arg4: memref<128x128xbf16, #tpu.memory_space<vmem>>, %arg5: memref<1x128xf32, #tpu.memory_space<vmem>>, %arg6: memref<32x128xbf16, #tpu.memory_space<vmem>>, %arg7: memref<32x128xbf16, #tpu.memory_space<vmem>>, %arg8: memref<32x128xf32, #tpu.memory_space<vmem>>) attributes {dimension_semantics = [#tpu.dimension_semantics<parallel>, #tpu.dimension_semantics<parallel>, #tpu.dimension_semantics<arbitrary>], iteration_bounds = array<i64: 1, 1, 1>, scalar_prefetch = 0 : i64, scratch_operands = 1 : i64, tpu.core_type = #tpu.core_type<tc>, window_params = [{transform_indices = @transform_0, window_bounds = array<i64: 32, 128>}, {transform_indices = @transform_1, window_bounds = array<i64: 128, 128>}, {transform_indices = @transform_2, window_bounds = array<i64: 1, 128>}, {transform_indices = @transform_3, window_bounds = array<i64: 32, 128>}, {transform_indices = @transform_4, window_bounds = array<i64: 32, 128>}]} {
    %c0_i32 = arith.constant 0 : i32
    %0 = arith.cmpi eq, %arg2, %c0_i32 : i32
    %1 = arith.extui %0 : i1 to i32
    %c0_i32_0 = arith.constant 0 : i32
    %2 = arith.cmpi ne, %1, %c0_i32_0 : i32
    scf.if %2 {
      %cst_10 = arith.constant 0.000000e+00 : f32
      %12 = vector.broadcast %cst_10 : f32 to vector<32x128xf32>
      %c0_11 = arith.constant 0 : index
      %c0_12 = arith.constant 0 : index
      %13 = vector.load %arg8[%c0_11, %c0_12] : memref<32x128xf32, #tpu.memory_space<vmem>>, vector<32x128xf32>
      tpu.vector_store %arg8[%c0_11, %c0_12], %12 {strides = array<i32>} : memref<32x128xf32, #tpu.memory_space<vmem>>, vector<32x128xf32>,
    } else {
    }
    %c0 = arith.constant 0 : index
    %c0_1 = arith.constant 0 : index
    %3 = vector.load %arg3[%c0, %c0_1] : memref<32x128xbf16, #tpu.memory_space<vmem>>, vector<32x128xbf16>
    %c0_2 = arith.constant 0 : index
    %c0_3 = arith.constant 0 : index
    %4 = vector.load %arg8[%c0_2, %c0_3] : memref<32x128xf32, #tpu.memory_space<vmem>>, vector<32x128xf32>
    %c0_4 = arith.constant 0 : index
    %c0_5 = arith.constant 0 : index
    %5 = vector.load %arg4[%c0_4, %c0_5] : memref<128x128xbf16, #tpu.memory_space<vmem>>, vector<128x128xbf16>
    %cst = arith.constant dense<0.000000e+00> : vector<32x128xf32>
    %6 = tpu.matmul %3, %5, %cst {dimension_numbers = #tpu.dot_dimension_numbers<[1], [0], [0], [1], [0, 0, 1, 1], [], []>} : vector<32x128xbf16>, vector<128x128xbf16>, vector<32x128xf32> -> vector<32x128xf32>
    %7 = arith.addf %4, %6 : vector<32x128xf32>
    %c0_6 = arith.constant 0 : index
    %c0_7 = arith.constant 0 : index
    %8 = vector.load %arg8[%c0_6, %c0_7] : memref<32x128xf32, #tpu.memory_space<vmem>>, vector<32x128xf32>
    tpu.vector_store %arg8[%c0_6, %c0_7], %7 {strides = array<i32>} : memref<32x128xf32, #tpu.memory_space<vmem>>, vector<32x128xf32>,
    %c0_i32_8 = arith.constant 0 : i32
    %9 = arith.cmpi eq, %arg2, %c0_i32_8 : i32
    %10 = arith.extui %9 : i1 to i32
    %c0_i32_9 = arith.constant 0 : i32
    %11 = arith.cmpi ne, %10, %c0_i32_9 : i32
    scf.if %11 {
      %c0_10 = arith.constant 0 : index
      %c0_11 = arith.constant 0 : index
      %12 = vector.load %arg8[%c0_10, %c0_11] : memref<32x128xf32, #tpu.memory_space<vmem>>, vector<32x128xf32>
      %c0_12 = arith.constant 0 : index
      %c0_13 = arith.constant 0 : index
      %13 = vector.load %arg5[%c0_12, %c0_13] : memref<1x128xf32, #tpu.memory_space<vmem>>, vector<1x128xf32>
      %14 = vector.broadcast %13 : vector<1x128xf32> to vector<32x128xf32>
      %15 = arith.addf %12, %14 : vector<32x128xf32>
      %c0_14 = arith.constant 0 : index
      %c0_15 = arith.constant 0 : index
      %16 = vector.load %arg6[%c0_14, %c0_15] : memref<32x128xbf16, #tpu.memory_space<vmem>>, vector<32x128xbf16>
      %17 = arith.extf %16 : vector<32x128xbf16> to vector<32x128xf32>
      %18 = arith.addf %15, %17 : vector<32x128xf32>
      %19 = arith.truncf %18 : vector<32x128xf32> to vector<32x128xbf16>
      %c0_16 = arith.constant 0 : index
      %c0_17 = arith.constant 0 : index
      %20 = vector.load %arg7[%c0_16, %c0_17] : memref<32x128xbf16, #tpu.memory_space<vmem>>, vector<32x128xbf16>
      tpu.vector_store %arg7[%c0_16, %c0_17], %19 {strides = array<i32>} : memref<32x128xbf16, #tpu.memory_space<vmem>>, vector<32x128xbf16>,
    } else {
    }
    return
  }
  func.func @transform_0(%arg0: i32, %arg1: i32, %arg2: i32) -> (i32, i32) {
    %c0_i32 = arith.constant 0 : i32
    return %arg0, %arg2 : i32, i32
  }
  func.func @transform_1(%arg0: i32, %arg1: i32, %arg2: i32) -> (i32, i32) {
    %c0_i32 = arith.constant 0 : i32
    return %arg2, %arg1 : i32, i32
  }
  func.func @transform_2(%arg0: i32, %arg1: i32, %arg2: i32) -> (i32, i32) {
    %c0_i32 = arith.constant 0 : i32
    %c0_i32_0 = arith.constant 0 : i32
    return %c0_i32, %arg1 : i32, i32
  }
  func.func @transform_3(%arg0: i32, %arg1: i32, %arg2: i32) -> (i32, i32) {
    %c0_i32 = arith.constant 0 : i32
    return %arg0, %arg1 : i32, i32
  }
  func.func @transform_4(%arg0: i32, %arg1: i32, %arg2: i32) -> (i32, i32) {
    %c0_i32 = arith.constant 0 : i32
    return %arg0, %arg1 : i32, i32
  }
}

module attributes {stable_mosaic.version = 11 : i64} {
  func.func @_fused_linear_kernel(%arg0: i32, %arg1: i32, %arg2: i32, %arg3: memref<32x128xbf16, #tpu.memory_space<vmem>>, %arg4: memref<1x128xf32, #tpu.memory_space<vmem>>, %arg5: memref<1x128xf32, #tpu.memory_space<vmem>>, %arg6: memref<128x512xbf16, #tpu.memory_space<vmem>>, %arg7: memref<1x512xf32, #tpu.memory_space<vmem>>, %arg8: memref<32x512xbf16, #tpu.memory_space<vmem>>, %arg9: memref<32x512xf32, #tpu.memory_space<vmem>>) attributes {dimension_semantics = [#tpu.dimension_semantics<parallel>, #tpu.dimension_semantics<parallel>, #tpu.dimension_semantics<arbitrary>], iteration_bounds = array<i64: 1, 1, 1>, scalar_prefetch = 0 : i64, scratch_operands = 1 : i64, tpu.core_type = #tpu.core_type<tc>, window_params = [{transform_indices = @transform_0, window_bounds = array<i64: 32, 128>}, {pipeline_mode = #tpu.pipeline_mode<synchronous>, transform_indices = @transform_1, window_bounds = array<i64: 1, 128>}, {pipeline_mode = #tpu.pipeline_mode<synchronous>, transform_indices = @transform_2, window_bounds = array<i64: 1, 128>}, {transform_indices = @transform_3, window_bounds = array<i64: 128, 512>}, {transform_indices = @transform_4, window_bounds = array<i64: 1, 512>}, {transform_indices = @transform_5, window_bounds = array<i64: 32, 512>}]} {
    %c0_i32 = arith.constant 0 : i32
    %0 = arith.cmpi eq, %arg2, %c0_i32 : i32
    %1 = arith.extui %0 : i1 to i32
    %c0_i32_0 = arith.constant 0 : i32
    %2 = arith.cmpi ne, %1, %c0_i32_0 : i32
    scf.if %2 {
      %cst_19 = arith.constant 0.000000e+00 : f32
      %36 = vector.broadcast %cst_19 : f32 to vector<32x512xf32>
      %c0_20 = arith.constant 0 : index
      %c0_21 = arith.constant 0 : index
      %37 = vector.load %arg9[%c0_20, %c0_21] : memref<32x512xf32, #tpu.memory_space<vmem>>, vector<32x512xf32>
      tpu.vector_store %arg9[%c0_20, %c0_21], %36 {strides = array<i32>} : memref<32x512xf32, #tpu.memory_space<vmem>>, vector<32x512xf32>,
    } else {
    }
    %c0 = arith.constant 0 : index
    %c0_1 = arith.constant 0 : index
    %3 = vector.load %arg3[%c0, %c0_1] : memref<32x128xbf16, #tpu.memory_space<vmem>>, vector<32x128xbf16>
    %4 = arith.extf %3 : vector<32x128xbf16> to vector<32x128xf32>
    %c0_2 = arith.constant 0 : index
    %c0_3 = arith.constant 0 : index
    %5 = vector.load %arg4[%c0_2, %c0_3] : memref<1x128xf32, #tpu.memory_space<vmem>>, vector<1x128xf32>
    %c0_4 = arith.constant 0 : index
    %c0_5 = arith.constant 0 : index
    %6 = vector.load %arg5[%c0_4, %c0_5] : memref<1x128xf32, #tpu.memory_space<vmem>>, vector<1x128xf32>
    %cst = arith.constant dense<0.000000e+00> : vector<32xf32>
    %7 = vector.multi_reduction <add>, %4, %cst [1] : vector<32x128xf32> to vector<32xf32>
    %8 = vector.shape_cast %7 : vector<32xf32> to vector<32x1xf32>
    %cst_6 = arith.constant 1.280000e+02 : f32
    %9 = vector.broadcast %cst_6 : f32 to vector<32x1xf32>
    %10 = arith.divf %8, %9 : vector<32x1xf32>
    %11 = vector.broadcast %10 : vector<32x1xf32> to vector<32x128xf32>
    %12 = arith.subf %4, %11 : vector<32x128xf32>
    %13 = arith.mulf %12, %12 : vector<32x128xf32>
    %cst_7 = arith.constant dense<0.000000e+00> : vector<32xf32>
    %14 = vector.multi_reduction <add>, %13, %cst_7 [1] : vector<32x128xf32> to vector<32xf32>
    %15 = vector.shape_cast %14 : vector<32xf32> to vector<32x1xf32>
    %cst_8 = arith.constant 1.280000e+02 : f32
    %16 = vector.broadcast %cst_8 : f32 to vector<32x1xf32>
    %17 = arith.divf %15, %16 : vector<32x1xf32>
    %cst_9 = arith.constant 9.99999997E-7 : f32
    %18 = vector.broadcast %cst_9 : f32 to vector<32x1xf32>
    %19 = arith.addf %17, %18 : vector<32x1xf32>
    %20 = math.rsqrt %19 : vector<32x1xf32>
    %21 = vector.broadcast %20 : vector<32x1xf32> to vector<32x128xf32>
    %22 = arith.mulf %12, %21 : vector<32x128xf32>
    %23 = vector.broadcast %5 : vector<1x128xf32> to vector<32x128xf32>
    %24 = arith.mulf %22, %23 : vector<32x128xf32>
    %25 = vector.broadcast %6 : vector<1x128xf32> to vector<32x128xf32>
    %26 = arith.addf %24, %25 : vector<32x128xf32>
    %27 = arith.truncf %26 : vector<32x128xf32> to vector<32x128xbf16>
    %c0_10 = arith.constant 0 : index
    %c0_11 = arith.constant 0 : index
    %28 = vector.load %arg9[%c0_10, %c0_11] : memref<32x512xf32, #tpu.memory_space<vmem>>, vector<32x512xf32>
    %c0_12 = arith.constant 0 : index
    %c0_13 = arith.constant 0 : index
    %29 = vector.load %arg6[%c0_12, %c0_13] : memref<128x512xbf16, #tpu.memory_space<vmem>>, vector<128x512xbf16>
    %cst_14 = arith.constant dense<0.000000e+00> : vector<32x512xf32>
    %30 = tpu.matmul %27, %29, %cst_14 {dimension_numbers = #tpu.dot_dimension_numbers<[1], [0], [0], [1], [0, 0, 1, 1], [], []>} : vector<32x128xbf16>, vector<128x512xbf16>, vector<32x512xf32> -> vector<32x512xf32>
    %31 = arith.addf %28, %30 : vector<32x512xf32>
    %c0_15 = arith.constant 0 : index
    %c0_16 = arith.constant 0 : index
    %32 = vector.load %arg9[%c0_15, %c0_16] : memref<32x512xf32, #tpu.memory_space<vmem>>, vector<32x512xf32>
    tpu.vector_store %arg9[%c0_15, %c0_16], %31 {strides = array<i32>} : memref<32x512xf32, #tpu.memory_space<vmem>>, vector<32x512xf32>,
    %c0_i32_17 = arith.constant 0 : i32
    %33 = arith.cmpi eq, %arg2, %c0_i32_17 : i32
    %34 = arith.extui %33 : i1 to i32
    %c0_i32_18 = arith.constant 0 : i32
    %35 = arith.cmpi ne, %34, %c0_i32_18 : i32
    scf.if %35 {
      %c0_19 = arith.constant 0 : index
      %c0_20 = arith.constant 0 : index
      %36 = vector.load %arg9[%c0_19, %c0_20] : memref<32x512xf32, #tpu.memory_space<vmem>>, vector<32x512xf32>
      %c0_21 = arith.constant 0 : index
      %c0_22 = arith.constant 0 : index
      %37 = vector.load %arg7[%c0_21, %c0_22] : memref<1x512xf32, #tpu.memory_space<vmem>>, vector<1x512xf32>
      %38 = vector.broadcast %37 : vector<1x512xf32> to vector<32x512xf32>
      %39 = arith.addf %36, %38 : vector<32x512xf32>
      %cst_23 = arith.constant 5.000000e-01 : f32
      %40 = vector.broadcast %cst_23 : f32 to vector<32x512xf32>
      %41 = arith.mulf %40, %39 : vector<32x512xf32>
      %cst_24 = arith.constant 0.707106769 : f32
      %42 = vector.broadcast %cst_24 : f32 to vector<32x512xf32>
      %43 = arith.mulf %39, %42 : vector<32x512xf32>
      %44 = math.absf %43 : vector<32x512xf32>
      %cst_25 = arith.constant 0.327591091 : f32
      %45 = vector.broadcast %cst_25 : f32 to vector<32x512xf32>
      %46 = arith.mulf %45, %44 : vector<32x512xf32>
      %cst_26 = arith.constant 1.000000e+00 : f32
      %47 = vector.broadcast %cst_26 : f32 to vector<32x512xf32>
      %48 = arith.addf %47, %46 : vector<32x512xf32>
      %cst_27 = arith.constant 1.000000e+00 : f32
      %49 = vector.broadcast %cst_27 : f32 to vector<32x512xf32>
      %50 = arith.divf %49, %48 : vector<32x512xf32>
      %cst_28 = arith.constant 1.06140542 : f32
      %51 = vector.broadcast %cst_28 : f32 to vector<32x512xf32>
      %52 = arith.mulf %51, %50 : vector<32x512xf32>
      %cst_29 = arith.constant -1.45315206 : f32
      %53 = vector.broadcast %cst_29 : f32 to vector<32x512xf32>
      %54 = arith.addf %52, %53 : vector<32x512xf32>
      %55 = arith.mulf %54, %50 : vector<32x512xf32>
      %cst_30 = arith.constant 1.42141378 : f32
      %56 = vector.broadcast %cst_30 : f32 to vector<32x512xf32>
      %57 = arith.addf %55, %56 : vector<32x512xf32>
      %58 = arith.mulf %57, %50 : vector<32x512xf32>
      %cst_31 = arith.constant -0.284496725 : f32
      %59 = vector.broadcast %cst_31 : f32 to vector<32x512xf32>
      %60 = arith.addf %58, %59 : vector<32x512xf32>
      %61 = arith.mulf %60, %50 : vector<32x512xf32>
      %cst_32 = arith.constant 0.254829586 : f32
      %62 = vector.broadcast %cst_32 : f32 to vector<32x512xf32>
      %63 = arith.addf %61, %62 : vector<32x512xf32>
      %64 = arith.mulf %63, %50 : vector<32x512xf32>
      %65 = arith.mulf %44, %44 : vector<32x512xf32>
      %cst_33 = arith.constant 0.000000e+00 : f32
      %66 = vector.broadcast %cst_33 : f32 to vector<32x512xf32>
      %67 = arith.subf %66, %65 : vector<32x512xf32>
      %68 = math.exp %67 : vector<32x512xf32>
      %69 = arith.mulf %64, %68 : vector<32x512xf32>
      %cst_34 = arith.constant 1.000000e+00 : f32
      %70 = vector.broadcast %cst_34 : f32 to vector<32x512xf32>
      %71 = arith.subf %70, %69 : vector<32x512xf32>
      %cst_35 = arith.constant 0.000000e+00 : f32
      %72 = vector.broadcast %cst_35 : f32 to vector<32x512xf32>
      %73 = arith.cmpf olt, %43, %72 : vector<32x512xf32>
      %cst_36 = arith.constant 0.000000e+00 : f32
      %74 = vector.broadcast %cst_36 : f32 to vector<32x512xf32>
      %75 = arith.subf %74, %71 : vector<32x512xf32>
      %76 = arith.select %73, %75, %71 : vector<32x512xi1>, vector<32x512xf32>
      %cst_37 = arith.constant 1.000000e+00 : f32
      %77 = vector.broadcast %cst_37 : f32 to vector<32x512xf32>
      %78 = arith.addf %77, %76 : vector<32x512xf32>
      %79 = arith.mulf %41, %78 : vector<32x512xf32>
      %80 = arith.truncf %79 : vector<32x512xf32> to vector<32x512xbf16>
      %c0_38 = arith.constant 0 : index
      %c0_39 = arith.constant 0 : index
      %81 = vector.load %arg8[%c0_38, %c0_39] : memref<32x512xbf16, #tpu.memory_space<vmem>>, vector<32x512xbf16>
      tpu.vector_store %arg8[%c0_38, %c0_39], %80 {strides = array<i32>} : memref<32x512xbf16, #tpu.memory_space<vmem>>, vector<32x512xbf16>,
    } else {
    }
    return
  }
  func.func @transform_0(%arg0: i32, %arg1: i32, %arg2: i32) -> (i32, i32) {
    %c0_i32 = arith.constant 0 : i32
    return %arg0, %arg2 : i32, i32
  }
  func.func @transform_1(%arg0: i32, %arg1: i32, %arg2: i32) -> (i32, i32) {
    %c0_i32 = arith.constant 0 : i32
    %c0_i32_0 = arith.constant 0 : i32
    %c0_i32_1 = arith.constant 0 : i32
    return %c0_i32, %c0_i32_0 : i32, i32
  }
  func.func @transform_2(%arg0: i32, %arg1: i32, %arg2: i32) -> (i32, i32) {
    %c0_i32 = arith.constant 0 : i32
    %c0_i32_0 = arith.constant 0 : i32
    %c0_i32_1 = arith.constant 0 : i32
    return %c0_i32, %c0_i32_0 : i32, i32
  }
  func.func @transform_3(%arg0: i32, %arg1: i32, %arg2: i32) -> (i32, i32) {
    %c0_i32 = arith.constant 0 : i32
    return %arg2, %arg1 : i32, i32
  }
  func.func @transform_4(%arg0: i32, %arg1: i32, %arg2: i32) -> (i32, i32) {
    %c0_i32 = arith.constant 0 : i32
    %c0_i32_0 = arith.constant 0 : i32
    return %c0_i32, %arg1 : i32, i32
  }
  func.func @transform_5(%arg0: i32, %arg1: i32, %arg2: i32) -> (i32, i32) {
    %c0_i32 = arith.constant 0 : i32
    return %arg0, %arg1 : i32, i32
  }
}

module attributes {stable_mosaic.version = 11 : i64} {
  func.func @_fused_linear_kernel(%arg0: i32, %arg1: i32, %arg2: i32, %arg3: memref<32x512xbf16, #tpu.memory_space<vmem>>, %arg4: memref<512x128xbf16, #tpu.memory_space<vmem>>, %arg5: memref<1x128xf32, #tpu.memory_space<vmem>>, %arg6: memref<32x128xbf16, #tpu.memory_space<vmem>>, %arg7: memref<32x128xbf16, #tpu.memory_space<vmem>>, %arg8: memref<32x128xf32, #tpu.memory_space<vmem>>) attributes {dimension_semantics = [#tpu.dimension_semantics<parallel>, #tpu.dimension_semantics<parallel>, #tpu.dimension_semantics<arbitrary>], iteration_bounds = array<i64: 1, 1, 1>, scalar_prefetch = 0 : i64, scratch_operands = 1 : i64, tpu.core_type = #tpu.core_type<tc>, window_params = [{transform_indices = @transform_0, window_bounds = array<i64: 32, 512>}, {transform_indices = @transform_1, window_bounds = array<i64: 512, 128>}, {transform_indices = @transform_2, window_bounds = array<i64: 1, 128>}, {transform_indices = @transform_3, window_bounds = array<i64: 32, 128>}, {transform_indices = @transform_4, window_bounds = array<i64: 32, 128>}]} {
    %c0_i32 = arith.constant 0 : i32
    %0 = arith.cmpi eq, %arg2, %c0_i32 : i32
    %1 = arith.extui %0 : i1 to i32
    %c0_i32_0 = arith.constant 0 : i32
    %2 = arith.cmpi ne, %1, %c0_i32_0 : i32
    scf.if %2 {
      %cst_10 = arith.constant 0.000000e+00 : f32
      %12 = vector.broadcast %cst_10 : f32 to vector<32x128xf32>
      %c0_11 = arith.constant 0 : index
      %c0_12 = arith.constant 0 : index
      %13 = vector.load %arg8[%c0_11, %c0_12] : memref<32x128xf32, #tpu.memory_space<vmem>>, vector<32x128xf32>
      tpu.vector_store %arg8[%c0_11, %c0_12], %12 {strides = array<i32>} : memref<32x128xf32, #tpu.memory_space<vmem>>, vector<32x128xf32>,
    } else {
    }
    %c0 = arith.constant 0 : index
    %c0_1 = arith.constant 0 : index
    %3 = vector.load %arg3[%c0, %c0_1] : memref<32x512xbf16, #tpu.memory_space<vmem>>, vector<32x512xbf16>
    %c0_2 = arith.constant 0 : index
    %c0_3 = arith.constant 0 : index
    %4 = vector.load %arg8[%c0_2, %c0_3] : memref<32x128xf32, #tpu.memory_space<vmem>>, vector<32x128xf32>
    %c0_4 = arith.constant 0 : index
    %c0_5 = arith.constant 0 : index
    %5 = vector.load %arg4[%c0_4, %c0_5] : memref<512x128xbf16, #tpu.memory_space<vmem>>, vector<512x128xbf16>
    %cst = arith.constant dense<0.000000e+00> : vector<32x128xf32>
    %6 = tpu.matmul %3, %5, %cst {dimension_numbers = #tpu.dot_dimension_numbers<[1], [0], [0], [1], [0, 0, 1, 1], [], []>} : vector<32x512xbf16>, vector<512x128xbf16>, vector<32x128xf32> -> vector<32x128xf32>
    %7 = arith.addf %4, %6 : vector<32x128xf32>
    %c0_6 = arith.constant 0 : index
    %c0_7 = arith.constant 0 : index
    %8 = vector.load %arg8[%c0_6, %c0_7] : memref<32x128xf32, #tpu.memory_space<vmem>>, vector<32x128xf32>
    tpu.vector_store %arg8[%c0_6, %c0_7], %7 {strides = array<i32>} : memref<32x128xf32, #tpu.memory_space<vmem>>, vector<32x128xf32>,
    %c0_i32_8 = arith.constant 0 : i32
    %9 = arith.cmpi eq, %arg2, %c0_i32_8 : i32
    %10 = arith.extui %9 : i1 to i32
    %c0_i32_9 = arith.constant 0 : i32
    %11 = arith.cmpi ne, %10, %c0_i32_9 : i32
    scf.if %11 {
      %c0_10 = arith.constant 0 : index
      %c0_11 = arith.constant 0 : index
      %12 = vector.load %arg8[%c0_10, %c0_11] : memref<32x128xf32, #tpu.memory_space<vmem>>, vector<32x128xf32>
      %c0_12 = arith.constant 0 : index
      %c0_13 = arith.constant 0 : index
      %13 = vector.load %arg5[%c0_12, %c0_13] : memref<1x128xf32, #tpu.memory_space<vmem>>, vector<1x128xf32>
      %14 = vector.broadcast %13 : vector<1x128xf32> to vector<32x128xf32>
      %15 = arith.addf %12, %14 : vector<32x128xf32>
      %c0_14 = arith.constant 0 : index
      %c0_15 = arith.constant 0 : index
      %16 = vector.load %arg6[%c0_14, %c0_15] : memref<32x128xbf16, #tpu.memory_space<vmem>>, vector<32x128xbf16>
      %17 = arith.extf %16 : vector<32x128xbf16> to vector<32x128xf32>
      %18 = arith.addf %15, %17 : vector<32x128xf32>
      %19 = arith.truncf %18 : vector<32x128xf32> to vector<32x128xbf16>
      %c0_16 = arith.constant 0 : index
      %c0_17 = arith.constant 0 : index
      %20 = vector.load %arg7[%c0_16, %c0_17] : memref<32x128xbf16, #tpu.memory_space<vmem>>, vector<32x128xbf16>
      tpu.vector_store %arg7[%c0_16, %c0_17], %19 {strides = array<i32>} : memref<32x128xbf16, #tpu.memory_space<vmem>>, vector<32x128xbf16>,
    } else {
    }
    return
  }
  func.func @transform_0(%arg0: i32, %arg1: i32, %arg2: i32) -> (i32, i32) {
    %c0_i32 = arith.constant 0 : i32
    return %arg0, %arg2 : i32, i32
  }
  func.func @transform_1(%arg0: i32, %arg1: i32, %arg2: i32) -> (i32, i32) {
    %c0_i32 = arith.constant 0 : i32
    return %arg2, %arg1 : i32, i32
  }
  func.func @transform_2(%arg0: i32, %arg1: i32, %arg2: i32) -> (i32, i32) {
    %c0_i32 = arith.constant 0 : i32
    %c0_i32_0 = arith.constant 0 : i32
    return %c0_i32, %arg1 : i32, i32
  }
  func.func @transform_3(%arg0: i32, %arg1: i32, %arg2: i32) -> (i32, i32) {
    %c0_i32 = arith.constant 0 : i32
    return %arg0, %arg1 : i32, i32
  }
  func.func @transform_4(%arg0: i32, %arg1: i32, %arg2: i32) -> (i32, i32) {
    %c0_i32 = arith.constant 0 : i32
    return %arg0, %arg1 : i32, i32
  }
}

module attributes {stable_mosaic.version = 11 : i64} {
  func.func @_fused_linear_kernel(%arg0: i32, %arg1: i32, %arg2: i32, %arg3: memref<32x128xbf16, #tpu.memory_space<vmem>>, %arg4: memref<1x128xf32, #tpu.memory_space<vmem>>, %arg5: memref<1x128xf32, #tpu.memory_space<vmem>>, %arg6: memref<1x128xf32, #tpu.memory_space<vmem>>, %arg7: memref<1x128xf32, #tpu.memory_space<vmem>>, %arg8: memref<128x8xbf16, #tpu.memory_space<vmem>>, %arg9: memref<1x8xf32, #tpu.memory_space<vmem>>, %arg10: memref<32x8xf32, #tpu.memory_space<vmem>>, %arg11: memref<32x8xf32, #tpu.memory_space<vmem>>) attributes {dimension_semantics = [#tpu.dimension_semantics<parallel>, #tpu.dimension_semantics<parallel>, #tpu.dimension_semantics<arbitrary>], iteration_bounds = array<i64: 1, 1, 1>, scalar_prefetch = 0 : i64, scratch_operands = 1 : i64, tpu.core_type = #tpu.core_type<tc>, window_params = [{transform_indices = @transform_0, window_bounds = array<i64: 32, 128>}, {pipeline_mode = #tpu.pipeline_mode<synchronous>, transform_indices = @transform_1, window_bounds = array<i64: 1, 128>}, {pipeline_mode = #tpu.pipeline_mode<synchronous>, transform_indices = @transform_2, window_bounds = array<i64: 1, 128>}, {pipeline_mode = #tpu.pipeline_mode<synchronous>, transform_indices = @transform_3, window_bounds = array<i64: 1, 128>}, {pipeline_mode = #tpu.pipeline_mode<synchronous>, transform_indices = @transform_4, window_bounds = array<i64: 1, 128>}, {transform_indices = @transform_5, window_bounds = array<i64: 128, 8>}, {transform_indices = @transform_6, window_bounds = array<i64: 1, 8>}, {transform_indices = @transform_7, window_bounds = array<i64: 32, 8>}]} {
    %c0_i32 = arith.constant 0 : i32
    %0 = arith.cmpi eq, %arg2, %c0_i32 : i32
    %1 = arith.extui %0 : i1 to i32
    %c0_i32_0 = arith.constant 0 : i32
    %2 = arith.cmpi ne, %1, %c0_i32_0 : i32
    scf.if %2 {
      %cst_28 = arith.constant 0.000000e+00 : f32
      %58 = vector.broadcast %cst_28 : f32 to vector<32x8xf32>
      %c0_29 = arith.constant 0 : index
      %c0_30 = arith.constant 0 : index
      %59 = vector.load %arg11[%c0_29, %c0_30] : memref<32x8xf32, #tpu.memory_space<vmem>>, vector<32x8xf32>
      tpu.vector_store %arg11[%c0_29, %c0_30], %58 {strides = array<i32>} : memref<32x8xf32, #tpu.memory_space<vmem>>, vector<32x8xf32>,
    } else {
    }
    %c0 = arith.constant 0 : index
    %c0_1 = arith.constant 0 : index
    %3 = vector.load %arg3[%c0, %c0_1] : memref<32x128xbf16, #tpu.memory_space<vmem>>, vector<32x128xbf16>
    %4 = arith.extf %3 : vector<32x128xbf16> to vector<32x128xf32>
    %c0_2 = arith.constant 0 : index
    %c0_3 = arith.constant 0 : index
    %5 = vector.load %arg4[%c0_2, %c0_3] : memref<1x128xf32, #tpu.memory_space<vmem>>, vector<1x128xf32>
    %c0_4 = arith.constant 0 : index
    %c0_5 = arith.constant 0 : index
    %6 = vector.load %arg5[%c0_4, %c0_5] : memref<1x128xf32, #tpu.memory_space<vmem>>, vector<1x128xf32>
    %cst = arith.constant dense<0.000000e+00> : vector<32xf32>
    %7 = vector.multi_reduction <add>, %4, %cst [1] : vector<32x128xf32> to vector<32xf32>
    %8 = vector.shape_cast %7 : vector<32xf32> to vector<32x1xf32>
    %cst_6 = arith.constant 1.280000e+02 : f32
    %9 = vector.broadcast %cst_6 : f32 to vector<32x1xf32>
    %10 = arith.divf %8, %9 : vector<32x1xf32>
    %11 = vector.broadcast %10 : vector<32x1xf32> to vector<32x128xf32>
    %12 = arith.subf %4, %11 : vector<32x128xf32>
    %13 = arith.mulf %12, %12 : vector<32x128xf32>
    %cst_7 = arith.constant dense<0.000000e+00> : vector<32xf32>
    %14 = vector.multi_reduction <add>, %13, %cst_7 [1] : vector<32x128xf32> to vector<32xf32>
    %15 = vector.shape_cast %14 : vector<32xf32> to vector<32x1xf32>
    %cst_8 = arith.constant 1.280000e+02 : f32
    %16 = vector.broadcast %cst_8 : f32 to vector<32x1xf32>
    %17 = arith.divf %15, %16 : vector<32x1xf32>
    %cst_9 = arith.constant 9.99999997E-7 : f32
    %18 = vector.broadcast %cst_9 : f32 to vector<32x1xf32>
    %19 = arith.addf %17, %18 : vector<32x1xf32>
    %20 = math.rsqrt %19 : vector<32x1xf32>
    %21 = vector.broadcast %20 : vector<32x1xf32> to vector<32x128xf32>
    %22 = arith.mulf %12, %21 : vector<32x128xf32>
    %23 = vector.broadcast %5 : vector<1x128xf32> to vector<32x128xf32>
    %24 = arith.mulf %22, %23 : vector<32x128xf32>
    %25 = vector.broadcast %6 : vector<1x128xf32> to vector<32x128xf32>
    %26 = arith.addf %24, %25 : vector<32x128xf32>
    %c0_10 = arith.constant 0 : index
    %c0_11 = arith.constant 0 : index
    %27 = vector.load %arg6[%c0_10, %c0_11] : memref<1x128xf32, #tpu.memory_space<vmem>>, vector<1x128xf32>
    %c0_12 = arith.constant 0 : index
    %c0_13 = arith.constant 0 : index
    %28 = vector.load %arg7[%c0_12, %c0_13] : memref<1x128xf32, #tpu.memory_space<vmem>>, vector<1x128xf32>
    %cst_14 = arith.constant dense<0.000000e+00> : vector<32xf32>
    %29 = vector.multi_reduction <add>, %26, %cst_14 [1] : vector<32x128xf32> to vector<32xf32>
    %30 = vector.shape_cast %29 : vector<32xf32> to vector<32x1xf32>
    %cst_15 = arith.constant 1.280000e+02 : f32
    %31 = vector.broadcast %cst_15 : f32 to vector<32x1xf32>
    %32 = arith.divf %30, %31 : vector<32x1xf32>
    %33 = vector.broadcast %32 : vector<32x1xf32> to vector<32x128xf32>
    %34 = arith.subf %26, %33 : vector<32x128xf32>
    %35 = arith.mulf %34, %34 : vector<32x128xf32>
    %cst_16 = arith.constant dense<0.000000e+00> : vector<32xf32>
    %36 = vector.multi_reduction <add>, %35, %cst_16 [1] : vector<32x128xf32> to vector<32xf32>
    %37 = vector.shape_cast %36 : vector<32xf32> to vector<32x1xf32>
    %cst_17 = arith.constant 1.280000e+02 : f32
    %38 = vector.broadcast %cst_17 : f32 to vector<32x1xf32>
    %39 = arith.divf %37, %38 : vector<32x1xf32>
    %cst_18 = arith.constant 9.99999997E-7 : f32
    %40 = vector.broadcast %cst_18 : f32 to vector<32x1xf32>
    %41 = arith.addf %39, %40 : vector<32x1xf32>
    %42 = math.rsqrt %41 : vector<32x1xf32>
    %43 = vector.broadcast %42 : vector<32x1xf32> to vector<32x128xf32>
    %44 = arith.mulf %34, %43 : vector<32x128xf32>
    %45 = vector.broadcast %27 : vector<1x128xf32> to vector<32x128xf32>
    %46 = arith.mulf %44, %45 : vector<32x128xf32>
    %47 = vector.broadcast %28 : vector<1x128xf32> to vector<32x128xf32>
    %48 = arith.addf %46, %47 : vector<32x128xf32>
    %49 = arith.truncf %48 : vector<32x128xf32> to vector<32x128xbf16>
    %c0_19 = arith.constant 0 : index
    %c0_20 = arith.constant 0 : index
    %50 = vector.load %arg11[%c0_19, %c0_20] : memref<32x8xf32, #tpu.memory_space<vmem>>, vector<32x8xf32>
    %c0_21 = arith.constant 0 : index
    %c0_22 = arith.constant 0 : index
    %51 = vector.load %arg8[%c0_21, %c0_22] : memref<128x8xbf16, #tpu.memory_space<vmem>>, vector<128x8xbf16>
    %cst_23 = arith.constant dense<0.000000e+00> : vector<32x8xf32>
    %52 = tpu.matmul %49, %51, %cst_23 {dimension_numbers = #tpu.dot_dimension_numbers<[1], [0], [0], [1], [0, 0, 1, 1], [], []>} : vector<32x128xbf16>, vector<128x8xbf16>, vector<32x8xf32> -> vector<32x8xf32>
    %53 = arith.addf %50, %52 : vector<32x8xf32>
    %c0_24 = arith.constant 0 : index
    %c0_25 = arith.constant 0 : index
    %54 = vector.load %arg11[%c0_24, %c0_25] : memref<32x8xf32, #tpu.memory_space<vmem>>, vector<32x8xf32>
    tpu.vector_store %arg11[%c0_24, %c0_25], %53 {strides = array<i32>} : memref<32x8xf32, #tpu.memory_space<vmem>>, vector<32x8xf32>,
    %c0_i32_26 = arith.constant 0 : i32
    %55 = arith.cmpi eq, %arg2, %c0_i32_26 : i32
    %56 = arith.extui %55 : i1 to i32
    %c0_i32_27 = arith.constant 0 : i32
    %57 = arith.cmpi ne, %56, %c0_i32_27 : i32
    scf.if %57 {
      %c0_28 = arith.constant 0 : index
      %c0_29 = arith.constant 0 : index
      %58 = vector.load %arg11[%c0_28, %c0_29] : memref<32x8xf32, #tpu.memory_space<vmem>>, vector<32x8xf32>
      %c0_30 = arith.constant 0 : index
      %c0_31 = arith.constant 0 : index
      %59 = vector.load %arg9[%c0_30, %c0_31] : memref<1x8xf32, #tpu.memory_space<vmem>>, vector<1x8xf32>
      %60 = vector.broadcast %59 : vector<1x8xf32> to vector<32x8xf32>
      %61 = arith.addf %58, %60 : vector<32x8xf32>
      %c0_32 = arith.constant 0 : index
      %c0_33 = arith.constant 0 : index
      %62 = vector.load %arg10[%c0_32, %c0_33] : memref<32x8xf32, #tpu.memory_space<vmem>>, vector<32x8xf32>
      tpu.vector_store %arg10[%c0_32, %c0_33], %61 {strides = array<i32>} : memref<32x8xf32, #tpu.memory_space<vmem>>, vector<32x8xf32>,
    } else {
    }
    return
  }
  func.func @transform_0(%arg0: i32, %arg1: i32, %arg2: i32) -> (i32, i32) {
    %c0_i32 = arith.constant 0 : i32
    return %arg0, %arg2 : i32, i32
  }
  func.func @transform_1(%arg0: i32, %arg1: i32, %arg2: i32) -> (i32, i32) {
    %c0_i32 = arith.constant 0 : i32
    %c0_i32_0 = arith.constant 0 : i32
    %c0_i32_1 = arith.constant 0 : i32
    return %c0_i32, %c0_i32_0 : i32, i32
  }
  func.func @transform_2(%arg0: i32, %arg1: i32, %arg2: i32) -> (i32, i32) {
    %c0_i32 = arith.constant 0 : i32
    %c0_i32_0 = arith.constant 0 : i32
    %c0_i32_1 = arith.constant 0 : i32
    return %c0_i32, %c0_i32_0 : i32, i32
  }
  func.func @transform_3(%arg0: i32, %arg1: i32, %arg2: i32) -> (i32, i32) {
    %c0_i32 = arith.constant 0 : i32
    %c0_i32_0 = arith.constant 0 : i32
    %c0_i32_1 = arith.constant 0 : i32
    return %c0_i32, %c0_i32_0 : i32, i32
  }
  func.func @transform_4(%arg0: i32, %arg1: i32, %arg2: i32) -> (i32, i32) {
    %c0_i32 = arith.constant 0 : i32
    %c0_i32_0 = arith.constant 0 : i32
    %c0_i32_1 = arith.constant 0 : i32
    return %c0_i32, %c0_i32_0 : i32, i32
  }
  func.func @transform_5(%arg0: i32, %arg1: i32, %arg2: i32) -> (i32, i32) {
    %c0_i32 = arith.constant 0 : i32
    return %arg2, %arg1 : i32, i32
  }
  func.func @transform_6(%arg0: i32, %arg1: i32, %arg2: i32) -> (i32, i32) {
    %c0_i32 = arith.constant 0 : i32
    %c0_i32_0 = arith.constant 0 : i32
    return %c0_i32, %arg1 : i32, i32
  }
  func.func @transform_7(%arg0: i32, %arg1: i32, %arg2: i32) -> (i32, i32) {
    %c0_i32 = arith.constant 0 : i32
    return %arg0, %arg1 : i32, i32
  }
}

</mosaic_0001>

<llo_original>
// kernel: mae_decoder_forward.12
$region0: #{mae_decoder_forward.12}
  #allocation0 [shape = 'u32[]', space=smem, size = 0x4, offset = 0x4, fixed_abs, tag = 'smem constant byte address 0x4 - core index']
  #allocation1 [shape = 'u32[144,128]{1,0:T(1,128)}', space=vmem, size = 0x12000, scoped, tag = 'internal scratch']
  #allocation2 [shape = 'f32[16,128]{1,0:T(8,128)}', space=vmem, size = 0x2000, scoped, tag = 'scratch operand']
  %s0 = inlined_call_operand.vmem [shape: f32[16,128], index: 0, kind: input, shape index: {}]
  %s1 = inlined_call_operand.vmem [shape: bf16[128,128], index: 1, kind: input, shape index: {}]
  %s2 = inlined_call_operand.vmem [shape: f32[1,128], index: 2, kind: input, shape index: {}]
  %s3 = inlined_call_operand.vmem [shape: f32[16,128], index: 3, kind: output, shape index: {}]
  %s4 = sld [smem:[#allocation0]]
  $region30: #{mae_decoder_forward.12} parent=0
    _
  %s6 = ssub.s32 1, %s4
  %s7 = scalar_select 0, %s6, %s4
  // Predicated region
  $region2: #{mae_decoder_forward.12} parent=0 // pred_check
    _
  $region3: #{mae_decoder_forward.12} parent=0 // pred_check_branch
    %9 = sbr.rel (0) target = $region5
  $region4: #{mae_decoder_forward.12} parent=0 // pred_region
    _
  $region5: #{mae_decoder_forward.12} parent=0 // pred_fallthru
    _
  // Predicated region
  $region6: #{mae_decoder_forward.12} parent=0 // pred_check
    _
  $region7: #{mae_decoder_forward.12} parent=0 // pred_check_branch
    %11 = sbr.rel (0) target = $region9
  $region8: #{mae_decoder_forward.12} parent=0 // pred_region
    _
  $region9: #{mae_decoder_forward.12} parent=0 // pred_fallthru
    _
  // Predicated region
  $region10: #{mae_decoder_forward.12} parent=0 // pred_check
    _
  $region11: #{mae_decoder_forward.12} parent=0 // pred_check_branch
    %13 = sbr.rel (0) target = $region13
  $region12: #{mae_decoder_forward.12} parent=0 // pred_region
    _
  $region13: #{mae_decoder_forward.12} parent=0 // pred_fallthru
    _
  %p15 = scmp.eq.s32.totalorder 0, 0
  // Predicated region
  $region14: #{mae_decoder_forward.12} parent=0 // pred_check
    %p16 = pneg %p15
  $region15: #{mae_decoder_forward.12} parent=0 // pred_check_branch
    %18 = sbr.rel (%p16) target = $region17
  $region16: #{mae_decoder_forward.12} parent=0 // pred_region
    %19 = vst [vmem:[#allocation2] sm:$0xff] 0.0
    %20 = vst [vmem:[#allocation2 + $0x8] sm:$0xff] 0.0
  $region17: #{mae_decoder_forward.12} parent=0 // pred_fallthru
    _
  %v21 = vld [vmem:[%s0] sm:$0xff]
  %v22 = vld [vmem:[%s0 + $0x8] sm:$0xff]
  %v23 = vpack.c.bf16 %v22, %v21
  %v24 = vld [vmem:[#allocation2] sm:$0xff]
  %v25 = vld [vmem:[#allocation2 + $0x8] sm:$0xff]
  %v26 = vld [vmem:[%s1] sm:$0xf]
  %v27 = vld [vmem:[%s1 + $0x4] sm:$0xf]
  %v28 = vld [vmem:[%s1 + $0x8] sm:$0xf]
  %v29 = vld [vmem:[%s1 + $0xc] sm:$0xf]
  %v30 = vld [vmem:[%s1 + $0x10] sm:$0xf]
  %v31 = vld [vmem:[%s1 + $0x14] sm:$0xf]
  %v32 = vld [vmem:[%s1 + $0x18] sm:$0xf]
  %v33 = vld [vmem:[%s1 + $0x1c] sm:$0xf]
  %v34 = vld [vmem:[%s1 + $0x20] sm:$0xf]
  %v35 = vld [vmem:[%s1 + $0x24] sm:$0xf]
  %v36 = vld [vmem:[%s1 + $0x28] sm:$0xf]
  %v37 = vld [vmem:[%s1 + $0x2c] sm:$0xf]
  %v38 = vld [vmem:[%s1 + $0x30] sm:$0xf]
  %v39 = vld [vmem:[%s1 + $0x34] sm:$0xf]
  %v40 = vld [vmem:[%s1 + $0x38] sm:$0xf]
  %v41 = vld [vmem:[%s1 + $0x3c] sm:$0xf]
  %v58 = vunpack.c.l.b16 %v26
  %v59 = vunpack.c.l.b16 %v27
  %v60 = vunpack.c.l.b16 %v28
  %v61 = vunpack.c.l.b16 %v29
  %v62 = vunpack.c.l.b16 %v30
  %v63 = vunpack.c.l.b16 %v31
  %v64 = vunpack.c.l.b16 %v32
  %v65 = vunpack.c.l.b16 %v33
  %v66 = vunpack.c.l.b16 %v34
  %v67 = vunpack.c.l.b16 %v35
  %v68 = vunpack.c.l.b16 %v36
  %v69 = vunpack.c.l.b16 %v37
  %v70 = vunpack.c.l.b16 %v38
  %v71 = vunpack.c.l.b16 %v39
  %v72 = vunpack.c.l.b16 %v40
  %v73 = vunpack.c.l.b16 %v41
  %v74 = vpack.c.b16 %v59, %v58
  %v75 = vpack.c.b16 %v61, %v60
  %v76 = vpack.c.b16 %v63, %v62
  %v77 = vpack.c.b16 %v65, %v64
  %v78 = vpack.c.b16 %v67, %v66
  %v79 = vpack.c.b16 %v69, %v68
  %v80 = vpack.c.b16 %v71, %v70
  %v81 = vpack.c.b16 %v73, %v72
  %90 = vmatprep.subr.bf16.mxu0 0
  %91 = vmatpush1.bf16.msra.mxu0 %v81
  %92 = vmatprep.subr.bf16.mxu0 0
  %93 = vmatpush1.bf16.msra.mxu0 %v80
  %94 = vmatprep.subr.bf16.mxu0 0
  %95 = vmatpush1.bf16.msra.mxu0 %v79
  %96 = vmatprep.subr.bf16.mxu0 0
  %97 = vmatpush1.bf16.msra.mxu0 %v78
  %98 = vmatprep.subr.bf16.mxu0 0
  %99 = vmatpush1.bf16.msra.mxu0 %v77
  %100 = vmatprep.subr.bf16.mxu0 0
  %101 = vmatpush1.bf16.msra.mxu0 %v76
  %102 = vmatprep.subr.bf16.mxu0 0
  %103 = vmatpush1.bf16.msra.mxu0 %v75
  %104 = vmatprep.subr.bf16.mxu0 0
  %105 = vmatpush1.bf16.msra.mxu0 %v74
  %106 = vmatprep.subr.bf16.mxu0 0
  %107 = vmatpush2.bf16.msra.mxu0 0
  %108 = vmatprep.subr.bf16.mxu0 0
  %109 = vmatpush2.bf16.msra.mxu0 0
  %110 = vmatprep.subr.bf16.mxu0 0
  %111 = vmatpush2.bf16.msra.mxu0 0
  %112 = vmatprep.subr.bf16.mxu0 0
  %113 = vmatpush2.bf16.msra.mxu0 0
  %114 = vmatprep.subr.bf16.mxu0 0
  %115 = vmatpush2.bf16.msra.mxu0 0
  %116 = vmatprep.subr.bf16.mxu0 0
  %117 = vmatpush2.bf16.msra.mxu0 0
  %118 = vmatprep.subr.bf16.mxu0 0
  %119 = vmatpush2.bf16.msra.mxu0 0
  %120 = vmatprep.subr.bf16.mxu0 0
  %121 = vmatpush2.bf16.msra.mxu0 0
  %122 = vmatprep.mubr.bf16.mxu0 0
  %123 = vmatmul.mubr.bf16.gmra.mxu0 %v23
  %v124 = vpop.f32.mrf.mxu0
  %v125 = vadd.f32 0.0, %v124
  %v126 = vpop.f32.mrf.mxu0
  %v127 = vpop.f32.mrf.mxu0
  %v128 = vadd.f32 0.0, %v127
  %v129 = vpop.f32.mrf.mxu0
  %130 = vdwg.mxu0
  %v131 = vadd.f32 %v24, %v125
  %v132 = vadd.f32 %v25, %v128
  %133 = vst [vmem:[#allocation2] sm:$0xff] %v131
  %134 = vst [vmem:[#allocation2 + $0x8] sm:$0xff] %v132
  // Predicated region
  $region18: #{mae_decoder_forward.12} parent=0 // pred_check
    %p135 = pneg %p15
  $region19: #{mae_decoder_forward.12} parent=0 // pred_check_branch
    %137 = sbr.rel (%p135) target = $region21
  $region20: #{mae_decoder_forward.12} parent=0 // pred_region
    %v138 = vld [vmem:[#allocation2] sm:$0xff]
    %v139 = vld [vmem:[#allocation2 + $0x8] sm:$0xff]
    %v140 = vld [vmem:[%s2] sm:$0x1]
    %v142 = vlaneseq
    %v143 = vshrl.u32 %v142, 7
    %v144 = vsub.s32 0, %v143
    %v145 = vrot.slane %v140, %v144
    %v147 = vadd.f32 %v138, %v145
    %v148 = vadd.f32 %v139, %v145
    %149 = vst [vmem:[%s3] sm:$0xff] %v147
    %150 = vst [vmem:[%s3 + $0x8] sm:$0xff] %v148
  $region21: #{mae_decoder_forward.12} parent=0 // pred_fallthru
    _
  // Predicated region
  $region22: #{mae_decoder_forward.12} parent=0 // pred_check
    _
  $region23: #{mae_decoder_forward.12} parent=0 // pred_check_branch
    %152 = sbr.rel (0) target = $region25
  $region24: #{mae_decoder_forward.12} parent=0 // pred_region
    _
  $region25: #{mae_decoder_forward.12} parent=0 // pred_fallthru
    _
  // Predicated region
  $region26: #{mae_decoder_forward.12} parent=0 // pred_check
    _
  $region27: #{mae_decoder_forward.12} parent=0 // pred_check_branch
    %154 = sbr.rel (0) target = $region29
  $region28: #{mae_decoder_forward.12} parent=0 // pred_region
    _
  $region29: #{mae_decoder_forward.12} parent=0 // pred_fallthru
    _

// kernel: mae_decoder_forward.13
$region0: #{mae_decoder_forward.13}
  #allocation0 [shape = 'u32[]', space=smem, size = 0x4, offset = 0x4, fixed_abs, tag = 'smem constant byte address 0x4 - core index']
  #allocation1 [shape = 'u32[144,128]{1,0:T(1,128)}', space=vmem, size = 0x12000, scoped, tag = 'internal scratch']
  #allocation2 [shape = 'f32[32,384]{1,0:T(8,128)}', space=vmem, size = 0xc000, scoped, tag = 'scratch operand']
  %s0 = inlined_call_operand.vmem [shape: bf16[32,128], index: 0, kind: input, shape index: {}]
  %s1 = inlined_call_operand.vmem [shape: f32[1,128], index: 1, kind: input, shape index: {}]
  %s2 = inlined_call_operand.vmem [shape: f32[1,128], index: 2, kind: input, shape index: {}]
  %s3 = inlined_call_operand.vmem [shape: bf16[128,384], index: 3, kind: input, shape index: {}]
  %s4 = inlined_call_operand.vmem [shape: f32[1,384], index: 4, kind: input, shape index: {}]
  %s5 = inlined_call_operand.vmem [shape: bf16[32,384], index: 5, kind: output, shape index: {}]
  %s6 = sld [smem:[#allocation0]]
  $region38: #{mae_decoder_forward.13} parent=0
    _
  %s8 = ssub.s32 1, %s6
  %s9 = scalar_select 0, %s8, %s6
  // Predicated region
  $region2: #{mae_decoder_forward.13} parent=0 // pred_check
    _
  $region3: #{mae_decoder_forward.13} parent=0 // pred_check_branch
    %11 = sbr.rel (0) target = $region5
  $region4: #{mae_decoder_forward.13} parent=0 // pred_region
    _
  $region5: #{mae_decoder_forward.13} parent=0 // pred_fallthru
    _
  // Predicated region
  $region6: #{mae_decoder_forward.13} parent=0 // pred_check
    _
  $region7: #{mae_decoder_forward.13} parent=0 // pred_check_branch
    %13 = sbr.rel (0) target = $region9
  $region8: #{mae_decoder_forward.13} parent=0 // pred_region
    _
  $region9: #{mae_decoder_forward.13} parent=0 // pred_fallthru
    _
  // Predicated region
  $region10: #{mae_decoder_forward.13} parent=0 // pred_check
    _
  $region11: #{mae_decoder_forward.13} parent=0 // pred_check_branch
    %15 = sbr.rel (0) target = $region13
  $region12: #{mae_decoder_forward.13} parent=0 // pred_region
    _
  $region13: #{mae_decoder_forward.13} parent=0 // pred_fallthru
    _
  // Predicated region
  $region14: #{mae_decoder_forward.13} parent=0 // pred_check
    _
  $region15: #{mae_decoder_forward.13} parent=0 // pred_check_branch
    %17 = sbr.rel (0) target = $region17
  $region16: #{mae_decoder_forward.13} parent=0 // pred_region
    _
  $region17: #{mae_decoder_forward.13} parent=0 // pred_fallthru
    _
  // Predicated region
  $region18: #{mae_decoder_forward.13} parent=0 // pred_check
    _
  $region19: #{mae_decoder_forward.13} parent=0 // pred_check_branch
    %19 = sbr.rel (0) target = $region21
  $region20: #{mae_decoder_forward.13} parent=0 // pred_region
    _
  $region21: #{mae_decoder_forward.13} parent=0 // pred_fallthru
    _
  %p21 = scmp.eq.s32.totalorder 0, 0
  // Predicated region
  $region22: #{mae_decoder_forward.13} parent=0 // pred_check
    %p22 = pneg %p21
  $region23: #{mae_decoder_forward.13} parent=0 // pred_check_branch
    %24 = sbr.rel (%p22) target = $region25
  $region24: #{mae_decoder_forward.13} parent=0 // pred_region
    %25 = vst [vmem:[#allocation2] sm:$0xff] 0.0
    %26 = vst [vmem:[#allocation2 + $0x8] sm:$0xff] 0.0
    %27 = vst [vmem:[#allocation2 + $0x10] sm:$0xff] 0.0
    %28 = vst [vmem:[#allocation2 + $0x18] sm:$0xff] 0.0
    %29 = vst [vmem:[#allocation2 + $0x20] sm:$0xff] 0.0
    %30 = vst [vmem:[#allocation2 + $0x28] sm:$0xff] 0.0
    %31 = vst [vmem:[#allocation2 + $0x30] sm:$0xff] 0.0
    %32 = vst [vmem:[#allocation2 + $0x38] sm:$0xff] 0.0
    %33 = vst [vmem:[#allocation2 + $0x40] sm:$0xff] 0.0
    %34 = vst [vmem:[#allocation2 + $0x48] sm:$0xff] 0.0
    %35 = vst [vmem:[#allocation2 + $0x50] sm:$0xff] 0.0
    %36 = vst [vmem:[#allocation2 + $0x58] sm:$0xff] 0.0
  $region25: #{mae_decoder_forward.13} parent=0 // pred_fallthru
    _
  %v37 = vld [vmem:[%s0] sm:$0xf]
  %v38 = vld [vmem:[%s0 + $0x4] sm:$0xf]
  %v39 = vld [vmem:[%s0 + $0x8] sm:$0xf]
  %v40 = vld [vmem:[%s0 + $0xc] sm:$0xf]
  %v41 = vunpack.c.l.bf16 %v37
  %v42 = vunpack.c.l.bf16 %v38
  %v43 = vunpack.c.l.bf16 %v39
  %v44 = vunpack.c.l.bf16 %v40
  %v45 = vld [vmem:[%s1] sm:$0x1]
  %v46 = vld [vmem:[%s2] sm:$0x1]
  %47 = vadd.xlane.f32.xlu0 %v41
  %v48 = vpop.xlane.xlu0 %47
  %49 = vadd.xlane.f32.xlu0 %v42
  %v50 = vpop.xlane.xlu0 %49
  %51 = vadd.xlane.f32.xlu0 %v43
  %v52 = vpop.xlane.xlu0 %51
  %53 = vadd.xlane.f32.xlu0 %v44
  %v54 = vpop.xlane.xlu0 %53
  %v55 = vrcp.pop 128.0
  %v56 = vmul.f32 %v48, %v55
  %v57 = vmul.f32 %v50, %v55
  %v58 = vmul.f32 %v52, %v55
  %v59 = vmul.f32 %v54, %v55
  %v60 = vsub.f32 %v41, %v56
  %v61 = vsub.f32 %v42, %v57
  %v62 = vsub.f32 %v43, %v58
  %v63 = vsub.f32 %v44, %v59
  %v64 = vmul.f32 %v60, %v60
  %v65 = vmul.f32 %v61, %v61
  %v66 = vmul.f32 %v62, %v62
  %v67 = vmul.f32 %v63, %v63
  %68 = vadd.xlane.f32.xlu0 %v64
  %v69 = vpop.xlane.xlu0 %68
  %70 = vadd.xlane.f32.xlu0 %v65
  %v71 = vpop.xlane.xlu0 %70
  %72 = vadd.xlane.f32.xlu0 %v66
  %v73 = vpop.xlane.xlu0 %72
  %74 = vadd.xlane.f32.xlu0 %v67
  %v75 = vpop.xlane.xlu0 %74
  %v76 = vmul.f32 %v69, %v55
  %v77 = vmul.f32 %v71, %v55
  %v78 = vmul.f32 %v73, %v55
  %v79 = vmul.f32 %v75, %v55
  %v80 = vadd.f32 %v76, 1e-06
  %v81 = vadd.f32 %v77, 1e-06
  %v82 = vadd.f32 %v78, 1e-06
  %v83 = vadd.f32 %v79, 1e-06
  %v84 = vrsqrt.pop %v80
  %v85 = vrsqrt.pop %v81
  %v86 = vrsqrt.pop %v82
  %v87 = vrsqrt.pop %v83
  %v88 = vmul.f32 %v60, %v84
  %v89 = vmul.f32 %v61, %v85
  %v90 = vmul.f32 %v62, %v86
  %v91 = vmul.f32 %v63, %v87
  %v93 = vlaneseq
  %v94 = vshrl.u32 %v93, 7
  %v95 = vsub.s32 0, %v94
  %v96 = vrot.slane %v45, %v95
  %v98 = vmul.f32 %v88, %v96
  %v99 = vmul.f32 %v89, %v96
  %v100 = vmul.f32 %v90, %v96
  %v101 = vmul.f32 %v91, %v96
  %v103 = vlaneseq
  %v104 = vshrl.u32 %v103, 7
  %v105 = vsub.s32 0, %v104
  %v106 = vrot.slane %v46, %v105
  %v108 = vadd.f32 %v98, %v106
  %v109 = vadd.f32 %v99, %v106
  %v110 = vadd.f32 %v100, %v106
  %v111 = vadd.f32 %v101, %v106
  %v112 = vpack.c.bf16 %v109, %v108
  %v113 = vpack.c.bf16 %v111, %v110
  %v114 = vld [vmem:[#allocation2] sm:$0xff]
  %v115 = vld [vmem:[#allocation2 + $0x8] sm:$0xff]
  %v116 = vld [vmem:[#allocation2 + $0x10] sm:$0xff]
  %v117 = vld [vmem:[#allocation2 + $0x18] sm:$0xff]
  %v118 = vld [vmem:[#allocation2 + $0x20] sm:$0xff]
  %v119 = vld [vmem:[#allocation2 + $0x28] sm:$0xff]
  %v120 = vld [vmem:[#allocation2 + $0x30] sm:$0xff]
  %v121 = vld [vmem:[#allocation2 + $0x38] sm:$0xff]
  %v122 = vld [vmem:[#allocation2 + $0x40] sm:$0xff]
  %v123 = vld [vmem:[#allocation2 + $0x48] sm:$0xff]
  %v124 = vld [vmem:[#allocation2 + $0x50] sm:$0xff]
  %v125 = vld [vmem:[#allocation2 + $0x58] sm:$0xff]
  %v126 = vld [vmem:[%s3] sm:$0xff]
  %v127 = vld [vmem:[%s3 + $0x8] sm:$0xf]
  %v128 = vld [vmem:[%s3 + $0xc] sm:$0xff]
  %v129 = vld [vmem:[%s3 + $0x14] sm:$0xf]
  %v130 = vld [vmem:[%s3 + $0x18] sm:$0xff]
  %v131 = vld [vmem:[%s3 + $0x20] sm:$0xf]
  %v132 = vld [vmem:[%s3 + $0x24] sm:$0xff]
  %v133 = vld [vmem:[%s3 + $0x2c] sm:$0xf]
  %v134 = vld [vmem:[%s3 + $0x30] sm:$0xff]
  %v135 = vld [vmem:[%s3 + $0x38] sm:$0xf]
  %v136 = vld [vmem:[%s3 + $0x3c] sm:$0xff]
  %v137 = vld [vmem:[%s3 + $0x44] sm:$0xf]
  %v138 = vld [vmem:[%s3 + $0x48] sm:$0xff]
  %v139 = vld [vmem:[%s3 + $0x50] sm:$0xf]
  %v140 = vld [vmem:[%s3 + $0x54] sm:$0xff]
  %v141 = vld [vmem:[%s3 + $0x5c] sm:$0xf]
  %v142 = vld [vmem:[%s3 + $0x60] sm:$0xff]
  %v143 = vld [vmem:[%s3 + $0x68] sm:$0xf]
  %v144 = vld [vmem:[%s3 + $0x6c] sm:$0xff]
  %v145 = vld [vmem:[%s3 + $0x74] sm:$0xf]
  %v146 = vld [vmem:[%s3 + $0x78] sm:$0xff]
  %v147 = vld [vmem:[%s3 + $0x80] sm:$0xf]
  %v148 = vld [vmem:[%s3 + $0x84] sm:$0xff]
  %v149 = vld [vmem:[%s3 + $0x8c] sm:$0xf]
  %v150 = vld [vmem:[%s3 + $0x90] sm:$0xff]
  %v151 = vld [vmem:[%s3 + $0x98] sm:$0xf]
  %v152 = vld [vmem:[%s3 + $0x9c] sm:$0xff]
  %v153 = vld [vmem:[%s3 + $0xa4] sm:$0xf]
  %v154 = vld [vmem:[%s3 + $0xa8] sm:$0xff]
  %v155 = vld [vmem:[%s3 + $0xb0] sm:$0xf]
  %v156 = vld [vmem:[%s3 + $0xb4] sm:$0xff]
  %v157 = vld [vmem:[%s3 + $0xbc] sm:$0xf]
  %v190 = vunpack.c.l.b16 %v126
  %v191 = vunpack.c.h.b16 %v126
  %v192 = vunpack.c.l.b16 %v127
  %v193 = vunpack.c.l.b16 %v128
  %v194 = vunpack.c.h.b16 %v128
  %v195 = vunpack.c.l.b16 %v129
  %v196 = vunpack.c.l.b16 %v130
  %v197 = vunpack.c.h.b16 %v130
  %v198 = vunpack.c.l.b16 %v131
  %v199 = vunpack.c.l.b16 %v132
  %v200 = vunpack.c.h.b16 %v132
  %v201 = vunpack.c.l.b16 %v133
  %v202 = vunpack.c.l.b16 %v134
  %v203 = vunpack.c.h.b16 %v134
  %v204 = vunpack.c.l.b16 %v135
  %v205 = vunpack.c.l.b16 %v136
  %v206 = vunpack.c.h.b16 %v136
  %v207 = vunpack.c.l.b16 %v137
  %v208 = vunpack.c.l.b16 %v138
  %v209 = vunpack.c.h.b16 %v138
  %v210 = vunpack.c.l.b16 %v139
  %v211 = vunpack.c.l.b16 %v140
  %v212 = vunpack.c.h.b16 %v140
  %v213 = vunpack.c.l.b16 %v141
  %v214 = vunpack.c.l.b16 %v142
  %v215 = vunpack.c.h.b16 %v142
  %v216 = vunpack.c.l.b16 %v143
  %v217 = vunpack.c.l.b16 %v144
  %v218 = vunpack.c.h.b16 %v144
  %v219 = vunpack.c.l.b16 %v145
  %v220 = vunpack.c.l.b16 %v146
  %v221 = vunpack.c.h.b16 %v146
  %v222 = vunpack.c.l.b16 %v147
  %v223 = vunpack.c.l.b16 %v148
  %v224 = vunpack.c.h.b16 %v148
  %v225 = vunpack.c.l.b16 %v149
  %v226 = vunpack.c.l.b16 %v150
  %v227 = vunpack.c.h.b16 %v150
  %v228 = vunpack.c.l.b16 %v151
  %v229 = vunpack.c.l.b16 %v152
  %v230 = vunpack.c.h.b16 %v152
  %v231 = vunpack.c.l.b16 %v153
  %v232 = vunpack.c.l.b16 %v154
  %v233 = vunpack.c.h.b16 %v154
  %v234 = vunpack.c.l.b16 %v155
  %v235 = vunpack.c.l.b16 %v156
  %v236 = vunpack.c.h.b16 %v156
  %v237 = vunpack.c.l.b16 %v157
  %v238 = vpack.c.b16 %v193, %v190
  %v239 = vpack.c.b16 %v194, %v191
  %v240 = vpack.c.b16 %v195, %v192
  %v241 = vpack.c.b16 %v199, %v196
  %v242 = vpack.c.b16 %v200, %v197
  %v243 = vpack.c.b16 %v201, %v198
  %v244 = vpack.c.b16 %v205, %v202
  %v245 = vpack.c.b16 %v206, %v203
  %v246 = vpack.c.b16 %v207, %v204
  %v247 = vpack.c.b16 %v211, %v208
  %v248 = vpack.c.b16 %v212, %v209
  %v249 = vpack.c.b16 %v213, %v210
  %v250 = vpack.c.b16 %v217, %v214
  %v251 = vpack.c.b16 %v218, %v215
  %v252 = vpack.c.b16 %v219, %v216
  %v253 = vpack.c.b16 %v223, %v220
  %v254 = vpack.c.b16 %v224, %v221
  %v255 = vpack.c.b16 %v225, %v222
  %v256 = vpack.c.b16 %v229, %v226
  %v257 = vpack.c.b16 %v230, %v227
  %v258 = vpack.c.b16 %v231, %v228
  %v259 = vpack.c.b16 %v235, %v232
  %v260 = vpack.c.b16 %v236, %v233
  %v261 = vpack.c.b16 %v237, %v234
  %286 = vmatprep.subr.bf16.mxu0 %v260
  %287 = vmatpush1.bf16.msra.mxu0 %v259
  %288 = vmatprep.subr.bf16.mxu0 %v257
  %289 = vmatpush1.bf16.msra.mxu0 %v256
  %290 = vmatprep.subr.bf16.mxu0 %v254
  %291 = vmatpush1.bf16.msra.mxu0 %v253
  %292 = vmatprep.subr.bf16.mxu0 %v251
  %293 = vmatpush1.bf16.msra.mxu0 %v250
  %294 = vmatprep.subr.bf16.mxu0 %v248
  %295 = vmatpush1.bf16.msra.mxu0 %v247
  %296 = vmatprep.subr.bf16.mxu0 %v245
  %297 = vmatpush1.bf16.msra.mxu0 %v244
  %298 = vmatprep.subr.bf16.mxu0 %v242
  %299 = vmatpush1.bf16.msra.mxu0 %v241
  %300 = vmatprep.subr.bf16.mxu0 %v239
  %301 = vmatpush1.bf16.msra.mxu0 %v238
  %302 = vmatprep.subr.bf16.mxu0 0
  %303 = vmatpush2.bf16.msra.mxu0 0
  %304 = vmatprep.subr.bf16.mxu0 0
  %305 = vmatpush2.bf16.msra.mxu0 0
  %306 = vmatprep.subr.bf16.mxu0 0
  %307 = vmatpush2.bf16.msra.mxu0 0
  %308 = vmatprep.subr.bf16.mxu0 0
  %309 = vmatpush2.bf16.msra.mxu0 0
  %310 = vmatprep.subr.bf16.mxu0 0
  %311 = vmatpush2.bf16.msra.mxu0 0
  %312 = vmatprep.subr.bf16.mxu0 0
  %313 = vmatpush2.bf16.msra.mxu0 0
  %314 = vmatprep.subr.bf16.mxu0 0
  %315 = vmatpush2.bf16.msra.mxu0 0
  %316 = vmatprep.subr.bf16.mxu0 0
  %317 = vmatpush2.bf16.msra.mxu0 0
  %318 = vmatprep.mubr.bf16.mxu0 0
  %319 = vmatmul.mubr.bf16.gmra.mxu0 %v112
  %v320 = vpop.f32.mrf.mxu0
  %v321 = vadd.f32 0.0, %v320
  %v322 = vpop.f32.mrf.mxu0
  %v323 = vadd.f32 0.0, %v322
  %v324 = vpop.f32.mrf.mxu0
  %v325 = vadd.f32 0.0, %v324
  %v326 = vpop.f32.mrf.mxu0
  %v327 = vadd.f32 0.0, %v326
  %328 = vmatprep.mubr.bf16.mxu0 0
  %329 = vmatmul.mubr.bf16.gmra.mxu0 %v113
  %v330 = vpop.f32.mrf.mxu0
  %v331 = vadd.f32 0.0, %v330
  %v332 = vpop.f32.mrf.mxu0
  %v333 = vadd.f32 0.0, %v332
  %v334 = vpop.f32.mrf.mxu0
  %v335 = vadd.f32 0.0, %v334
  %v336 = vpop.f32.mrf.mxu0
  %v337 = vadd.f32 0.0, %v336
  %338 = vdwg.mxu0
  %339 = vmatprep.subr.bf16.mxu0 0
  %340 = vmatpush1.bf16.msra.mxu0 %v261
  %341 = vmatprep.subr.bf16.mxu0 0
  %342 = vmatpush1.bf16.msra.mxu0 %v258
  %343 = vmatprep.subr.bf16.mxu0 0
  %344 = vmatpush1.bf16.msra.mxu0 %v255
  %345 = vmatprep.subr.bf16.mxu0 0
  %346 = vmatpush1.bf16.msra.mxu0 %v252
  %347 = vmatprep.subr.bf16.mxu0 0
  %348 = vmatpush1.bf16.msra.mxu0 %v249
  %349 = vmatprep.subr.bf16.mxu0 0
  %350 = vmatpush1.bf16.msra.mxu0 %v246
  %351 = vmatprep.subr.bf16.mxu0 0
  %352 = vmatpush1.bf16.msra.mxu0 %v243
  %353 = vmatprep.subr.bf16.mxu0 0
  %354 = vmatpush1.bf16.msra.mxu0 %v240
  %355 = vmatprep.subr.bf16.mxu0 0
  %356 = vmatpush2.bf16.msra.mxu0 0
  %357 = vmatprep.subr.bf16.mxu0 0
  %358 = vmatpush2.bf16.msra.mxu0 0
  %359 = vmatprep.subr.bf16.mxu0 0
  %360 = vmatpush2.bf16.msra.mxu0 0
  %361 = vmatprep.subr.bf16.mxu0 0
  %362 = vmatpush2.bf16.msra.mxu0 0
  %363 = vmatprep.subr.bf16.mxu0 0
  %364 = vmatpush2.bf16.msra.mxu0 0
  %365 = vmatprep.subr.bf16.mxu0 0
  %366 = vmatpush2.bf16.msra.mxu0 0
  %367 = vmatprep.subr.bf16.mxu0 0
  %368 = vmatpush2.bf16.msra.mxu0 0
  %369 = vmatprep.subr.bf16.mxu0 0
  %370 = vmatpush2.bf16.msra.mxu0 0
  %371 = vmatprep.mubr.bf16.mxu0 0
  %372 = vmatmul.mubr.bf16.gmra.mxu0 %v112
  %v373 = vpop.f32.mrf.mxu0
  %v374 = vadd.f32 0.0, %v373
  %v375 = vpop.f32.mrf.mxu0
  %v376 = vpop.f32.mrf.mxu0
  %v377 = vadd.f32 0.0, %v376
  %v378 = vpop.f32.mrf.mxu0
  %379 = vmatprep.mubr.bf16.mxu0 0
  %380 = vmatmul.mubr.bf16.gmra.mxu0 %v113
  %v381 = vpop.f32.mrf.mxu0
  %v382 = vadd.f32 0.0, %v381
  %v383 = vpop.f32.mrf.mxu0
  %v384 = vpop.f32.mrf.mxu0
  %v385 = vadd.f32 0.0, %v384
  %v386 = vpop.f32.mrf.mxu0
  %387 = vdwg.mxu0
  %v388 = vadd.f32 %v114, %v321
  %v389 = vadd.f32 %v115, %v323
  %v390 = vadd.f32 %v116, %v374
  %v391 = vadd.f32 %v117, %v325
  %v392 = vadd.f32 %v118, %v327
  %v393 = vadd.f32 %v119, %v377
  %v394 = vadd.f32 %v120, %v331
  %v395 = vadd.f32 %v121, %v333
  %v396 = vadd.f32 %v122, %v382
  %v397 = vadd.f32 %v123, %v335
  %v398 = vadd.f32 %v124, %v337
  %v399 = vadd.f32 %v125, %v385
  %400 = vst [vmem:[#allocation2] sm:$0xff] %v388
  %401 = vst [vmem:[#allocation2 + $0x8] sm:$0xff] %v389
  %402 = vst [vmem:[#allocation2 + $0x10] sm:$0xff] %v390
  %403 = vst [vmem:[#allocation2 + $0x18] sm:$0xff] %v391
  %404 = vst [vmem:[#allocation2 + $0x20] sm:$0xff] %v392
  %405 = vst [vmem:[#allocation2 + $0x28] sm:$0xff] %v393
  %406 = vst [vmem:[#allocation2 + $0x30] sm:$0xff] %v394
  %407 = vst [vmem:[#allocation2 + $0x38] sm:$0xff] %v395
  %408 = vst [vmem:[#allocation2 + $0x40] sm:$0xff] %v396
  %409 = vst [vmem:[#allocation2 + $0x48] sm:$0xff] %v397
  %410 = vst [vmem:[#allocation2 + $0x50] sm:$0xff] %v398
  %411 = vst [vmem:[#allocation2 + $0x58] sm:$0xff] %v399
  // Predicated region
  $region26: #{mae_decoder_forward.13} parent=0 // pred_check
    %p412 = pneg %p21
  $region27: #{mae_decoder_forward.13} parent=0 // pred_check_branch
    %414 = sbr.rel (%p412) target = $region29
  $region28: #{mae_decoder_forward.13} parent=0 // pred_region
    %v415 = vld [vmem:[#allocation2] sm:$0xff]
    %v416 = vld [vmem:[#allocation2 + $0x8] sm:$0xff]
    %v417 = vld [vmem:[#allocation2 + $0x10] sm:$0xff]
    %v418 = vld [vmem:[#allocation2 + $0x18] sm:$0xff]
    %v419 = vld [vmem:[#allocation2 + $0x20] sm:$0xff]
    %v420 = vld [vmem:[#allocation2 + $0x28] sm:$0xff]
    %v421 = vld [vmem:[#allocation2 + $0x30] sm:$0xff]
    %v422 = vld [vmem:[#allocation2 + $0x38] sm:$0xff]
    %v423 = vld [vmem:[#allocation2 + $0x40] sm:$0xff]
    %v424 = vld [vmem:[#allocation2 + $0x48] sm:$0xff]
    %v425 = vld [vmem:[#allocation2 + $0x50] sm:$0xff]
    %v426 = vld [vmem:[#allocation2 + $0x58] sm:$0xff]
    %v427 = vld [vmem:[%s4] sm:$0x7]
    %v429 = vlaneseq
    %v430 = vshrl.u32 %v429, 7
    %v431 = vsub.s32 0, %v430
    %v432 = vrot.slane %v427, %v431
    %v433 = vlaneseq
    %v434 = vshrl.u32 %v433, 7
    %v435 = vsub.s32 1, %v434
    %v436 = vrot.slane %v427, %v435
    %v437 = vlaneseq
    %v438 = vshrl.u32 %v437, 7
    %v439 = vsub.s32 2, %v438
    %v440 = vrot.slane %v427, %v439
    %v444 = vadd.f32 %v415, %v432
    %v445 = vadd.f32 %v416, %v436
    %v446 = vadd.f32 %v417, %v440
    %v447 = vadd.f32 %v418, %v432
    %v448 = vadd.f32 %v419, %v436
    %v449 = vadd.f32 %v420, %v440
    %v450 = vadd.f32 %v421, %v432
    %v451 = vadd.f32 %v422, %v436
    %v452 = vadd.f32 %v423, %v440
    %v453 = vadd.f32 %v424, %v432
    %v454 = vadd.f32 %v425, %v436
    %v455 = vadd.f32 %v426, %v440
    %v456 = vpack.c.bf16 %v447, %v444
    %v457 = vpack.c.bf16 %v448, %v445
    %v458 = vpack.c.bf16 %v449, %v446
    %v459 = vpack.c.bf16 %v453, %v450
    %v460 = vpack.c.bf16 %v454, %v451
    %v461 = vpack.c.bf16 %v455, %v452
    %v468 = vunpack.c.l.b16 %v456
    %v469 = vunpack.c.l.b16 %v457
    %v470 = vunpack.c.l.b16 %v458
    %v471 = vunpack.c.h.b16 %v456
    %v472 = vunpack.c.h.b16 %v457
    %v473 = vunpack.c.h.b16 %v458
    %v474 = vunpack.c.l.b16 %v459
    %v475 = vunpack.c.l.b16 %v460
    %v476 = vunpack.c.l.b16 %v461
    %v477 = vunpack.c.h.b16 %v459
    %v478 = vunpack.c.h.b16 %v460
    %v479 = vunpack.c.h.b16 %v461
    %v480 = vpack.c.b16 %v469, %v468
    %v481 = vpack.c.b16 %v470, %v470
    %v482 = vpack.c.b16 %v472, %v471
    %v483 = vpack.c.b16 %v473, %v473
    %v484 = vpack.c.b16 %v475, %v474
    %v485 = vpack.c.b16 %v476, %v476
    %v486 = vpack.c.b16 %v478, %v477
    %v487 = vpack.c.b16 %v479, %v479
    %496 = vst [vmem:[%s5] sm:$0xff] %v480
    %497 = vst [vmem:[%s5 + $0x8] sm:$0xf] %v481
    %498 = vst [vmem:[%s5 + $0xc] sm:$0xff] %v482
    %499 = vst [vmem:[%s5 + $0x14] sm:$0xf] %v483
    %500 = vst [vmem:[%s5 + $0x18] sm:$0xff] %v484
    %501 = vst [vmem:[%s5 + $0x20] sm:$0xf] %v485
    %502 = vst [vmem:[%s5 + $0x24] sm:$0xff] %v486
    %503 = vst [vmem:[%s5 + $0x2c] sm:$0xf] %v487
  $region29: #{mae_decoder_forward.13} parent=0 // pred_fallthru
    _
  // Predicated region
  $region30: #{mae_decoder_forward.13} parent=0 // pred_check
    _
  $region31: #{mae_decoder_forward.13} parent=0 // pred_check_branch
    %505 = sbr.rel (0) target = $region33
  $region32: #{mae_decoder_forward.13} parent=0 // pred_region
    _
  $region33: #{mae_decoder_forward.13} parent=0 // pred_fallthru
    _
  // Predicated region
  $region34: #{mae_decoder_forward.13} parent=0 // pred_check
    _
  $region35: #{mae_decoder_forward.13} parent=0 // pred_check_branch
    %507 = sbr.rel (0) target = $region37
  $region36: #{mae_decoder_forward.13} parent=0 // pred_region
    _
  $region37: #{mae_decoder_forward.13} parent=0 // pred_fallthru
    _

// kernel: mae_decoder_forward.14
$region0: #{mae_decoder_forward.14}
  #allocation0 [shape = 'u32[]', space=smem, size = 0x4, offset = 0x4, fixed_abs, tag = 'smem constant byte address 0x4 - core index']
  #allocation1 [shape = 'u32[144,128]{1,0:T(1,128)}', space=vmem, size = 0x12000, scoped, tag = 'internal scratch']
  #allocation2 [shape = 'f32[16,1]{1,0:T(8,128)}', space=vmem, size = 0x2000, scoped, tag = 'scratch operand']
  #allocation3 [shape = 'f32[16,1]{1,0:T(8,128)}', space=vmem, size = 0x2000, scoped, tag = 'scratch operand']
  #allocation4 [shape = 'f32[16,64]{1,0:T(8,128)}', space=vmem, size = 0x2000, scoped, tag = 'scratch operand']
  %s0 = inlined_call_operand.vmem [shape: bf16[4,16,64], index: 0, kind: input, shape index: {}]
  %s1 = inlined_call_operand.vmem [shape: bf16[4,16,64], index: 1, kind: input, shape index: {}]
  %s2 = inlined_call_operand.vmem [shape: bf16[4,16,64], index: 2, kind: input, shape index: {}]
  %s3 = inlined_call_operand.vmem [shape: bf16[4,16,64], index: 3, kind: output, shape index: {}]
  %s4 = sld [smem:[#allocation0]]
  $region53: #{mae_decoder_forward.14} parent=0
    _
  %s6 = ssub.s32 1, %s4
  %s7 = scalar_select 0, %s6, %s4
  loop: start=0, step=1, limit=6
  $region2: #{mae_decoder_forward.14} parent=0 // loop_pre_header
    _
  $region3: #{mae_decoder_forward.14} parent=0 // loop_header
    %s9 = sphi 0, %s13
    %p10 = scmp.ge.s32.totalorder %s9, 6
    %s16 = sphi 0, %s35
    %s17 = sphi 0, %s31
    %s18 = sphi 0, %s27
    %s19 = sphi 0, %s16
    %s20 = sphi 0, %s17
    %s21 = sphi 0, %s18
    %s22 = sphi 0, %s19
    %s23 = sphi 0, %s20
    %s24 = sphi 0, %s21
    %s40 = sphi 0, %s42
    %s43 = sphi 0, %s40
    %s44 = sphi 0, %s43
    %s60 = sphi 0, %s44
    %s68 = sphi 0, %s70
    %s71 = sphi 0, %s68
    %s72 = sphi 0, %s71
    %s88 = sphi 0, %s72
    %s96 = sphi 0, %s98
    %s99 = sphi 0, %s96
    %s100 = sphi 0, %s99
    %s116 = sphi 0, %s100
    %s124 = sphi 0, %s126
    %s127 = sphi 0, %s124
    %s128 = sphi 0, %s127
    %s144 = sphi 0, %s128
  $region4: #{mae_decoder_forward.14} parent=0 // loop_header_branch
    %12 = sbr.rel (%p10) target = $region8
  $region5: #{mae_decoder_forward.14} parent=0 // loop_body
    %s14 = ssub.s32 %s9, 1
    %s15 = ssub.s32 %s9, 2
    %s25 = sadd.s32 1, %s18
    %p26 = scmp.ge.s32.totalorder %s25, 1
    %s27 = scalar_select %p26, 0, %s25
    %s28 = sadd.s32 1, %s17
    %s29 = scalar_select %p26, %s28, %s17
    %p30 = scmp.ge.s32.totalorder %s29, 1
    %s31 = scalar_select %p30, 0, %s29
    %s32 = sadd.s32 1, %s16
    %s33 = scalar_select %p30, %s32, %s16
    %p34 = scmp.ge.s32.totalorder %s33, 4
    %s35 = scalar_select %p34, 0, %s33
    %s36 = ssub.s32 %s16, %s35
    %s37 = ssub.s32 %s17, %s31
    %s38 = sor.u32 %s36, %s37
    %p39 = scmp.eq.s32.totalorder %s38, 0
    %s41 = sadd.s32 %s40, 1
    %s42 = scalar_select %p39, %s40, %s41
    %p45 = pneg %p39
    %p46 = scmp.eq.s32.totalorder %s9, 3
    %p47 = por %p45, %p46
    %p48 = scmp.ne.s32.totalorder %s40, %s43
    %p49 = scmp.eq.s32.totalorder %s9, 0
    %p50 = por %p48, %p49
    %p51 = scmp.ne.s32.totalorder %s40, %s43
    %p52 = scmp.eq.s32.totalorder %s14, 3
    %p53 = por %p51, %p52
    %p54 = scmp.ne.s32.totalorder %s43, %s44
    %p55 = scmp.eq.s32.totalorder %s14, 0
    %p56 = por %p54, %p55
    %p57 = scmp.ne.s32.totalorder %s43, %s44
    %p58 = scmp.eq.s32.totalorder %s15, 3
    %p59 = por %p57, %p58
    %p61 = scmp.ne.s32.totalorder %s44, %s60
    %p62 = scmp.eq.s32.totalorder %s15, 0
    %p63 = por %p61, %p62
    %s64 = ssub.s32 %s16, %s35
    %s65 = ssub.s32 %s18, %s27
    %s66 = sor.u32 %s64, %s65
    %p67 = scmp.eq.s32.totalorder %s66, 0
    %s69 = sadd.s32 %s68, 1
    %s70 = scalar_select %p67, %s68, %s69
    %p73 = pneg %p67
    %p74 = scmp.eq.s32.totalorder %s9, 3
    %p75 = por %p73, %p74
    %p76 = scmp.ne.s32.totalorder %s68, %s71
    %p77 = scmp.eq.s32.totalorder %s9, 0
    %p78 = por %p76, %p77
    %p79 = scmp.ne.s32.totalorder %s68, %s71
    %p80 = scmp.eq.s32.totalorder %s14, 3
    %p81 = por %p79, %p80
    %p82 = scmp.ne.s32.totalorder %s71, %s72
    %p83 = scmp.eq.s32.totalorder %s14, 0
    %p84 = por %p82, %p83
    %p85 = scmp.ne.s32.totalorder %s71, %s72
    %p86 = scmp.eq.s32.totalorder %s15, 3
    %p87 = por %p85, %p86
    %p89 = scmp.ne.s32.totalorder %s72, %s88
    %p90 = scmp.eq.s32.totalorder %s15, 0
    %p91 = por %p89, %p90
    %s92 = ssub.s32 %s16, %s35
    %s93 = ssub.s32 %s18, %s27
    %s94 = sor.u32 %s92, %s93
    %p95 = scmp.eq.s32.totalorder %s94, 0
    %s97 = sadd.s32 %s96, 1
    %s98 = scalar_select %p95, %s96, %s97
    %p101 = pneg %p95
    %p102 = scmp.eq.s32.totalorder %s9, 3
    %p103 = por %p101, %p102
    %p104 = scmp.ne.s32.totalorder %s96, %s99
    %p105 = scmp.eq.s32.totalorder %s9, 0
    %p106 = por %p104, %p105
    %p107 = scmp.ne.s32.totalorder %s96, %s99
    %p108 = scmp.eq.s32.totalorder %s14, 3
    %p109 = por %p107, %p108
    %p110 = scmp.ne.s32.totalorder %s99, %s100
    %p111 = scmp.eq.s32.totalorder %s14, 0
    %p112 = por %p110, %p111
    %p113 = scmp.ne.s32.totalorder %s99, %s100
    %p114 = scmp.eq.s32.totalorder %s15, 3
    %p115 = por %p113, %p114
    %p117 = scmp.ne.s32.totalorder %s100, %s116
    %p118 = scmp.eq.s32.totalorder %s15, 0
    %p119 = por %p117, %p118
    %s120 = ssub.s32 %s16, %s35
    %s121 = ssub.s32 %s17, %s31
    %s122 = sor.u32 %s120, %s121
    %p123 = scmp.eq.s32.totalorder %s122, 0
    %s125 = sadd.s32 %s124, 1
    %s126 = scalar_select %p123, %s124, %s125
    %p129 = pneg %p123
    %p130 = scmp.eq.s32.totalorder %s9, 3
    %p131 = por %p129, %p130
    %p132 = scmp.ne.s32.totalorder %s124, %s127
    %p133 = scmp.eq.s32.totalorder %s9, 0
    %p134 = por %p132, %p133
    %p135 = scmp.ne.s32.totalorder %s124, %s127
    %p136 = scmp.eq.s32.totalorder %s14, 3
    %p137 = por %p135, %p136
    %p138 = scmp.ne.s32.totalorder %s127, %s128
    %p139 = scmp.eq.s32.totalorder %s14, 0
    %p140 = por %p138, %p139
    %p141 = scmp.ne.s32.totalorder %s127, %s128
    %p142 = scmp.eq.s32.totalorder %s15, 3
    %p143 = por %p141, %p142
    %p145 = scmp.ne.s32.totalorder %s128, %s144
    %p146 = scmp.eq.s32.totalorder %s15, 0
    %p147 = por %p145, %p146
    %p148 = scmp.le.s32.totalorder 1, %s9
    %p149 = scmp.lt.s32.totalorder %s9, 5
    %p150 = pnand %p148, %p149
    %p151 = pneg %p150
    // Predicated region
    $region9: #{mae_decoder_forward.14} parent=5 // pred_check
      _
    $region10: #{mae_decoder_forward.14} parent=5 // pred_check_branch
      %153 = sbr.rel (%p150) target = $region12
    $region11: #{mae_decoder_forward.14} parent=5 // pred_region
      %s154 = ssub.s32 %s9, 1
    $region12: #{mae_decoder_forward.14} parent=5 // pred_fallthru
      _
    %p155 = scmp.lt.s32.totalorder %s9, 4
    // Predicated region
    $region13: #{mae_decoder_forward.14} parent=5 // pred_check
      %p156 = pneg %p155
    $region14: #{mae_decoder_forward.14} parent=5 // pred_check_branch
      %158 = sbr.rel (%p156) target = $region16
    $region15: #{mae_decoder_forward.14} parent=5 // pred_region
      // Predicated region
      $region17: #{mae_decoder_forward.14} parent=15 // pred_check
        %p159 = pneg %p50
      $region18: #{mae_decoder_forward.14} parent=15 // pred_check_branch
        %161 = sbr.rel (%p159) target = $region20
      $region19: #{mae_decoder_forward.14} parent=15 // pred_region
        %s162 = smul.u32 2, %s17
        %p163 = scmp.lt.s32.totalorder %s16, 3
        %s164 = scalar_select %p163, %s16, 3
        %p165 = scmp.lt.s32.totalorder %s162, 1
        %s166 = scalar_select %p165, %s162, 1
        %s167 = smul.addr %s164, 2
        %s168 = sadd.s32 %s166, %s167
        %s169 = smul.addr %s168, 4
        %s170 = scalar_lea.vmem %s0, %s169
        %s171 = smul.u32 2, %s17
      $region20: #{mae_decoder_forward.14} parent=15 // pred_fallthru
        _
      // Predicated region
      $region21: #{mae_decoder_forward.14} parent=15 // pred_check
        %p172 = pneg %p78
      $region22: #{mae_decoder_forward.14} parent=15 // pred_check_branch
        %174 = sbr.rel (%p172) target = $region24
      $region23: #{mae_decoder_forward.14} parent=15 // pred_region
        %s175 = smul.u32 2, %s18
        %p176 = scmp.lt.s32.totalorder %s16, 3
        %s177 = scalar_select %p176, %s16, 3
        %p178 = scmp.lt.s32.totalorder %s175, 1
        %s179 = scalar_select %p178, %s175, 1
        %s180 = smul.addr %s177, 2
        %s181 = sadd.s32 %s179, %s180
        %s182 = smul.addr %s181, 4
        %s183 = scalar_lea.vmem %s1, %s182
        %s184 = smul.u32 2, %s18
      $region24: #{mae_decoder_forward.14} parent=15 // pred_fallthru
        _
      // Predicated region
      $region25: #{mae_decoder_forward.14} parent=15 // pred_check
        %p185 = pneg %p106
      $region26: #{mae_decoder_forward.14} parent=15 // pred_check_branch
        %187 = sbr.rel (%p185) target = $region28
      $region27: #{mae_decoder_forward.14} parent=15 // pred_region
        %s188 = smul.u32 2, %s18
        %p189 = scmp.lt.s32.totalorder %s16, 3
        %s190 = scalar_select %p189, %s16, 3
        %p191 = scmp.lt.s32.totalorder %s188, 1
        %s192 = scalar_select %p191, %s188, 1
        %s193 = smul.addr %s190, 2
        %s194 = sadd.s32 %s192, %s193
        %s195 = smul.addr %s194, 4
        %s196 = scalar_lea.vmem %s2, %s195
        %s197 = smul.u32 2, %s18
      $region28: #{mae_decoder_forward.14} parent=15 // pred_fallthru
        _
    $region16: #{mae_decoder_forward.14} parent=5 // pred_fallthru
      _
    %p198 = scmp.le.s32.totalorder 1, %s9
    %p199 = scmp.lt.s32.totalorder %s9, 5
    %p200 = pnand %p198, %p199
    %p201 = pneg %p200
    // Predicated region
    $region29: #{mae_decoder_forward.14} parent=5 // pred_check
      _
    $region30: #{mae_decoder_forward.14} parent=5 // pred_check_branch
      %203 = sbr.rel (%p200) target = $region32
    $region31: #{mae_decoder_forward.14} parent=5 // pred_region
      %s204 = ssub.s32 %s9, 1
      %s205 = smul.u32 2, %s20
      %p206 = scmp.lt.s32.totalorder %s19, 3
      %s207 = scalar_select %p206, %s19, 3
      %p208 = scmp.lt.s32.totalorder %s205, 1
      %s209 = scalar_select %p208, %s205, 1
      %s210 = smul.addr %s207, 2
      %s211 = sadd.s32 %s209, %s210
      %s212 = smul.addr %s211, 4
      %s213 = scalar_lea.vmem %s0, %s212
      %p214 = pneg %p56
      %p215 = pneg %p53
      %s216 = smul.u32 2, %s21
      %p217 = scmp.lt.s32.totalorder %s19, 3
      %s218 = scalar_select %p217, %s19, 3
      %p219 = scmp.lt.s32.totalorder %s216, 1
      %s220 = scalar_select %p219, %s216, 1
      %s221 = smul.addr %s218, 2
      %s222 = sadd.s32 %s220, %s221
      %s223 = smul.addr %s222, 4
      %s224 = scalar_lea.vmem %s1, %s223
      %p225 = pneg %p84
      %p226 = pneg %p81
      %s227 = smul.u32 2, %s21
      %p228 = scmp.lt.s32.totalorder %s19, 3
      %s229 = scalar_select %p228, %s19, 3
      %p230 = scmp.lt.s32.totalorder %s227, 1
      %s231 = scalar_select %p230, %s227, 1
      %s232 = smul.addr %s229, 2
      %s233 = sadd.s32 %s231, %s232
      %s234 = smul.addr %s233, 4
      %s235 = scalar_lea.vmem %s2, %s234
      %p236 = pneg %p112
      %p237 = pneg %p109
      %p238 = pneg %p140
      %p239 = pneg %p137
      %s240 = smul.u32 2, %s20
      %p241 = scmp.lt.s32.totalorder %s19, 3
      %s242 = scalar_select %p241, %s19, 3
      %p243 = scmp.lt.s32.totalorder %s240, 1
      %s244 = scalar_select %p243, %s240, 1
      %s245 = smul.addr %s242, 2
      %s246 = sadd.s32 %s244, %s245
      %s247 = smul.addr %s246, 4
      %s248 = scalar_lea.vmem %s3, %s247
      %s249 = smul.u32 2, %s20
      %p250 = scmp.lt.s32.totalorder %s19, 3
      %s251 = scalar_select %p250, %s19, 3
      %p252 = scmp.lt.s32.totalorder %s249, 1
      %s253 = scalar_select %p252, %s249, 1
      %s254 = smul.addr %s251, 2
      %s255 = sadd.s32 %s253, %s254
      %s256 = smul.addr %s255, 4
      %s257 = scalar_lea.vmem %s0, %s256
      %s258 = smul.u32 2, %s20
      %s259 = smul.u32 2, %s21
      %p260 = scmp.lt.s32.totalorder %s19, 3
      %s261 = scalar_select %p260, %s19, 3
      %p262 = scmp.lt.s32.totalorder %s259, 1
      %s263 = scalar_select %p262, %s259, 1
      %s264 = smul.addr %s261, 2
      %s265 = sadd.s32 %s263, %s264
      %s266 = smul.addr %s265, 4
      %s267 = scalar_lea.vmem %s1, %s266
      %s268 = smul.u32 2, %s21
      %s269 = smul.u32 2, %s21
      %p270 = scmp.lt.s32.totalorder %s19, 3
      %s271 = scalar_select %p270, %s19, 3
      %p272 = scmp.lt.s32.totalorder %s269, 1
      %s273 = scalar_select %p272, %s269, 1
      %s274 = smul.addr %s271, 2
      %s275 = sadd.s32 %s273, %s274
      %s276 = smul.addr %s275, 4
      %s277 = scalar_lea.vmem %s2, %s276
      %s278 = smul.u32 2, %s21
      %s279 = smul.u32 2, %s20
      %p280 = scmp.lt.s32.totalorder %s19, 3
      %s281 = scalar_select %p280, %s19, 3
      %p282 = scmp.lt.s32.totalorder %s279, 1
      %s283 = scalar_select %p282, %s279, 1
      %s284 = smul.addr %s281, 2
      %s285 = sadd.s32 %s283, %s284
      %s286 = smul.addr %s285, 4
      %s287 = scalar_lea.vmem %s3, %s286
      %s288 = smul.u32 2, %s20
      %p290 = scmp.eq.s32.totalorder %s21, 0
      // Predicated region
      $region33: #{mae_decoder_forward.14} parent=31 // pred_check
        %p291 = pneg %p290
      $region34: #{mae_decoder_forward.14} parent=31 // pred_check_branch
        %293 = sbr.rel (%p291) target = $region36
      $region35: #{mae_decoder_forward.14} parent=31 // pred_region
        %vm294 = vcmask 7168
        %295 = vst.msk [vmem:[#allocation2] sm:$0xff] %vm294, -1e+30
        %296 = vst.msk [vmem:[#allocation2 + $0x8] sm:$0xff] %vm294, -1e+30
        %297 = vst.msk [vmem:[#allocation3] sm:$0xff] %vm294, 0.0
        %298 = vst.msk [vmem:[#allocation3 + $0x8] sm:$0xff] %vm294, 0.0
        %vm299 = vcmask 523264
        %300 = vst.msk [vmem:[#allocation4] sm:$0xff] %vm299, 0.0
        %301 = vst.msk [vmem:[#allocation4 + $0x8] sm:$0xff] %vm299, 0.0
      $region36: #{mae_decoder_forward.14} parent=31 // pred_fallthru
        _
      %v302 = vld [vmem:[%s257] sm:$0xf]
      %v303 = vld [vmem:[%s257 + $0x4] sm:$0xf]
      %v304 = vld [vmem:[%s267] sm:$0xf]
      %v305 = vld [vmem:[%s267 + $0x4] sm:$0xf]
      %v308 = vunpack.c.l.b16 %v302
      %v309 = vunpack.c.l.b16 %v303
      %v310 = vpack.c.b16 %v309, %v308
      %v313 = vunpack.c.l.b16 %v304
      %v314 = vunpack.c.l.b16 %v305
      %v315 = vpack.c.b16 %v314, %v313
      %vm316 = vcmask 523264
      %v318 = vsel %vm316, %v310, 0
      %v321 = vsel %vm316, %v315, 0
      %323 = vmatprep.subr.bf16.mxu0 0
      %324 = vmatpush1.bf16.xpose.msra.mxu0 0
      %325 = vmatprep.subr.bf16.mxu0 0
      %326 = vmatpush1.bf16.xpose.msra.mxu0 0
      %327 = vmatprep.subr.bf16.mxu0 0
      %328 = vmatpush1.bf16.xpose.msra.mxu0 0
      %329 = vmatprep.subr.bf16.mxu0 0
      %330 = vmatpush1.bf16.xpose.msra.mxu0 0
      %331 = vmatprep.subr.bf16.mxu0 0
      %332 = vmatpush1.bf16.xpose.msra.mxu0 0
      %333 = vmatprep.subr.bf16.mxu0 0
      %334 = vmatpush1.bf16.xpose.msra.mxu0 0
      %335 = vmatprep.subr.bf16.mxu0 0
      %336 = vmatpush1.bf16.xpose.msra.mxu0 0
      %337 = vmatprep.subr.bf16.mxu0 0
      %338 = vmatpush1.bf16.xpose.msra.mxu0 %v321
      %339 = vmatprep.subr.bf16.mxu0 0
      %340 = vmatpush2.bf16.xpose.msra.mxu0 0
      %341 = vmatprep.subr.bf16.mxu0 0
      %342 = vmatpush2.bf16.xpose.msra.mxu0 0
      %343 = vmatprep.subr.bf16.mxu0 0
      %344 = vmatpush2.bf16.xpose.msra.mxu0 0
      %345 = vmatprep.subr.bf16.mxu0 0
      %346 = vmatpush2.bf16.xpose.msra.mxu0 0
      %347 = vmatprep.subr.bf16.mxu0 0
      %348 = vmatpush2.bf16.xpose.msra.mxu0 0
      %349 = vmatprep.subr.bf16.mxu0 0
      %350 = vmatpush2.bf16.xpose.msra.mxu0 0
      %351 = vmatprep.subr.bf16.mxu0 0
      %352 = vmatpush2.bf16.xpose.msra.mxu0 0
      %353 = vmatprep.subr.bf16.mxu0 0
      %354 = vmatpush2.bf16.xpose.msra.mxu0 0
      %355 = vmatprep.mubr.bf16.mxu0 0
      %356 = vmatmul.mubr.bf16.gmra.mxu0 %v318
      %v357 = vpop.f32.mrf.mxu0
      %v358 = vadd.f32 0.0, %v357
      %v359 = vpop.f32.mrf.mxu0
      %v360 = vpop.f32.mrf.mxu0
      %v361 = vadd.f32 0.0, %v360
      %v362 = vpop.f32.mrf.mxu0
      %363 = vdwg.mxu0
      %v364 = vmul.f32 %v358, 0.125
      %v365 = vmul.f32 %v361, 0.125
      %s366 = smul.u32 %s21, 16
      %v367 = vlaneseq
      %v368 = vand.u32 %v367, 127
      %v369 = vstv %s366
      %v370 = vadd.s32 %v369, %v368
      %vm371 = vcmp.lt.s32.totalorder %v370, 11
      %v372 = vsel %vm371, %v364, -1e+30
      %v373 = vsel %vm371, %v365, -1e+30
      %v374 = vld [vmem:[#allocation2] sm:$0xff]
      %v375 = vld [vmem:[#allocation2 + $0x8] sm:$0xff]
      %vm376 = vcmask 130048
      %v377 = vsel %vm376, %v372, -inf
      %378 = vmax.xlane.f32.xlu0 %v377
      %v379 = vpop.xlane.xlu0 %378
      %v380 = vsel %vm376, %v373, -inf
      %381 = vmax.xlane.f32.xlu0 %v380
      %v382 = vpop.xlane.xlu0 %381
      %v383 = vmax.f32 %v374, %v379
      %v384 = vmax.f32 %v375, %v382
      %v385 = vsub.f32 %v374, %v383
      %v386 = vsub.f32 %v375, %v384
      %v387 = vmul.f32 %v385, 1.442695
      %v388 = vpow.pop %v387
      %v389 = vmul.f32 %v386, 1.442695
      %v390 = vpow.pop %v389
      %392 = vset.pattern.permute.xlu0 0
      %393 = vperm.xlu0 %392, %v383
      %v394 = vpop.permute.xlu0 %393
      %397 = vset.pattern.permute.xlu0 0
      %398 = vperm.xlu0 %397, %v384
      %v399 = vpop.permute.xlu0 %398
      %v401 = vsub.f32 %v372, %v394
      %v402 = vsub.f32 %v373, %v399
      %v403 = vmul.f32 %v401, 1.442695
      %v404 = vpow.pop %v403
      %v405 = vmul.f32 %v402, 1.442695
      %v406 = vpow.pop %v405
      %v407 = vld [vmem:[#allocation3] sm:$0xff]
      %v408 = vld [vmem:[#allocation3 + $0x8] sm:$0xff]
      %v409 = vmul.f32 %v388, %v407
      %v410 = vmul.f32 %v390, %v408
      %v411 = vsel %vm376, %v404, 0.0
      %412 = vadd.xlane.f32.xlu0 %v411
      %v413 = vpop.xlane.xlu0 %412
      %v414 = vsel %vm376, %v406, 0.0
      %415 = vadd.xlane.f32.xlu0 %v414
      %v416 = vpop.xlane.xlu0 %415
      %v417 = vadd.f32 %v409, %v413
      %v418 = vadd.f32 %v410, %v416
      %vm419 = vcmask 7168
      %420 = vst.msk [vmem:[#allocation3] sm:$0xff] %vm419, %v417
      %421 = vst.msk [vmem:[#allocation3 + $0x8] sm:$0xff] %vm419, %v418
      %v422 = vld [vmem:[#allocation4] sm:$0xff]
      %v423 = vld [vmem:[#allocation4 + $0x8] sm:$0xff]
      %425 = vset.pattern.permute.xlu0 0
      %426 = vperm.xlu0 %425, %v388
      %v427 = vpop.permute.xlu0 %426
      %430 = vset.pattern.permute.xlu0 0
      %431 = vperm.xlu0 %430, %v390
      %v432 = vpop.permute.xlu0 %431
      %v434 = vmul.f32 %v427, %v422
      %v435 = vmul.f32 %v432, %v423
      %v436 = vpack.c.bf16 %v406, %v404
      %v437 = vld [vmem:[%s277] sm:$0xf]
      %v438 = vld [vmem:[%s277 + $0x4] sm:$0xf]
      %v441 = vunpack.c.l.b16 %v437
      %v442 = vunpack.c.l.b16 %v438
      %v443 = vpack.c.b16 %v442, %v441
      %v446 = vsel %vm376, %v436, 0
      %448 = vmatprep.subr.bf16.mxu0 0
      %449 = vmatpush1.bf16.msra.mxu0 0
      %450 = vmatprep.subr.bf16.mxu0 0
      %451 = vmatpush1.bf16.msra.mxu0 0
      %452 = vmatprep.subr.bf16.mxu0 0
      %453 = vmatpush1.bf16.msra.mxu0 0
      %454 = vmatprep.subr.bf16.mxu0 0
      %455 = vmatpush1.bf16.msra.mxu0 0
      %456 = vmatprep.subr.bf16.mxu0 0
      %457 = vmatpush1.bf16.msra.mxu0 0
      %458 = vmatprep.subr.bf16.mxu0 0
      %459 = vmatpush1.bf16.msra.mxu0 0
      %460 = vmatprep.subr.bf16.mxu0 0
      %461 = vmatpush1.bf16.msra.mxu0 0
      %462 = vmatprep.subr.bf16.mxu0 0
      %463 = vmatpush1.bf16.msra.mxu0 %v443
      %464 = vmatprep.subr.bf16.mxu0 0
      %465 = vmatpush2.bf16.msra.mxu0 0
      %466 = vmatprep.subr.bf16.mxu0 0
      %467 = vmatpush2.bf16.msra.mxu0 0
      %468 = vmatprep.subr.bf16.mxu0 0
      %469 = vmatpush2.bf16.msra.mxu0 0
      %470 = vmatprep.subr.bf16.mxu0 0
      %471 = vmatpush2.bf16.msra.mxu0 0
      %472 = vmatprep.subr.bf16.mxu0 0
      %473 = vmatpush2.bf16.msra.mxu0 0
      %474 = vmatprep.subr.bf16.mxu0 0
      %475 = vmatpush2.bf16.msra.mxu0 0
      %476 = vmatprep.subr.bf16.mxu0 0
      %477 = vmatpush2.bf16.msra.mxu0 0
      %478 = vmatprep.subr.bf16.mxu0 0
      %479 = vmatpush2.bf16.msra.mxu0 0
      %480 = vmatprep.mubr.bf16.mxu0 0
      %481 = vmatmul.mubr.bf16.gmra.mxu0 %v446
      %v482 = vpop.f32.mrf.mxu0
      %v483 = vadd.f32 0.0, %v482
      %v484 = vpop.f32.mrf.mxu0
      %v485 = vpop.f32.mrf.mxu0
      %v486 = vadd.f32 0.0, %v485
      %v487 = vpop.f32.mrf.mxu0
      %488 = vdwg.mxu0
      %v489 = vadd.f32 %v434, %v483
      %v490 = vadd.f32 %v435, %v486
      %491 = vst.msk [vmem:[#allocation4] sm:$0xff] %vm316, %v489
      %492 = vst.msk [vmem:[#allocation4 + $0x8] sm:$0xff] %vm316, %v490
      %493 = vst.msk [vmem:[#allocation2] sm:$0xff] %vm419, %v383
      %494 = vst.msk [vmem:[#allocation2 + $0x8] sm:$0xff] %vm419, %v384
      // Predicated region
      $region37: #{mae_decoder_forward.14} parent=31 // pred_check
        %p495 = pneg %p290
      $region38: #{mae_decoder_forward.14} parent=31 // pred_check_branch
        %497 = sbr.rel (%p495) target = $region40
      $region39: #{mae_decoder_forward.14} parent=31 // pred_region
        %v498 = vld [vmem:[#allocation3] sm:$0xff]
        %v499 = vld [vmem:[#allocation3 + $0x8] sm:$0xff]
        %v500 = vrcp.pop %v498
        %v501 = vrcp.pop %v499
        %v502 = vld [vmem:[#allocation4] sm:$0xff]
        %v503 = vld [vmem:[#allocation4 + $0x8] sm:$0xff]
        %505 = vset.pattern.permute.xlu0 0
        %506 = vperm.xlu0 %505, %v500
        %v507 = vpop.permute.xlu0 %506
        %510 = vset.pattern.permute.xlu0 0
        %511 = vperm.xlu0 %510, %v501
        %v512 = vpop.permute.xlu0 %511
        %v514 = vmul.f32 %v502, %v507
        %v515 = vmul.f32 %v503, %v512
        %v516 = vpack.c.bf16 %v515, %v514
        %v518 = vunpack.c.l.b16 %v516
        %v519 = vunpack.c.h.b16 %v516
        %v520 = vpack.c.b16 %v518, %v518
        %v521 = vpack.c.b16 %v519, %v519
        %vm524 = vcmask 519168
        %525 = vst.msk [vmem:[%s287] sm:$0xf] %vm524, %v520
        %526 = vst.msk [vmem:[%s287 + $0x4] sm:$0xf] %vm524, %v521
      $region40: #{mae_decoder_forward.14} parent=31 // pred_fallthru
        _
      %s527 = smul.u32 2, %s20
      %p528 = scmp.lt.s32.totalorder %s19, 3
      %s529 = scalar_select %p528, %s19, 3
      %p530 = scmp.lt.s32.totalorder %s527, 1
      %s531 = scalar_select %p530, %s527, 1
      %s532 = smul.addr %s529, 2
      %s533 = sadd.s32 %s531, %s532
      %s534 = smul.addr %s533, 4
      %s535 = scalar_lea.vmem %s3, %s534
      // Predicated region
      $region41: #{mae_decoder_forward.14} parent=31 // pred_check
        %p536 = pneg %p137
      $region42: #{mae_decoder_forward.14} parent=31 // pred_check_branch
        %538 = sbr.rel (%p536) target = $region44
      $region43: #{mae_decoder_forward.14} parent=31 // pred_region
        %s539 = smul.u32 2, %s20
      $region44: #{mae_decoder_forward.14} parent=31 // pred_fallthru
        _
    $region32: #{mae_decoder_forward.14} parent=5 // pred_fallthru
      _
    %p540 = scmp.le.s32.totalorder 2, %s9
    // Predicated region
    $region45: #{mae_decoder_forward.14} parent=5 // pred_check
      %p541 = pneg %p540
    $region46: #{mae_decoder_forward.14} parent=5 // pred_check_branch
      %543 = sbr.rel (%p541) target = $region48
    $region47: #{mae_decoder_forward.14} parent=5 // pred_region
      %s544 = ssub.s32 %s9, 2
      // Predicated region
      $region49: #{mae_decoder_forward.14} parent=47 // pred_check
        %p545 = pneg %p143
      $region50: #{mae_decoder_forward.14} parent=47 // pred_check_branch
        %547 = sbr.rel (%p545) target = $region52
      $region51: #{mae_decoder_forward.14} parent=47 // pred_region
        %s548 = smul.u32 2, %s23
        %p549 = scmp.lt.s32.totalorder %s22, 3
        %s550 = scalar_select %p549, %s22, 3
        %p551 = scmp.lt.s32.totalorder %s548, 1
        %s552 = scalar_select %p551, %s548, 1
        %s553 = smul.addr %s550, 2
        %s554 = sadd.s32 %s552, %s553
        %s555 = smul.addr %s554, 4
        %s556 = scalar_lea.vmem %s3, %s555
      $region52: #{mae_decoder_forward.14} parent=47 // pred_fallthru
        _
    $region48: #{mae_decoder_forward.14} parent=5 // pred_fallthru
      _
  $region6: #{mae_decoder_forward.14} parent=0 // loop_footer
    %s13 = sadd.s32 1, %s9
  $region7: #{mae_decoder_forward.14} parent=0 // loop_footer_branch
    %8 = sbr.rel target = $region3
  $region8: #{mae_decoder_forward.14} parent=0 // loop_exit
    _

// kernel: mae_decoder_forward.15
$region0: #{mae_decoder_forward.15}
  #allocation0 [shape = 'u32[]', space=smem, size = 0x4, offset = 0x4, fixed_abs, tag = 'smem constant byte address 0x4 - core index']
  #allocation1 [shape = 'u32[144,128]{1,0:T(1,128)}', space=vmem, size = 0x12000, scoped, tag = 'internal scratch']
  #allocation2 [shape = 'f32[32,128]{1,0:T(8,128)}', space=vmem, size = 0x4000, scoped, tag = 'scratch operand']
  %s0 = inlined_call_operand.vmem [shape: bf16[32,128], index: 0, kind: input, shape index: {}]
  %s1 = inlined_call_operand.vmem [shape: bf16[128,128], index: 1, kind: input, shape index: {}]
  %s2 = inlined_call_operand.vmem [shape: f32[1,128], index: 2, kind: input, shape index: {}]
  %s3 = inlined_call_operand.vmem [shape: bf16[32,128], index: 3, kind: input, shape index: {}]
  %s4 = inlined_call_operand.vmem [shape: bf16[32,128], index: 4, kind: output, shape index: {}]
  %s5 = sld [smem:[#allocation0]]
  $region34: #{mae_decoder_forward.15} parent=0
    _
  %s7 = ssub.s32 1, %s5
  %s8 = scalar_select 0, %s7, %s5
  // Predicated region
  $region2: #{mae_decoder_forward.15} parent=0 // pred_check
    _
  $region3: #{mae_decoder_forward.15} parent=0 // pred_check_branch
    %10 = sbr.rel (0) target = $region5
  $region4: #{mae_decoder_forward.15} parent=0 // pred_region
    _
  $region5: #{mae_decoder_forward.15} parent=0 // pred_fallthru
    _
  // Predicated region
  $region6: #{mae_decoder_forward.15} parent=0 // pred_check
    _
  $region7: #{mae_decoder_forward.15} parent=0 // pred_check_branch
    %12 = sbr.rel (0) target = $region9
  $region8: #{mae_decoder_forward.15} parent=0 // pred_region
    _
  $region9: #{mae_decoder_forward.15} parent=0 // pred_fallthru
    _
  // Predicated region
  $region10: #{mae_decoder_forward.15} parent=0 // pred_check
    _
  $region11: #{mae_decoder_forward.15} parent=0 // pred_check_branch
    %14 = sbr.rel (0) target = $region13
  $region12: #{mae_decoder_forward.15} parent=0 // pred_region
    _
  $region13: #{mae_decoder_forward.15} parent=0 // pred_fallthru
    _
  // Predicated region
  $region14: #{mae_decoder_forward.15} parent=0 // pred_check
    _
  $region15: #{mae_decoder_forward.15} parent=0 // pred_check_branch
    %16 = sbr.rel (0) target = $region17
  $region16: #{mae_decoder_forward.15} parent=0 // pred_region
    _
  $region17: #{mae_decoder_forward.15} parent=0 // pred_fallthru
    _
  %p18 = scmp.eq.s32.totalorder 0, 0
  // Predicated region
  $region18: #{mae_decoder_forward.15} parent=0 // pred_check
    %p19 = pneg %p18
  $region19: #{mae_decoder_forward.15} parent=0 // pred_check_branch
    %21 = sbr.rel (%p19) target = $region21
  $region20: #{mae_decoder_forward.15} parent=0 // pred_region
    %22 = vst [vmem:[#allocation2] sm:$0xff] 0.0
    %23 = vst [vmem:[#allocation2 + $0x8] sm:$0xff] 0.0
    %24 = vst [vmem:[#allocation2 + $0x10] sm:$0xff] 0.0
    %25 = vst [vmem:[#allocation2 + $0x18] sm:$0xff] 0.0
  $region21: #{mae_decoder_forward.15} parent=0 // pred_fallthru
    _
  %v26 = vld [vmem:[%s0] sm:$0xf]
  %v27 = vld [vmem:[%s0 + $0x4] sm:$0xf]
  %v28 = vld [vmem:[%s0 + $0x8] sm:$0xf]
  %v29 = vld [vmem:[%s0 + $0xc] sm:$0xf]
  %v30 = vld [vmem:[#allocation2] sm:$0xff]
  %v31 = vld [vmem:[#allocation2 + $0x8] sm:$0xff]
  %v32 = vld [vmem:[#allocation2 + $0x10] sm:$0xff]
  %v33 = vld [vmem:[#allocation2 + $0x18] sm:$0xff]
  %v34 = vld [vmem:[%s1] sm:$0xf]
  %v35 = vld [vmem:[%s1 + $0x4] sm:$0xf]
  %v36 = vld [vmem:[%s1 + $0x8] sm:$0xf]
  %v37 = vld [vmem:[%s1 + $0xc] sm:$0xf]
  %v38 = vld [vmem:[%s1 + $0x10] sm:$0xf]
  %v39 = vld [vmem:[%s1 + $0x14] sm:$0xf]
  %v40 = vld [vmem:[%s1 + $0x18] sm:$0xf]
  %v41 = vld [vmem:[%s1 + $0x1c] sm:$0xf]
  %v42 = vld [vmem:[%s1 + $0x20] sm:$0xf]
  %v43 = vld [vmem:[%s1 + $0x24] sm:$0xf]
  %v44 = vld [vmem:[%s1 + $0x28] sm:$0xf]
  %v45 = vld [vmem:[%s1 + $0x2c] sm:$0xf]
  %v46 = vld [vmem:[%s1 + $0x30] sm:$0xf]
  %v47 = vld [vmem:[%s1 + $0x34] sm:$0xf]
  %v48 = vld [vmem:[%s1 + $0x38] sm:$0xf]
  %v49 = vld [vmem:[%s1 + $0x3c] sm:$0xf]
  %v54 = vunpack.c.l.b16 %v26
  %v55 = vunpack.c.l.b16 %v27
  %v56 = vunpack.c.l.b16 %v28
  %v57 = vunpack.c.l.b16 %v29
  %v58 = vpack.c.b16 %v55, %v54
  %v59 = vpack.c.b16 %v57, %v56
  %v78 = vunpack.c.l.b16 %v34
  %v79 = vunpack.c.l.b16 %v35
  %v80 = vunpack.c.l.b16 %v36
  %v81 = vunpack.c.l.b16 %v37
  %v82 = vunpack.c.l.b16 %v38
  %v83 = vunpack.c.l.b16 %v39
  %v84 = vunpack.c.l.b16 %v40
  %v85 = vunpack.c.l.b16 %v41
  %v86 = vunpack.c.l.b16 %v42
  %v87 = vunpack.c.l.b16 %v43
  %v88 = vunpack.c.l.b16 %v44
  %v89 = vunpack.c.l.b16 %v45
  %v90 = vunpack.c.l.b16 %v46
  %v91 = vunpack.c.l.b16 %v47
  %v92 = vunpack.c.l.b16 %v48
  %v93 = vunpack.c.l.b16 %v49
  %v94 = vpack.c.b16 %v79, %v78
  %v95 = vpack.c.b16 %v81, %v80
  %v96 = vpack.c.b16 %v83, %v82
  %v97 = vpack.c.b16 %v85, %v84
  %v98 = vpack.c.b16 %v87, %v86
  %v99 = vpack.c.b16 %v89, %v88
  %v100 = vpack.c.b16 %v91, %v90
  %v101 = vpack.c.b16 %v93, %v92
  %110 = vmatprep.subr.bf16.mxu0 0
  %111 = vmatpush1.bf16.msra.mxu0 %v101
  %112 = vmatprep.subr.bf16.mxu0 0
  %113 = vmatpush1.bf16.msra.mxu0 %v100
  %114 = vmatprep.subr.bf16.mxu0 0
  %115 = vmatpush1.bf16.msra.mxu0 %v99
  %116 = vmatprep.subr.bf16.mxu0 0
  %117 = vmatpush1.bf16.msra.mxu0 %v98
  %118 = vmatprep.subr.bf16.mxu0 0
  %119 = vmatpush1.bf16.msra.mxu0 %v97
  %120 = vmatprep.subr.bf16.mxu0 0
  %121 = vmatpush1.bf16.msra.mxu0 %v96
  %122 = vmatprep.subr.bf16.mxu0 0
  %123 = vmatpush1.bf16.msra.mxu0 %v95
  %124 = vmatprep.subr.bf16.mxu0 0
  %125 = vmatpush1.bf16.msra.mxu0 %v94
  %126 = vmatprep.subr.bf16.mxu0 0
  %127 = vmatpush2.bf16.msra.mxu0 0
  %128 = vmatprep.subr.bf16.mxu0 0
  %129 = vmatpush2.bf16.msra.mxu0 0
  %130 = vmatprep.subr.bf16.mxu0 0
  %131 = vmatpush2.bf16.msra.mxu0 0
  %132 = vmatprep.subr.bf16.mxu0 0
  %133 = vmatpush2.bf16.msra.mxu0 0
  %134 = vmatprep.subr.bf16.mxu0 0
  %135 = vmatpush2.bf16.msra.mxu0 0
  %136 = vmatprep.subr.bf16.mxu0 0
  %137 = vmatpush2.bf16.msra.mxu0 0
  %138 = vmatprep.subr.bf16.mxu0 0
  %139 = vmatpush2.bf16.msra.mxu0 0
  %140 = vmatprep.subr.bf16.mxu0 0
  %141 = vmatpush2.bf16.msra.mxu0 0
  %142 = vmatprep.mubr.bf16.mxu0 0
  %143 = vmatmul.mubr.bf16.gmra.mxu0 %v58
  %v144 = vpop.f32.mrf.mxu0
  %v145 = vadd.f32 0.0, %v144
  %v146 = vpop.f32.mrf.mxu0
  %v147 = vpop.f32.mrf.mxu0
  %v148 = vadd.f32 0.0, %v147
  %v149 = vpop.f32.mrf.mxu0
  %150 = vmatprep.mubr.bf16.mxu0 0
  %151 = vmatmul.mubr.bf16.gmra.mxu0 %v59
  %v152 = vpop.f32.mrf.mxu0
  %v153 = vadd.f32 0.0, %v152
  %v154 = vpop.f32.mrf.mxu0
  %v155 = vpop.f32.mrf.mxu0
  %v156 = vadd.f32 0.0, %v155
  %v157 = vpop.f32.mrf.mxu0
  %158 = vdwg.mxu0
  %v159 = vadd.f32 %v30, %v145
  %v160 = vadd.f32 %v31, %v148
  %v161 = vadd.f32 %v32, %v153
  %v162 = vadd.f32 %v33, %v156
  %163 = vst [vmem:[#allocation2] sm:$0xff] %v159
  %164 = vst [vmem:[#allocation2 + $0x8] sm:$0xff] %v160
  %165 = vst [vmem:[#allocation2 + $0x10] sm:$0xff] %v161
  %166 = vst [vmem:[#allocation2 + $0x18] sm:$0xff] %v162
  // Predicated region
  $region22: #{mae_decoder_forward.15} parent=0 // pred_check
    %p167 = pneg %p18
  $region23: #{mae_decoder_forward.15} parent=0 // pred_check_branch
    %169 = sbr.rel (%p167) target = $region25
  $region24: #{mae_decoder_forward.15} parent=0 // pred_region
    %v170 = vld [vmem:[#allocation2] sm:$0xff]
    %v171 = vld [vmem:[#allocation2 + $0x8] sm:$0xff]
    %v172 = vld [vmem:[#allocation2 + $0x10] sm:$0xff]
    %v173 = vld [vmem:[#allocation2 + $0x18] sm:$0xff]
    %v174 = vld [vmem:[%s2] sm:$0x1]
    %v176 = vlaneseq
    %v177 = vshrl.u32 %v176, 7
    %v178 = vsub.s32 0, %v177
    %v179 = vrot.slane %v174, %v178
    %v181 = vadd.f32 %v170, %v179
    %v182 = vadd.f32 %v171, %v179
    %v183 = vadd.f32 %v172, %v179
    %v184 = vadd.f32 %v173, %v179
    %v185 = vld [vmem:[%s3] sm:$0xf]
    %v186 = vld [vmem:[%s3 + $0x4] sm:$0xf]
    %v187 = vld [vmem:[%s3 + $0x8] sm:$0xf]
    %v188 = vld [vmem:[%s3 + $0xc] sm:$0xf]
    %v189 = vunpack.c.l.bf16 %v185
    %v190 = vunpack.c.l.bf16 %v186
    %v191 = vunpack.c.l.bf16 %v187
    %v192 = vunpack.c.l.bf16 %v188
    %v193 = vadd.f32 %v181, %v189
    %v194 = vadd.f32 %v182, %v190
    %v195 = vadd.f32 %v183, %v191
    %v196 = vadd.f32 %v184, %v192
    %v197 = vpack.c.bf16 %v194, %v193
    %v198 = vpack.c.bf16 %v196, %v195
    %v201 = vunpack.c.l.b16 %v197
    %v202 = vunpack.c.h.b16 %v197
    %v203 = vunpack.c.l.b16 %v198
    %v204 = vunpack.c.h.b16 %v198
    %v205 = vpack.c.b16 %v201, %v201
    %v206 = vpack.c.b16 %v202, %v202
    %v207 = vpack.c.b16 %v203, %v203
    %v208 = vpack.c.b16 %v204, %v204
    %213 = vst [vmem:[%s4] sm:$0xf] %v205
    %214 = vst [vmem:[%s4 + $0x4] sm:$0xf] %v206
    %215 = vst [vmem:[%s4 + $0x8] sm:$0xf] %v207
    %216 = vst [vmem:[%s4 + $0xc] sm:$0xf] %v208
  $region25: #{mae_decoder_forward.15} parent=0 // pred_fallthru
    _
  // Predicated region
  $region26: #{mae_decoder_forward.15} parent=0 // pred_check
    _
  $region27: #{mae_decoder_forward.15} parent=0 // pred_check_branch
    %218 = sbr.rel (0) target = $region29
  $region28: #{mae_decoder_forward.15} parent=0 // pred_region
    _
  $region29: #{mae_decoder_forward.15} parent=0 // pred_fallthru
    _
  // Predicated region
  $region30: #{mae_decoder_forward.15} parent=0 // pred_check
    _
  $region31: #{mae_decoder_forward.15} parent=0 // pred_check_branch
    %220 = sbr.rel (0) target = $region33
  $region32: #{mae_decoder_forward.15} parent=0 // pred_region
    _
  $region33: #{mae_decoder_forward.15} parent=0 // pred_fallthru
    _

// kernel: mae_decoder_forward.16
$region0: #{mae_decoder_forward.16}
  #allocation0 [shape = 'u32[]', space=smem, size = 0x4, offset = 0x4, fixed_abs, tag = 'smem constant byte address 0x4 - core index']
  #allocation1 [shape = 'u32[144,128]{1,0:T(1,128)}', space=vmem, size = 0x12000, scoped, tag = 'internal scratch']
  #allocation2 [shape = 'f32[32,512]{1,0:T(8,128)}', space=vmem, size = 0x10000, scoped, tag = 'scratch operand']
  %s0 = inlined_call_operand.vmem [shape: bf16[32,128], index: 0, kind: input, shape index: {}]
  %s1 = inlined_call_operand.vmem [shape: f32[1,128], index: 1, kind: input, shape index: {}]
  %s2 = inlined_call_operand.vmem [shape: f32[1,128], index: 2, kind: input, shape index: {}]
  %s3 = inlined_call_operand.vmem [shape: bf16[128,512], index: 3, kind: input, shape index: {}]
  %s4 = inlined_call_operand.vmem [shape: f32[1,512], index: 4, kind: input, shape index: {}]
  %s5 = inlined_call_operand.vmem [shape: bf16[32,512], index: 5, kind: output, shape index: {}]
  %s6 = sld [smem:[#allocation0]]
  $region38: #{mae_decoder_forward.16} parent=0
    _
  %s8 = ssub.s32 1, %s6
  %s9 = scalar_select 0, %s8, %s6
  // Predicated region
  $region2: #{mae_decoder_forward.16} parent=0 // pred_check
    _
  $region3: #{mae_decoder_forward.16} parent=0 // pred_check_branch
    %11 = sbr.rel (0) target = $region5
  $region4: #{mae_decoder_forward.16} parent=0 // pred_region
    _
  $region5: #{mae_decoder_forward.16} parent=0 // pred_fallthru
    _
  // Predicated region
  $region6: #{mae_decoder_forward.16} parent=0 // pred_check
    _
  $region7: #{mae_decoder_forward.16} parent=0 // pred_check_branch
    %13 = sbr.rel (0) target = $region9
  $region8: #{mae_decoder_forward.16} parent=0 // pred_region
    _
  $region9: #{mae_decoder_forward.16} parent=0 // pred_fallthru
    _
  // Predicated region
  $region10: #{mae_decoder_forward.16} parent=0 // pred_check
    _
  $region11: #{mae_decoder_forward.16} parent=0 // pred_check_branch
    %15 = sbr.rel (0) target = $region13
  $region12: #{mae_decoder_forward.16} parent=0 // pred_region
    _
  $region13: #{mae_decoder_forward.16} parent=0 // pred_fallthru
    _
  // Predicated region
  $region14: #{mae_decoder_forward.16} parent=0 // pred_check
    _
  $region15: #{mae_decoder_forward.16} parent=0 // pred_check_branch
    %17 = sbr.rel (0) target = $region17
  $region16: #{mae_decoder_forward.16} parent=0 // pred_region
    _
  $region17: #{mae_decoder_forward.16} parent=0 // pred_fallthru
    _
  // Predicated region
  $region18: #{mae_decoder_forward.16} parent=0 // pred_check
    _
  $region19: #{mae_decoder_forward.16} parent=0 // pred_check_branch
    %19 = sbr.rel (0) target = $region21
  $region20: #{mae_decoder_forward.16} parent=0 // pred_region
    _
  $region21: #{mae_decoder_forward.16} parent=0 // pred_fallthru
    _
  %p21 = scmp.eq.s32.totalorder 0, 0
  // Predicated region
  $region22: #{mae_decoder_forward.16} parent=0 // pred_check
    %p22 = pneg %p21
  $region23: #{mae_decoder_forward.16} parent=0 // pred_check_branch
    %24 = sbr.rel (%p22) target = $region25
  $region24: #{mae_decoder_forward.16} parent=0 // pred_region
    %25 = vst [vmem:[#allocation2] sm:$0xff] 0.0
    %26 = vst [vmem:[#allocation2 + $0x8] sm:$0xff] 0.0
    %27 = vst [vmem:[#allocation2 + $0x10] sm:$0xff] 0.0
    %28 = vst [vmem:[#allocation2 + $0x18] sm:$0xff] 0.0
    %29 = vst [vmem:[#allocation2 + $0x20] sm:$0xff] 0.0
    %30 = vst [vmem:[#allocation2 + $0x28] sm:$0xff] 0.0
    %31 = vst [vmem:[#allocation2 + $0x30] sm:$0xff] 0.0
    %32 = vst [vmem:[#allocation2 + $0x38] sm:$0xff] 0.0
    %33 = vst [vmem:[#allocation2 + $0x40] sm:$0xff] 0.0
    %34 = vst [vmem:[#allocation2 + $0x48] sm:$0xff] 0.0
    %35 = vst [vmem:[#allocation2 + $0x50] sm:$0xff] 0.0
    %36 = vst [vmem:[#allocation2 + $0x58] sm:$0xff] 0.0
    %37 = vst [vmem:[#allocation2 + $0x60] sm:$0xff] 0.0
    %38 = vst [vmem:[#allocation2 + $0x68] sm:$0xff] 0.0
    %39 = vst [vmem:[#allocation2 + $0x70] sm:$0xff] 0.0
    %40 = vst [vmem:[#allocation2 + $0x78] sm:$0xff] 0.0
  $region25: #{mae_decoder_forward.16} parent=0 // pred_fallthru
    _
  %v41 = vld [vmem:[%s0] sm:$0xf]
  %v42 = vld [vmem:[%s0 + $0x4] sm:$0xf]
  %v43 = vld [vmem:[%s0 + $0x8] sm:$0xf]
  %v44 = vld [vmem:[%s0 + $0xc] sm:$0xf]
  %v45 = vunpack.c.l.bf16 %v41
  %v46 = vunpack.c.l.bf16 %v42
  %v47 = vunpack.c.l.bf16 %v43
  %v48 = vunpack.c.l.bf16 %v44
  %v49 = vld [vmem:[%s1] sm:$0x1]
  %v50 = vld [vmem:[%s2] sm:$0x1]
  %51 = vadd.xlane.f32.xlu0 %v45
  %v52 = vpop.xlane.xlu0 %51
  %53 = vadd.xlane.f32.xlu0 %v46
  %v54 = vpop.xlane.xlu0 %53
  %55 = vadd.xlane.f32.xlu0 %v47
  %v56 = vpop.xlane.xlu0 %55
  %57 = vadd.xlane.f32.xlu0 %v48
  %v58 = vpop.xlane.xlu0 %57
  %v59 = vrcp.pop 128.0
  %v60 = vmul.f32 %v52, %v59
  %v61 = vmul.f32 %v54, %v59
  %v62 = vmul.f32 %v56, %v59
  %v63 = vmul.f32 %v58, %v59
  %v64 = vsub.f32 %v45, %v60
  %v65 = vsub.f32 %v46, %v61
  %v66 = vsub.f32 %v47, %v62
  %v67 = vsub.f32 %v48, %v63
  %v68 = vmul.f32 %v64, %v64
  %v69 = vmul.f32 %v65, %v65
  %v70 = vmul.f32 %v66, %v66
  %v71 = vmul.f32 %v67, %v67
  %72 = vadd.xlane.f32.xlu0 %v68
  %v73 = vpop.xlane.xlu0 %72
  %74 = vadd.xlane.f32.xlu0 %v69
  %v75 = vpop.xlane.xlu0 %74
  %76 = vadd.xlane.f32.xlu0 %v70
  %v77 = vpop.xlane.xlu0 %76
  %78 = vadd.xlane.f32.xlu0 %v71
  %v79 = vpop.xlane.xlu0 %78
  %v80 = vmul.f32 %v73, %v59
  %v81 = vmul.f32 %v75, %v59
  %v82 = vmul.f32 %v77, %v59
  %v83 = vmul.f32 %v79, %v59
  %v84 = vadd.f32 %v80, 1e-06
  %v85 = vadd.f32 %v81, 1e-06
  %v86 = vadd.f32 %v82, 1e-06
  %v87 = vadd.f32 %v83, 1e-06
  %v88 = vrsqrt.pop %v84
  %v89 = vrsqrt.pop %v85
  %v90 = vrsqrt.pop %v86
  %v91 = vrsqrt.pop %v87
  %v92 = vmul.f32 %v64, %v88
  %v93 = vmul.f32 %v65, %v89
  %v94 = vmul.f32 %v66, %v90
  %v95 = vmul.f32 %v67, %v91
  %v97 = vlaneseq
  %v98 = vshrl.u32 %v97, 7
  %v99 = vsub.s32 0, %v98
  %v100 = vrot.slane %v49, %v99
  %v102 = vmul.f32 %v92, %v100
  %v103 = vmul.f32 %v93, %v100
  %v104 = vmul.f32 %v94, %v100
  %v105 = vmul.f32 %v95, %v100
  %v107 = vlaneseq
  %v108 = vshrl.u32 %v107, 7
  %v109 = vsub.s32 0, %v108
  %v110 = vrot.slane %v50, %v109
  %v112 = vadd.f32 %v102, %v110
  %v113 = vadd.f32 %v103, %v110
  %v114 = vadd.f32 %v104, %v110
  %v115 = vadd.f32 %v105, %v110
  %v116 = vpack.c.bf16 %v113, %v112
  %v117 = vpack.c.bf16 %v115, %v114
  %v118 = vld [vmem:[#allocation2] sm:$0xff]
  %v119 = vld [vmem:[#allocation2 + $0x8] sm:$0xff]
  %v120 = vld [vmem:[#allocation2 + $0x10] sm:$0xff]
  %v121 = vld [vmem:[#allocation2 + $0x18] sm:$0xff]
  %v122 = vld [vmem:[#allocation2 + $0x20] sm:$0xff]
  %v123 = vld [vmem:[#allocation2 + $0x28] sm:$0xff]
  %v124 = vld [vmem:[#allocation2 + $0x30] sm:$0xff]
  %v125 = vld [vmem:[#allocation2 + $0x38] sm:$0xff]
  %v126 = vld [vmem:[#allocation2 + $0x40] sm:$0xff]
  %v127 = vld [vmem:[#allocation2 + $0x48] sm:$0xff]
  %v128 = vld [vmem:[#allocation2 + $0x50] sm:$0xff]
  %v129 = vld [vmem:[#allocation2 + $0x58] sm:$0xff]
  %v130 = vld [vmem:[#allocation2 + $0x60] sm:$0xff]
  %v131 = vld [vmem:[#allocation2 + $0x68] sm:$0xff]
  %v132 = vld [vmem:[#allocation2 + $0x70] sm:$0xff]
  %v133 = vld [vmem:[#allocation2 + $0x78] sm:$0xff]
  %v134 = vld [vmem:[%s3] sm:$0xff]
  %v135 = vld [vmem:[%s3 + $0x8] sm:$0xff]
  %v136 = vld [vmem:[%s3 + $0x10] sm:$0xff]
  %v137 = vld [vmem:[%s3 + $0x18] sm:$0xff]
  %v138 = vld [vmem:[%s3 + $0x20] sm:$0xff]
  %v139 = vld [vmem:[%s3 + $0x28] sm:$0xff]
  %v140 = vld [vmem:[%s3 + $0x30] sm:$0xff]
  %v141 = vld [vmem:[%s3 + $0x38] sm:$0xff]
  %v142 = vld [vmem:[%s3 + $0x40] sm:$0xff]
  %v143 = vld [vmem:[%s3 + $0x48] sm:$0xff]
  %v144 = vld [vmem:[%s3 + $0x50] sm:$0xff]
  %v145 = vld [vmem:[%s3 + $0x58] sm:$0xff]
  %v146 = vld [vmem:[%s3 + $0x60] sm:$0xff]
  %v147 = vld [vmem:[%s3 + $0x68] sm:$0xff]
  %v148 = vld [vmem:[%s3 + $0x70] sm:$0xff]
  %v149 = vld [vmem:[%s3 + $0x78] sm:$0xff]
  %v150 = vld [vmem:[%s3 + $0x80] sm:$0xff]
  %v151 = vld [vmem:[%s3 + $0x88] sm:$0xff]
  %v152 = vld [vmem:[%s3 + $0x90] sm:$0xff]
  %v153 = vld [vmem:[%s3 + $0x98] sm:$0xff]
  %v154 = vld [vmem:[%s3 + $0xa0] sm:$0xff]
  %v155 = vld [vmem:[%s3 + $0xa8] sm:$0xff]
  %v156 = vld [vmem:[%s3 + $0xb0] sm:$0xff]
  %v157 = vld [vmem:[%s3 + $0xb8] sm:$0xff]
  %v158 = vld [vmem:[%s3 + $0xc0] sm:$0xff]
  %v159 = vld [vmem:[%s3 + $0xc8] sm:$0xff]
  %v160 = vld [vmem:[%s3 + $0xd0] sm:$0xff]
  %v161 = vld [vmem:[%s3 + $0xd8] sm:$0xff]
  %v162 = vld [vmem:[%s3 + $0xe0] sm:$0xff]
  %v163 = vld [vmem:[%s3 + $0xe8] sm:$0xff]
  %v164 = vld [vmem:[%s3 + $0xf0] sm:$0xff]
  %v165 = vld [vmem:[%s3 + $0xf8] sm:$0xff]
  %v198 = vunpack.c.l.b16 %v134
  %v199 = vunpack.c.h.b16 %v134
  %v200 = vunpack.c.l.b16 %v135
  %v201 = vunpack.c.h.b16 %v135
  %v202 = vunpack.c.l.b16 %v136
  %v203 = vunpack.c.h.b16 %v136
  %v204 = vunpack.c.l.b16 %v137
  %v205 = vunpack.c.h.b16 %v137
  %v206 = vunpack.c.l.b16 %v138
  %v207 = vunpack.c.h.b16 %v138
  %v208 = vunpack.c.l.b16 %v139
  %v209 = vunpack.c.h.b16 %v139
  %v210 = vunpack.c.l.b16 %v140
  %v211 = vunpack.c.h.b16 %v140
  %v212 = vunpack.c.l.b16 %v141
  %v213 = vunpack.c.h.b16 %v141
  %v214 = vunpack.c.l.b16 %v142
  %v215 = vunpack.c.h.b16 %v142
  %v216 = vunpack.c.l.b16 %v143
  %v217 = vunpack.c.h.b16 %v143
  %v218 = vunpack.c.l.b16 %v144
  %v219 = vunpack.c.h.b16 %v144
  %v220 = vunpack.c.l.b16 %v145
  %v221 = vunpack.c.h.b16 %v145
  %v222 = vunpack.c.l.b16 %v146
  %v223 = vunpack.c.h.b16 %v146
  %v224 = vunpack.c.l.b16 %v147
  %v225 = vunpack.c.h.b16 %v147
  %v226 = vunpack.c.l.b16 %v148
  %v227 = vunpack.c.h.b16 %v148
  %v228 = vunpack.c.l.b16 %v149
  %v229 = vunpack.c.h.b16 %v149
  %v230 = vunpack.c.l.b16 %v150
  %v231 = vunpack.c.h.b16 %v150
  %v232 = vunpack.c.l.b16 %v151
  %v233 = vunpack.c.h.b16 %v151
  %v234 = vunpack.c.l.b16 %v152
  %v235 = vunpack.c.h.b16 %v152
  %v236 = vunpack.c.l.b16 %v153
  %v237 = vunpack.c.h.b16 %v153
  %v238 = vunpack.c.l.b16 %v154
  %v239 = vunpack.c.h.b16 %v154
  %v240 = vunpack.c.l.b16 %v155
  %v241 = vunpack.c.h.b16 %v155
  %v242 = vunpack.c.l.b16 %v156
  %v243 = vunpack.c.h.b16 %v156
  %v244 = vunpack.c.l.b16 %v157
  %v245 = vunpack.c.h.b16 %v157
  %v246 = vunpack.c.l.b16 %v158
  %v247 = vunpack.c.h.b16 %v158
  %v248 = vunpack.c.l.b16 %v159
  %v249 = vunpack.c.h.b16 %v159
  %v250 = vunpack.c.l.b16 %v160
  %v251 = vunpack.c.h.b16 %v160
  %v252 = vunpack.c.l.b16 %v161
  %v253 = vunpack.c.h.b16 %v161
  %v254 = vunpack.c.l.b16 %v162
  %v255 = vunpack.c.h.b16 %v162
  %v256 = vunpack.c.l.b16 %v163
  %v257 = vunpack.c.h.b16 %v163
  %v258 = vunpack.c.l.b16 %v164
  %v259 = vunpack.c.h.b16 %v164
  %v260 = vunpack.c.l.b16 %v165
  %v261 = vunpack.c.h.b16 %v165
  %v262 = vpack.c.b16 %v202, %v198
  %v263 = vpack.c.b16 %v203, %v199
  %v264 = vpack.c.b16 %v204, %v200
  %v265 = vpack.c.b16 %v205, %v201
  %v266 = vpack.c.b16 %v210, %v206
  %v267 = vpack.c.b16 %v211, %v207
  %v268 = vpack.c.b16 %v212, %v208
  %v269 = vpack.c.b16 %v213, %v209
  %v270 = vpack.c.b16 %v218, %v214
  %v271 = vpack.c.b16 %v219, %v215
  %v272 = vpack.c.b16 %v220, %v216
  %v273 = vpack.c.b16 %v221, %v217
  %v274 = vpack.c.b16 %v226, %v222
  %v275 = vpack.c.b16 %v227, %v223
  %v276 = vpack.c.b16 %v228, %v224
  %v277 = vpack.c.b16 %v229, %v225
  %v278 = vpack.c.b16 %v234, %v230
  %v279 = vpack.c.b16 %v235, %v231
  %v280 = vpack.c.b16 %v236, %v232
  %v281 = vpack.c.b16 %v237, %v233
  %v282 = vpack.c.b16 %v242, %v238
  %v283 = vpack.c.b16 %v243, %v239
  %v284 = vpack.c.b16 %v244, %v240
  %v285 = vpack.c.b16 %v245, %v241
  %v286 = vpack.c.b16 %v250, %v246
  %v287 = vpack.c.b16 %v251, %v247
  %v288 = vpack.c.b16 %v252, %v248
  %v289 = vpack.c.b16 %v253, %v249
  %v290 = vpack.c.b16 %v258, %v254
  %v291 = vpack.c.b16 %v259, %v255
  %v292 = vpack.c.b16 %v260, %v256
  %v293 = vpack.c.b16 %v261, %v257
  %326 = vmatprep.subr.bf16.mxu0 %v291
  %327 = vmatpush1.bf16.msra.mxu0 %v290
  %328 = vmatprep.subr.bf16.mxu0 %v287
  %329 = vmatpush1.bf16.msra.mxu0 %v286
  %330 = vmatprep.subr.bf16.mxu0 %v283
  %331 = vmatpush1.bf16.msra.mxu0 %v282
  %332 = vmatprep.subr.bf16.mxu0 %v279
  %333 = vmatpush1.bf16.msra.mxu0 %v278
  %334 = vmatprep.subr.bf16.mxu0 %v275
  %335 = vmatpush1.bf16.msra.mxu0 %v274
  %336 = vmatprep.subr.bf16.mxu0 %v271
  %337 = vmatpush1.bf16.msra.mxu0 %v270
  %338 = vmatprep.subr.bf16.mxu0 %v267
  %339 = vmatpush1.bf16.msra.mxu0 %v266
  %340 = vmatprep.subr.bf16.mxu0 %v263
  %341 = vmatpush1.bf16.msra.mxu0 %v262
  %342 = vmatprep.subr.bf16.mxu0 0
  %343 = vmatpush2.bf16.msra.mxu0 0
  %344 = vmatprep.subr.bf16.mxu0 0
  %345 = vmatpush2.bf16.msra.mxu0 0
  %346 = vmatprep.subr.bf16.mxu0 0
  %347 = vmatpush2.bf16.msra.mxu0 0
  %348 = vmatprep.subr.bf16.mxu0 0
  %349 = vmatpush2.bf16.msra.mxu0 0
  %350 = vmatprep.subr.bf16.mxu0 0
  %351 = vmatpush2.bf16.msra.mxu0 0
  %352 = vmatprep.subr.bf16.mxu0 0
  %353 = vmatpush2.bf16.msra.mxu0 0
  %354 = vmatprep.subr.bf16.mxu0 0
  %355 = vmatpush2.bf16.msra.mxu0 0
  %356 = vmatprep.subr.bf16.mxu0 0
  %357 = vmatpush2.bf16.msra.mxu0 0
  %358 = vmatprep.mubr.bf16.mxu0 0
  %359 = vmatmul.mubr.bf16.gmra.mxu0 %v116
  %v360 = vpop.f32.mrf.mxu0
  %v361 = vadd.f32 0.0, %v360
  %v362 = vpop.f32.mrf.mxu0
  %v363 = vadd.f32 0.0, %v362
  %v364 = vpop.f32.mrf.mxu0
  %v365 = vadd.f32 0.0, %v364
  %v366 = vpop.f32.mrf.mxu0
  %v367 = vadd.f32 0.0, %v366
  %368 = vmatprep.mubr.bf16.mxu0 0
  %369 = vmatmul.mubr.bf16.gmra.mxu0 %v117
  %v370 = vpop.f32.mrf.mxu0
  %v371 = vadd.f32 0.0, %v370
  %v372 = vpop.f32.mrf.mxu0
  %v373 = vadd.f32 0.0, %v372
  %v374 = vpop.f32.mrf.mxu0
  %v375 = vadd.f32 0.0, %v374
  %v376 = vpop.f32.mrf.mxu0
  %v377 = vadd.f32 0.0, %v376
  %378 = vdwg.mxu0
  %379 = vmatprep.subr.bf16.mxu0 %v293
  %380 = vmatpush1.bf16.msra.mxu0 %v292
  %381 = vmatprep.subr.bf16.mxu0 %v289
  %382 = vmatpush1.bf16.msra.mxu0 %v288
  %383 = vmatprep.subr.bf16.mxu0 %v285
  %384 = vmatpush1.bf16.msra.mxu0 %v284
  %385 = vmatprep.subr.bf16.mxu0 %v281
  %386 = vmatpush1.bf16.msra.mxu0 %v280
  %387 = vmatprep.subr.bf16.mxu0 %v277
  %388 = vmatpush1.bf16.msra.mxu0 %v276
  %389 = vmatprep.subr.bf16.mxu0 %v273
  %390 = vmatpush1.bf16.msra.mxu0 %v272
  %391 = vmatprep.subr.bf16.mxu0 %v269
  %392 = vmatpush1.bf16.msra.mxu0 %v268
  %393 = vmatprep.subr.bf16.mxu0 %v265
  %394 = vmatpush1.bf16.msra.mxu0 %v264
  %395 = vmatprep.subr.bf16.mxu0 0
  %396 = vmatpush2.bf16.msra.mxu0 0
  %397 = vmatprep.subr.bf16.mxu0 0
  %398 = vmatpush2.bf16.msra.mxu0 0
  %399 = vmatprep.subr.bf16.mxu0 0
  %400 = vmatpush2.bf16.msra.mxu0 0
  %401 = vmatprep.subr.bf16.mxu0 0
  %402 = vmatpush2.bf16.msra.mxu0 0
  %403 = vmatprep.subr.bf16.mxu0 0
  %404 = vmatpush2.bf16.msra.mxu0 0
  %405 = vmatprep.subr.bf16.mxu0 0
  %406 = vmatpush2.bf16.msra.mxu0 0
  %407 = vmatprep.subr.bf16.mxu0 0
  %408 = vmatpush2.bf16.msra.mxu0 0
  %409 = vmatprep.subr.bf16.mxu0 0
  %410 = vmatpush2.bf16.msra.mxu0 0
  %411 = vmatprep.mubr.bf16.mxu0 0
  %412 = vmatmul.mubr.bf16.gmra.mxu0 %v116
  %v413 = vpop.f32.mrf.mxu0
  %v414 = vadd.f32 0.0, %v413
  %v415 = vpop.f32.mrf.mxu0
  %v416 = vadd.f32 0.0, %v415
  %v417 = vpop.f32.mrf.mxu0
  %v418 = vadd.f32 0.0, %v417
  %v419 = vpop.f32.mrf.mxu0
  %v420 = vadd.f32 0.0, %v419
  %421 = vmatprep.mubr.bf16.mxu0 0
  %422 = vmatmul.mubr.bf16.gmra.mxu0 %v117
  %v423 = vpop.f32.mrf.mxu0
  %v424 = vadd.f32 0.0, %v423
  %v425 = vpop.f32.mrf.mxu0
  %v426 = vadd.f32 0.0, %v425
  %v427 = vpop.f32.mrf.mxu0
  %v428 = vadd.f32 0.0, %v427
  %v429 = vpop.f32.mrf.mxu0
  %v430 = vadd.f32 0.0, %v429
  %431 = vdwg.mxu0
  %v432 = vadd.f32 %v118, %v361
  %v433 = vadd.f32 %v119, %v363
  %v434 = vadd.f32 %v120, %v414
  %v435 = vadd.f32 %v121, %v416
  %v436 = vadd.f32 %v122, %v365
  %v437 = vadd.f32 %v123, %v367
  %v438 = vadd.f32 %v124, %v418
  %v439 = vadd.f32 %v125, %v420
  %v440 = vadd.f32 %v126, %v371
  %v441 = vadd.f32 %v127, %v373
  %v442 = vadd.f32 %v128, %v424
  %v443 = vadd.f32 %v129, %v426
  %v444 = vadd.f32 %v130, %v375
  %v445 = vadd.f32 %v131, %v377
  %v446 = vadd.f32 %v132, %v428
  %v447 = vadd.f32 %v133, %v430
  %448 = vst [vmem:[#allocation2] sm:$0xff] %v432
  %449 = vst [vmem:[#allocation2 + $0x8] sm:$0xff] %v433
  %450 = vst [vmem:[#allocation2 + $0x10] sm:$0xff] %v434
  %451 = vst [vmem:[#allocation2 + $0x18] sm:$0xff] %v435
  %452 = vst [vmem:[#allocation2 + $0x20] sm:$0xff] %v436
  %453 = vst [vmem:[#allocation2 + $0x28] sm:$0xff] %v437
  %454 = vst [vmem:[#allocation2 + $0x30] sm:$0xff] %v438
  %455 = vst [vmem:[#allocation2 + $0x38] sm:$0xff] %v439
  %456 = vst [vmem:[#allocation2 + $0x40] sm:$0xff] %v440
  %457 = vst [vmem:[#allocation2 + $0x48] sm:$0xff] %v441
  %458 = vst [vmem:[#allocation2 + $0x50] sm:$0xff] %v442
  %459 = vst [vmem:[#allocation2 + $0x58] sm:$0xff] %v443
  %460 = vst [vmem:[#allocation2 + $0x60] sm:$0xff] %v444
  %461 = vst [vmem:[#allocation2 + $0x68] sm:$0xff] %v445
  %462 = vst [vmem:[#allocation2 + $0x70] sm:$0xff] %v446
  %463 = vst [vmem:[#allocation2 + $0x78] sm:$0xff] %v447
  // Predicated region
  $region26: #{mae_decoder_forward.16} parent=0 // pred_check
    %p464 = pneg %p21
  $region27: #{mae_decoder_forward.16} parent=0 // pred_check_branch
    %466 = sbr.rel (%p464) target = $region29
  $region28: #{mae_decoder_forward.16} parent=0 // pred_region
    %v467 = vld [vmem:[#allocation2] sm:$0xff]
    %v468 = vld [vmem:[#allocation2 + $0x8] sm:$0xff]
    %v469 = vld [vmem:[#allocation2 + $0x10] sm:$0xff]
    %v470 = vld [vmem:[#allocation2 + $0x18] sm:$0xff]
    %v471 = vld [vmem:[#allocation2 + $0x20] sm:$0xff]
    %v472 = vld [vmem:[#allocation2 + $0x28] sm:$0xff]
    %v473 = vld [vmem:[#allocation2 + $0x30] sm:$0xff]
    %v474 = vld [vmem:[#allocation2 + $0x38] sm:$0xff]
    %v475 = vld [vmem:[#allocation2 + $0x40] sm:$0xff]
    %v476 = vld [vmem:[#allocation2 + $0x48] sm:$0xff]
    %v477 = vld [vmem:[#allocation2 + $0x50] sm:$0xff]
    %v478 = vld [vmem:[#allocation2 + $0x58] sm:$0xff]
    %v479 = vld [vmem:[#allocation2 + $0x60] sm:$0xff]
    %v480 = vld [vmem:[#allocation2 + $0x68] sm:$0xff]
    %v481 = vld [vmem:[#allocation2 + $0x70] sm:$0xff]
    %v482 = vld [vmem:[#allocation2 + $0x78] sm:$0xff]
    %v483 = vld [vmem:[%s4] sm:$0xf]
    %v485 = vlaneseq
    %v486 = vshrl.u32 %v485, 7
    %v487 = vsub.s32 0, %v486
    %v488 = vrot.slane %v483, %v487
    %v489 = vlaneseq
    %v490 = vshrl.u32 %v489, 7
    %v491 = vsub.s32 1, %v490
    %v492 = vrot.slane %v483, %v491
    %v493 = vlaneseq
    %v494 = vshrl.u32 %v493, 7
    %v495 = vsub.s32 2, %v494
    %v496 = vrot.slane %v483, %v495
    %v497 = vlaneseq
    %v498 = vshrl.u32 %v497, 7
    %v499 = vsub.s32 3, %v498
    %v500 = vrot.slane %v483, %v499
    %v505 = vadd.f32 %v467, %v488
    %v506 = vadd.f32 %v468, %v492
    %v507 = vadd.f32 %v469, %v496
    %v508 = vadd.f32 %v470, %v500
    %v509 = vadd.f32 %v471, %v488
    %v510 = vadd.f32 %v472, %v492
    %v511 = vadd.f32 %v473, %v496
    %v512 = vadd.f32 %v474, %v500
    %v513 = vadd.f32 %v475, %v488
    %v514 = vadd.f32 %v476, %v492
    %v515 = vadd.f32 %v477, %v496
    %v516 = vadd.f32 %v478, %v500
    %v517 = vadd.f32 %v479, %v488
    %v518 = vadd.f32 %v480, %v492
    %v519 = vadd.f32 %v481, %v496
    %v520 = vadd.f32 %v482, %v500
    %v521 = vmul.f32 %v505, 0.5
    %v522 = vmul.f32 %v506, 0.5
    %v523 = vmul.f32 %v507, 0.5
    %v524 = vmul.f32 %v508, 0.5
    %v525 = vmul.f32 %v509, 0.5
    %v526 = vmul.f32 %v510, 0.5
    %v527 = vmul.f32 %v511, 0.5
    %v528 = vmul.f32 %v512, 0.5
    %v529 = vmul.f32 %v513, 0.5
    %v530 = vmul.f32 %v514, 0.5
    %v531 = vmul.f32 %v515, 0.5
    %v532 = vmul.f32 %v516, 0.5
    %v533 = vmul.f32 %v517, 0.5
    %v534 = vmul.f32 %v518, 0.5
    %v535 = vmul.f32 %v519, 0.5
    %v536 = vmul.f32 %v520, 0.5
    %v537 = vmul.f32 %v505, 0.70710677
    %v538 = vmul.f32 %v506, 0.70710677
    %v539 = vmul.f32 %v507, 0.70710677
    %v540 = vmul.f32 %v508, 0.70710677
    %v541 = vmul.f32 %v509, 0.70710677
    %v542 = vmul.f32 %v510, 0.70710677
    %v543 = vmul.f32 %v511, 0.70710677
    %v544 = vmul.f32 %v512, 0.70710677
    %v545 = vmul.f32 %v513, 0.70710677
    %v546 = vmul.f32 %v514, 0.70710677
    %v547 = vmul.f32 %v515, 0.70710677
    %v548 = vmul.f32 %v516, 0.70710677
    %v549 = vmul.f32 %v517, 0.70710677
    %v550 = vmul.f32 %v518, 0.70710677
    %v551 = vmul.f32 %v519, 0.70710677
    %v552 = vmul.f32 %v520, 0.70710677
    %v553 = vand.u32 2147483647, %v537
    %v554 = vand.u32 2147483647, %v538
    %v555 = vand.u32 2147483647, %v539
    %v556 = vand.u32 2147483647, %v540
    %v557 = vand.u32 2147483647, %v541
    %v558 = vand.u32 2147483647, %v542
    %v559 = vand.u32 2147483647, %v543
    %v560 = vand.u32 2147483647, %v544
    %v561 = vand.u32 2147483647, %v545
    %v562 = vand.u32 2147483647, %v546
    %v563 = vand.u32 2147483647, %v547
    %v564 = vand.u32 2147483647, %v548
    %v565 = vand.u32 2147483647, %v549
    %v566 = vand.u32 2147483647, %v550
    %v567 = vand.u32 2147483647, %v551
    %v568 = vand.u32 2147483647, %v552
    %v569 = vmul.f32 %v553, 0.3275911
    %v570 = vmul.f32 %v554, 0.3275911
    %v571 = vmul.f32 %v555, 0.3275911
    %v572 = vmul.f32 %v556, 0.3275911
    %v573 = vmul.f32 %v557, 0.3275911
    %v574 = vmul.f32 %v558, 0.3275911
    %v575 = vmul.f32 %v559, 0.3275911
    %v576 = vmul.f32 %v560, 0.3275911
    %v577 = vmul.f32 %v561, 0.3275911
    %v578 = vmul.f32 %v562, 0.3275911
    %v579 = vmul.f32 %v563, 0.3275911
    %v580 = vmul.f32 %v564, 0.3275911
    %v581 = vmul.f32 %v565, 0.3275911
    %v582 = vmul.f32 %v566, 0.3275911
    %v583 = vmul.f32 %v567, 0.3275911
    %v584 = vmul.f32 %v568, 0.3275911
    %v585 = vadd.f32 %v569, 1.0
    %v586 = vadd.f32 %v570, 1.0
    %v587 = vadd.f32 %v571, 1.0
    %v588 = vadd.f32 %v572, 1.0
    %v589 = vadd.f32 %v573, 1.0
    %v590 = vadd.f32 %v574, 1.0
    %v591 = vadd.f32 %v575, 1.0
    %v592 = vadd.f32 %v576, 1.0
    %v593 = vadd.f32 %v577, 1.0
    %v594 = vadd.f32 %v578, 1.0
    %v595 = vadd.f32 %v579, 1.0
    %v596 = vadd.f32 %v580, 1.0
    %v597 = vadd.f32 %v581, 1.0
    %v598 = vadd.f32 %v582, 1.0
    %v599 = vadd.f32 %v583, 1.0
    %v600 = vadd.f32 %v584, 1.0
    %v601 = vrcp.pop %v585
    %v602 = vmul.f32 1.0, %v601
    %v603 = vrcp.pop %v586
    %v604 = vmul.f32 1.0, %v603
    %v605 = vrcp.pop %v587
    %v606 = vmul.f32 1.0, %v605
    %v607 = vrcp.pop %v588
    %v608 = vmul.f32 1.0, %v607
    %v609 = vrcp.pop %v589
    %v610 = vmul.f32 1.0, %v609
    %v611 = vrcp.pop %v590
    %v612 = vmul.f32 1.0, %v611
    %v613 = vrcp.pop %v591
    %v614 = vmul.f32 1.0, %v613
    %v615 = vrcp.pop %v592
    %v616 = vmul.f32 1.0, %v615
    %v617 = vrcp.pop %v593
    %v618 = vmul.f32 1.0, %v617
    %v619 = vrcp.pop %v594
    %v620 = vmul.f32 1.0, %v619
    %v621 = vrcp.pop %v595
    %v622 = vmul.f32 1.0, %v621
    %v623 = vrcp.pop %v596
    %v624 = vmul.f32 1.0, %v623
    %v625 = vrcp.pop %v597
    %v626 = vmul.f32 1.0, %v625
    %v627 = vrcp.pop %v598
    %v628 = vmul.f32 1.0, %v627
    %v629 = vrcp.pop %v599
    %v630 = vmul.f32 1.0, %v629
    %v631 = vrcp.pop %v600
    %v632 = vmul.f32 1.0, %v631
    %v633 = vmul.f32 %v602, 1.0614054
    %v634 = vmul.f32 %v604, 1.0614054
    %v635 = vmul.f32 %v606, 1.0614054
    %v636 = vmul.f32 %v608, 1.0614054
    %v637 = vmul.f32 %v610, 1.0614054
    %v638 = vmul.f32 %v612, 1.0614054
    %v639 = vmul.f32 %v614, 1.0614054
    %v640 = vmul.f32 %v616, 1.0614054
    %v641 = vmul.f32 %v618, 1.0614054
    %v642 = vmul.f32 %v620, 1.0614054
    %v643 = vmul.f32 %v622, 1.0614054
    %v644 = vmul.f32 %v624, 1.0614054
    %v645 = vmul.f32 %v626, 1.0614054
    %v646 = vmul.f32 %v628, 1.0614054
    %v647 = vmul.f32 %v630, 1.0614054
    %v648 = vmul.f32 %v632, 1.0614054
    %v649 = vadd.f32 %v633, -1.4531521
    %v650 = vadd.f32 %v634, -1.4531521
    %v651 = vadd.f32 %v635, -1.4531521
    %v652 = vadd.f32 %v636, -1.4531521
    %v653 = vadd.f32 %v637, -1.4531521
    %v654 = vadd.f32 %v638, -1.4531521
    %v655 = vadd.f32 %v639, -1.4531521
    %v656 = vadd.f32 %v640, -1.4531521
    %v657 = vadd.f32 %v641, -1.4531521
    %v658 = vadd.f32 %v642, -1.4531521
    %v659 = vadd.f32 %v643, -1.4531521
    %v660 = vadd.f32 %v644, -1.4531521
    %v661 = vadd.f32 %v645, -1.4531521
    %v662 = vadd.f32 %v646, -1.4531521
    %v663 = vadd.f32 %v647, -1.4531521
    %v664 = vadd.f32 %v648, -1.4531521
    %v665 = vmul.f32 %v649, %v602
    %v666 = vmul.f32 %v650, %v604
    %v667 = vmul.f32 %v651, %v606
    %v668 = vmul.f32 %v652, %v608
    %v669 = vmul.f32 %v653, %v610
    %v670 = vmul.f32 %v654, %v612
    %v671 = vmul.f32 %v655, %v614
    %v672 = vmul.f32 %v656, %v616
    %v673 = vmul.f32 %v657, %v618
    %v674 = vmul.f32 %v658, %v620
    %v675 = vmul.f32 %v659, %v622
    %v676 = vmul.f32 %v660, %v624
    %v677 = vmul.f32 %v661, %v626
    %v678 = vmul.f32 %v662, %v628
    %v679 = vmul.f32 %v663, %v630
    %v680 = vmul.f32 %v664, %v632
    %v681 = vadd.f32 %v665, 1.4214138
    %v682 = vadd.f32 %v666, 1.4214138
    %v683 = vadd.f32 %v667, 1.4214138
    %v684 = vadd.f32 %v668, 1.4214138
    %v685 = vadd.f32 %v669, 1.4214138
    %v686 = vadd.f32 %v670, 1.4214138
    %v687 = vadd.f32 %v671, 1.4214138
    %v688 = vadd.f32 %v672, 1.4214138
    %v689 = vadd.f32 %v673, 1.4214138
    %v690 = vadd.f32 %v674, 1.4214138
    %v691 = vadd.f32 %v675, 1.4214138
    %v692 = vadd.f32 %v676, 1.4214138
    %v693 = vadd.f32 %v677, 1.4214138
    %v694 = vadd.f32 %v678, 1.4214138
    %v695 = vadd.f32 %v679, 1.4214138
    %v696 = vadd.f32 %v680, 1.4214138
    %v697 = vmul.f32 %v681, %v602
    %v698 = vmul.f32 %v682, %v604
    %v699 = vmul.f32 %v683, %v606
    %v700 = vmul.f32 %v684, %v608
    %v701 = vmul.f32 %v685, %v610
    %v702 = vmul.f32 %v686, %v612
    %v703 = vmul.f32 %v687, %v614
    %v704 = vmul.f32 %v688, %v616
    %v705 = vmul.f32 %v689, %v618
    %v706 = vmul.f32 %v690, %v620
    %v707 = vmul.f32 %v691, %v622
    %v708 = vmul.f32 %v692, %v624
    %v709 = vmul.f32 %v693, %v626
    %v710 = vmul.f32 %v694, %v628
    %v711 = vmul.f32 %v695, %v630
    %v712 = vmul.f32 %v696, %v632
    %v713 = vadd.f32 %v697, -0.28449672
    %v714 = vadd.f32 %v698, -0.28449672
    %v715 = vadd.f32 %v699, -0.28449672
    %v716 = vadd.f32 %v700, -0.28449672
    %v717 = vadd.f32 %v701, -0.28449672
    %v718 = vadd.f32 %v702, -0.28449672
    %v719 = vadd.f32 %v703, -0.28449672
    %v720 = vadd.f32 %v704, -0.28449672
    %v721 = vadd.f32 %v705, -0.28449672
    %v722 = vadd.f32 %v706, -0.28449672
    %v723 = vadd.f32 %v707, -0.28449672
    %v724 = vadd.f32 %v708, -0.28449672
    %v725 = vadd.f32 %v709, -0.28449672
    %v726 = vadd.f32 %v710, -0.28449672
    %v727 = vadd.f32 %v711, -0.28449672
    %v728 = vadd.f32 %v712, -0.28449672
    %v729 = vmul.f32 %v713, %v602
    %v730 = vmul.f32 %v714, %v604
    %v731 = vmul.f32 %v715, %v606
    %v732 = vmul.f32 %v716, %v608
    %v733 = vmul.f32 %v717, %v610
    %v734 = vmul.f32 %v718, %v612
    %v735 = vmul.f32 %v719, %v614
    %v736 = vmul.f32 %v720, %v616
    %v737 = vmul.f32 %v721, %v618
    %v738 = vmul.f32 %v722, %v620
    %v739 = vmul.f32 %v723, %v622
    %v740 = vmul.f32 %v724, %v624
    %v741 = vmul.f32 %v725, %v626
    %v742 = vmul.f32 %v726, %v628
    %v743 = vmul.f32 %v727, %v630
    %v744 = vmul.f32 %v728, %v632
    %v745 = vadd.f32 %v729, 0.2548296
    %v746 = vadd.f32 %v730, 0.2548296
    %v747 = vadd.f32 %v731, 0.2548296
    %v748 = vadd.f32 %v732, 0.2548296
    %v749 = vadd.f32 %v733, 0.2548296
    %v750 = vadd.f32 %v734, 0.2548296
    %v751 = vadd.f32 %v735, 0.2548296
    %v752 = vadd.f32 %v736, 0.2548296
    %v753 = vadd.f32 %v737, 0.2548296
    %v754 = vadd.f32 %v738, 0.2548296
    %v755 = vadd.f32 %v739, 0.2548296
    %v756 = vadd.f32 %v740, 0.2548296
    %v757 = vadd.f32 %v741, 0.2548296
    %v758 = vadd.f32 %v742, 0.2548296
    %v759 = vadd.f32 %v743, 0.2548296
    %v760 = vadd.f32 %v744, 0.2548296
    %v761 = vmul.f32 %v745, %v602
    %v762 = vmul.f32 %v746, %v604
    %v763 = vmul.f32 %v747, %v606
    %v764 = vmul.f32 %v748, %v608
    %v765 = vmul.f32 %v749, %v610
    %v766 = vmul.f32 %v750, %v612
    %v767 = vmul.f32 %v751, %v614
    %v768 = vmul.f32 %v752, %v616
    %v769 = vmul.f32 %v753, %v618
    %v770 = vmul.f32 %v754, %v620
    %v771 = vmul.f32 %v755, %v622
    %v772 = vmul.f32 %v756, %v624
    %v773 = vmul.f32 %v757, %v626
    %v774 = vmul.f32 %v758, %v628
    %v775 = vmul.f32 %v759, %v630
    %v776 = vmul.f32 %v760, %v632
    %v777 = vmul.f32 %v553, %v553
    %v778 = vmul.f32 %v554, %v554
    %v779 = vmul.f32 %v555, %v555
    %v780 = vmul.f32 %v556, %v556
    %v781 = vmul.f32 %v557, %v557
    %v782 = vmul.f32 %v558, %v558
    %v783 = vmul.f32 %v559, %v559
    %v784 = vmul.f32 %v560, %v560
    %v785 = vmul.f32 %v561, %v561
    %v786 = vmul.f32 %v562, %v562
    %v787 = vmul.f32 %v563, %v563
    %v788 = vmul.f32 %v564, %v564
    %v789 = vmul.f32 %v565, %v565
    %v790 = vmul.f32 %v566, %v566
    %v791 = vmul.f32 %v567, %v567
    %v792 = vmul.f32 %v568, %v568
    %v793 = vsub.f32 0.0, %v777
    %v794 = vsub.f32 0.0, %v778
    %v795 = vsub.f32 0.0, %v779
    %v796 = vsub.f32 0.0, %v780
    %v797 = vsub.f32 0.0, %v781
    %v798 = vsub.f32 0.0, %v782
    %v799 = vsub.f32 0.0, %v783
    %v800 = vsub.f32 0.0, %v784
    %v801 = vsub.f32 0.0, %v785
    %v802 = vsub.f32 0.0, %v786
    %v803 = vsub.f32 0.0, %v787
    %v804 = vsub.f32 0.0, %v788
    %v805 = vsub.f32 0.0, %v789
    %v806 = vsub.f32 0.0, %v790
    %v807 = vsub.f32 0.0, %v791
    %v808 = vsub.f32 0.0, %v792
    %v809 = vmul.f32 %v793, 1.442695
    %v810 = vpow.pop %v809
    %v811 = vmul.f32 %v794, 1.442695
    %v812 = vpow.pop %v811
    %v813 = vmul.f32 %v795, 1.442695
    %v814 = vpow.pop %v813
    %v815 = vmul.f32 %v796, 1.442695
    %v816 = vpow.pop %v815
    %v817 = vmul.f32 %v797, 1.442695
    %v818 = vpow.pop %v817
    %v819 = vmul.f32 %v798, 1.442695
    %v820 = vpow.pop %v819
    %v821 = vmul.f32 %v799, 1.442695
    %v822 = vpow.pop %v821
    %v823 = vmul.f32 %v800, 1.442695
    %v824 = vpow.pop %v823
    %v825 = vmul.f32 %v801, 1.442695
    %v826 = vpow.pop %v825
    %v827 = vmul.f32 %v802, 1.442695
    %v828 = vpow.pop %v827
    %v829 = vmul.f32 %v803, 1.442695
    %v830 = vpow.pop %v829
    %v831 = vmul.f32 %v804, 1.442695
    %v832 = vpow.pop %v831
    %v833 = vmul.f32 %v805, 1.442695
    %v834 = vpow.pop %v833
    %v835 = vmul.f32 %v806, 1.442695
    %v836 = vpow.pop %v835
    %v837 = vmul.f32 %v807, 1.442695
    %v838 = vpow.pop %v837
    %v839 = vmul.f32 %v808, 1.442695
    %v840 = vpow.pop %v839
    %v841 = vmul.f32 %v761, %v810
    %v842 = vmul.f32 %v762, %v812
    %v843 = vmul.f32 %v763, %v814
    %v844 = vmul.f32 %v764, %v816
    %v845 = vmul.f32 %v765, %v818
    %v846 = vmul.f32 %v766, %v820
    %v847 = vmul.f32 %v767, %v822
    %v848 = vmul.f32 %v768, %v824
    %v849 = vmul.f32 %v769, %v826
    %v850 = vmul.f32 %v770, %v828
    %v851 = vmul.f32 %v771, %v830
    %v852 = vmul.f32 %v772, %v832
    %v853 = vmul.f32 %v773, %v834
    %v854 = vmul.f32 %v774, %v836
    %v855 = vmul.f32 %v775, %v838
    %v856 = vmul.f32 %v776, %v840
    %v857 = vsub.f32 1.0, %v841
    %v858 = vsub.f32 1.0, %v842
    %v859 = vsub.f32 1.0, %v843
    %v860 = vsub.f32 1.0, %v844
    %v861 = vsub.f32 1.0, %v845
    %v862 = vsub.f32 1.0, %v846
    %v863 = vsub.f32 1.0, %v847
    %v864 = vsub.f32 1.0, %v848
    %v865 = vsub.f32 1.0, %v849
    %v866 = vsub.f32 1.0, %v850
    %v867 = vsub.f32 1.0, %v851
    %v868 = vsub.f32 1.0, %v852
    %v869 = vsub.f32 1.0, %v853
    %v870 = vsub.f32 1.0, %v854
    %v871 = vsub.f32 1.0, %v855
    %v872 = vsub.f32 1.0, %v856
    %vm873 = vcmp.lt.f32.partialorder %v537, 0.0
    %vm874 = vcmp.lt.f32.partialorder %v538, 0.0
    %vm875 = vcmp.lt.f32.partialorder %v539, 0.0
    %vm876 = vcmp.lt.f32.partialorder %v540, 0.0
    %vm877 = vcmp.lt.f32.partialorder %v541, 0.0
    %vm878 = vcmp.lt.f32.partialorder %v542, 0.0
    %vm879 = vcmp.lt.f32.partialorder %v543, 0.0
    %vm880 = vcmp.lt.f32.partialorder %v544, 0.0
    %vm881 = vcmp.lt.f32.partialorder %v545, 0.0
    %vm882 = vcmp.lt.f32.partialorder %v546, 0.0
    %vm883 = vcmp.lt.f32.partialorder %v547, 0.0
    %vm884 = vcmp.lt.f32.partialorder %v548, 0.0
    %vm885 = vcmp.lt.f32.partialorder %v549, 0.0
    %vm886 = vcmp.lt.f32.partialorder %v550, 0.0
    %vm887 = vcmp.lt.f32.partialorder %v551, 0.0
    %vm888 = vcmp.lt.f32.partialorder %v552, 0.0
    %v889 = vsub.f32 0.0, %v857
    %v890 = vsub.f32 0.0, %v858
    %v891 = vsub.f32 0.0, %v859
    %v892 = vsub.f32 0.0, %v860
    %v893 = vsub.f32 0.0, %v861
    %v894 = vsub.f32 0.0, %v862
    %v895 = vsub.f32 0.0, %v863
    %v896 = vsub.f32 0.0, %v864
    %v897 = vsub.f32 0.0, %v865
    %v898 = vsub.f32 0.0, %v866
    %v899 = vsub.f32 0.0, %v867
    %v900 = vsub.f32 0.0, %v868
    %v901 = vsub.f32 0.0, %v869
    %v902 = vsub.f32 0.0, %v870
    %v903 = vsub.f32 0.0, %v871
    %v904 = vsub.f32 0.0, %v872
    %v905 = vsel %vm873, %v889, %v857
    %v906 = vsel %vm874, %v890, %v858
    %v907 = vsel %vm875, %v891, %v859
    %v908 = vsel %vm876, %v892, %v860
    %v909 = vsel %vm877, %v893, %v861
    %v910 = vsel %vm878, %v894, %v862
    %v911 = vsel %vm879, %v895, %v863
    %v912 = vsel %vm880, %v896, %v864
    %v913 = vsel %vm881, %v897, %v865
    %v914 = vsel %vm882, %v898, %v866
    %v915 = vsel %vm883, %v899, %v867
    %v916 = vsel %vm884, %v900, %v868
    %v917 = vsel %vm885, %v901, %v869
    %v918 = vsel %vm886, %v902, %v870
    %v919 = vsel %vm887, %v903, %v871
    %v920 = vsel %vm888, %v904, %v872
    %v921 = vadd.f32 %v905, 1.0
    %v922 = vadd.f32 %v906, 1.0
    %v923 = vadd.f32 %v907, 1.0
    %v924 = vadd.f32 %v908, 1.0
    %v925 = vadd.f32 %v909, 1.0
    %v926 = vadd.f32 %v910, 1.0
    %v927 = vadd.f32 %v911, 1.0
    %v928 = vadd.f32 %v912, 1.0
    %v929 = vadd.f32 %v913, 1.0
    %v930 = vadd.f32 %v914, 1.0
    %v931 = vadd.f32 %v915, 1.0
    %v932 = vadd.f32 %v916, 1.0
    %v933 = vadd.f32 %v917, 1.0
    %v934 = vadd.f32 %v918, 1.0
    %v935 = vadd.f32 %v919, 1.0
    %v936 = vadd.f32 %v920, 1.0
    %v937 = vmul.f32 %v521, %v921
    %v938 = vmul.f32 %v522, %v922
    %v939 = vmul.f32 %v523, %v923
    %v940 = vmul.f32 %v524, %v924
    %v941 = vmul.f32 %v525, %v925
    %v942 = vmul.f32 %v526, %v926
    %v943 = vmul.f32 %v527, %v927
    %v944 = vmul.f32 %v528, %v928
    %v945 = vmul.f32 %v529, %v929
    %v946 = vmul.f32 %v530, %v930
    %v947 = vmul.f32 %v531, %v931
    %v948 = vmul.f32 %v532, %v932
    %v949 = vmul.f32 %v533, %v933
    %v950 = vmul.f32 %v534, %v934
    %v951 = vmul.f32 %v535, %v935
    %v952 = vmul.f32 %v536, %v936
    %v953 = vpack.c.bf16 %v941, %v937
    %v954 = vpack.c.bf16 %v942, %v938
    %v955 = vpack.c.bf16 %v943, %v939
    %v956 = vpack.c.bf16 %v944, %v940
    %v957 = vpack.c.bf16 %v949, %v945
    %v958 = vpack.c.bf16 %v950, %v946
    %v959 = vpack.c.bf16 %v951, %v947
    %v960 = vpack.c.bf16 %v952, %v948
    %v969 = vunpack.c.l.b16 %v953
    %v970 = vunpack.c.l.b16 %v954
    %v971 = vunpack.c.l.b16 %v955
    %v972 = vunpack.c.l.b16 %v956
    %v973 = vunpack.c.h.b16 %v953
    %v974 = vunpack.c.h.b16 %v954
    %v975 = vunpack.c.h.b16 %v955
    %v976 = vunpack.c.h.b16 %v956
    %v977 = vunpack.c.l.b16 %v957
    %v978 = vunpack.c.l.b16 %v958
    %v979 = vunpack.c.l.b16 %v959
    %v980 = vunpack.c.l.b16 %v960
    %v981 = vunpack.c.h.b16 %v957
    %v982 = vunpack.c.h.b16 %v958
    %v983 = vunpack.c.h.b16 %v959
    %v984 = vunpack.c.h.b16 %v960
    %v985 = vpack.c.b16 %v970, %v969
    %v986 = vpack.c.b16 %v972, %v971
    %v987 = vpack.c.b16 %v974, %v973
    %v988 = vpack.c.b16 %v976, %v975
    %v989 = vpack.c.b16 %v978, %v977
    %v990 = vpack.c.b16 %v980, %v979
    %v991 = vpack.c.b16 %v982, %v981
    %v992 = vpack.c.b16 %v984, %v983
    %1001 = vst [vmem:[%s5] sm:$0xff] %v985
    %1002 = vst [vmem:[%s5 + $0x8] sm:$0xff] %v986
    %1003 = vst [vmem:[%s5 + $0x10] sm:$0xff] %v987
    %1004 = vst [vmem:[%s5 + $0x18] sm:$0xff] %v988
    %1005 = vst [vmem:[%s5 + $0x20] sm:$0xff] %v989
    %1006 = vst [vmem:[%s5 + $0x28] sm:$0xff] %v990
    %1007 = vst [vmem:[%s5 + $0x30] sm:$0xff] %v991
    %1008 = vst [vmem:[%s5 + $0x38] sm:$0xff] %v992
  $region29: #{mae_decoder_forward.16} parent=0 // pred_fallthru
    _
  // Predicated region
  $region30: #{mae_decoder_forward.16} parent=0 // pred_check
    _
  $region31: #{mae_decoder_forward.16} parent=0 // pred_check_branch
    %1010 = sbr.rel (0) target = $region33
  $region32: #{mae_decoder_forward.16} parent=0 // pred_region
    _
  $region33: #{mae_decoder_forward.16} parent=0 // pred_fallthru
    _
  // Predicated region
  $region34: #{mae_decoder_forward.16} parent=0 // pred_check
    _
  $region35: #{mae_decoder_forward.16} parent=0 // pred_check_branch
    %1012 = sbr.rel (0) target = $region37
  $region36: #{mae_decoder_forward.16} parent=0 // pred_region
    _
  $region37: #{mae_decoder_forward.16} parent=0 // pred_fallthru
    _

// kernel: mae_decoder_forward.17
$region0: #{mae_decoder_forward.17}
  #allocation0 [shape = 'u32[]', space=smem, size = 0x4, offset = 0x4, fixed_abs, tag = 'smem constant byte address 0x4 - core index']
  #allocation1 [shape = 'u32[144,128]{1,0:T(1,128)}', space=vmem, size = 0x12000, scoped, tag = 'internal scratch']
  #allocation2 [shape = 'f32[32,128]{1,0:T(8,128)}', space=vmem, size = 0x4000, scoped, tag = 'scratch operand']
  %s0 = inlined_call_operand.vmem [shape: bf16[32,512], index: 0, kind: input, shape index: {}]
  %s1 = inlined_call_operand.vmem [shape: bf16[512,128], index: 1, kind: input, shape index: {}]
  %s2 = inlined_call_operand.vmem [shape: f32[1,128], index: 2, kind: input, shape index: {}]
  %s3 = inlined_call_operand.vmem [shape: bf16[32,128], index: 3, kind: input, shape index: {}]
  %s4 = inlined_call_operand.vmem [shape: bf16[32,128], index: 4, kind: output, shape index: {}]
  %s5 = sld [smem:[#allocation0]]
  $region34: #{mae_decoder_forward.17} parent=0
    _
  %s7 = ssub.s32 1, %s5
  %s8 = scalar_select 0, %s7, %s5
  // Predicated region
  $region2: #{mae_decoder_forward.17} parent=0 // pred_check
    _
  $region3: #{mae_decoder_forward.17} parent=0 // pred_check_branch
    %10 = sbr.rel (0) target = $region5
  $region4: #{mae_decoder_forward.17} parent=0 // pred_region
    _
  $region5: #{mae_decoder_forward.17} parent=0 // pred_fallthru
    _
  // Predicated region
  $region6: #{mae_decoder_forward.17} parent=0 // pred_check
    _
  $region7: #{mae_decoder_forward.17} parent=0 // pred_check_branch
    %12 = sbr.rel (0) target = $region9
  $region8: #{mae_decoder_forward.17} parent=0 // pred_region
    _
  $region9: #{mae_decoder_forward.17} parent=0 // pred_fallthru
    _
  // Predicated region
  $region10: #{mae_decoder_forward.17} parent=0 // pred_check
    _
  $region11: #{mae_decoder_forward.17} parent=0 // pred_check_branch
    %14 = sbr.rel (0) target = $region13
  $region12: #{mae_decoder_forward.17} parent=0 // pred_region
    _
  $region13: #{mae_decoder_forward.17} parent=0 // pred_fallthru
    _
  // Predicated region
  $region14: #{mae_decoder_forward.17} parent=0 // pred_check
    _
  $region15: #{mae_decoder_forward.17} parent=0 // pred_check_branch
    %16 = sbr.rel (0) target = $region17
  $region16: #{mae_decoder_forward.17} parent=0 // pred_region
    _
  $region17: #{mae_decoder_forward.17} parent=0 // pred_fallthru
    _
  %p18 = scmp.eq.s32.totalorder 0, 0
  // Predicated region
  $region18: #{mae_decoder_forward.17} parent=0 // pred_check
    %p19 = pneg %p18
  $region19: #{mae_decoder_forward.17} parent=0 // pred_check_branch
    %21 = sbr.rel (%p19) target = $region21
  $region20: #{mae_decoder_forward.17} parent=0 // pred_region
    %22 = vst [vmem:[#allocation2] sm:$0xff] 0.0
    %23 = vst [vmem:[#allocation2 + $0x8] sm:$0xff] 0.0
    %24 = vst [vmem:[#allocation2 + $0x10] sm:$0xff] 0.0
    %25 = vst [vmem:[#allocation2 + $0x18] sm:$0xff] 0.0
  $region21: #{mae_decoder_forward.17} parent=0 // pred_fallthru
    _
  %v26 = vld [vmem:[%s0] sm:$0xff]
  %v27 = vld [vmem:[%s0 + $0x8] sm:$0xff]
  %v28 = vld [vmem:[%s0 + $0x10] sm:$0xff]
  %v29 = vld [vmem:[%s0 + $0x18] sm:$0xff]
  %v30 = vld [vmem:[%s0 + $0x20] sm:$0xff]
  %v31 = vld [vmem:[%s0 + $0x28] sm:$0xff]
  %v32 = vld [vmem:[%s0 + $0x30] sm:$0xff]
  %v33 = vld [vmem:[%s0 + $0x38] sm:$0xff]
  %v34 = vld [vmem:[#allocation2] sm:$0xff]
  %v35 = vld [vmem:[#allocation2 + $0x8] sm:$0xff]
  %v36 = vld [vmem:[#allocation2 + $0x10] sm:$0xff]
  %v37 = vld [vmem:[#allocation2 + $0x18] sm:$0xff]
  %v38 = vld [vmem:[%s1] sm:$0xf]
  %v39 = vld [vmem:[%s1 + $0x4] sm:$0xf]
  %v40 = vld [vmem:[%s1 + $0x8] sm:$0xf]
  %v41 = vld [vmem:[%s1 + $0xc] sm:$0xf]
  %v42 = vld [vmem:[%s1 + $0x10] sm:$0xf]
  %v43 = vld [vmem:[%s1 + $0x14] sm:$0xf]
  %v44 = vld [vmem:[%s1 + $0x18] sm:$0xf]
  %v45 = vld [vmem:[%s1 + $0x1c] sm:$0xf]
  %v46 = vld [vmem:[%s1 + $0x20] sm:$0xf]
  %v47 = vld [vmem:[%s1 + $0x24] sm:$0xf]
  %v48 = vld [vmem:[%s1 + $0x28] sm:$0xf]
  %v49 = vld [vmem:[%s1 + $0x2c] sm:$0xf]
  %v50 = vld [vmem:[%s1 + $0x30] sm:$0xf]
  %v51 = vld [vmem:[%s1 + $0x34] sm:$0xf]
  %v52 = vld [vmem:[%s1 + $0x38] sm:$0xf]
  %v53 = vld [vmem:[%s1 + $0x3c] sm:$0xf]
  %v54 = vld [vmem:[%s1 + $0x40] sm:$0xf]
  %v55 = vld [vmem:[%s1 + $0x44] sm:$0xf]
  %v56 = vld [vmem:[%s1 + $0x48] sm:$0xf]
  %v57 = vld [vmem:[%s1 + $0x4c] sm:$0xf]
  %v58 = vld [vmem:[%s1 + $0x50] sm:$0xf]
  %v59 = vld [vmem:[%s1 + $0x54] sm:$0xf]
  %v60 = vld [vmem:[%s1 + $0x58] sm:$0xf]
  %v61 = vld [vmem:[%s1 + $0x5c] sm:$0xf]
  %v62 = vld [vmem:[%s1 + $0x60] sm:$0xf]
  %v63 = vld [vmem:[%s1 + $0x64] sm:$0xf]
  %v64 = vld [vmem:[%s1 + $0x68] sm:$0xf]
  %v65 = vld [vmem:[%s1 + $0x6c] sm:$0xf]
  %v66 = vld [vmem:[%s1 + $0x70] sm:$0xf]
  %v67 = vld [vmem:[%s1 + $0x74] sm:$0xf]
  %v68 = vld [vmem:[%s1 + $0x78] sm:$0xf]
  %v69 = vld [vmem:[%s1 + $0x7c] sm:$0xf]
  %v70 = vld [vmem:[%s1 + $0x80] sm:$0xf]
  %v71 = vld [vmem:[%s1 + $0x84] sm:$0xf]
  %v72 = vld [vmem:[%s1 + $0x88] sm:$0xf]
  %v73 = vld [vmem:[%s1 + $0x8c] sm:$0xf]
  %v74 = vld [vmem:[%s1 + $0x90] sm:$0xf]
  %v75 = vld [vmem:[%s1 + $0x94] sm:$0xf]
  %v76 = vld [vmem:[%s1 + $0x98] sm:$0xf]
  %v77 = vld [vmem:[%s1 + $0x9c] sm:$0xf]
  %v78 = vld [vmem:[%s1 + $0xa0] sm:$0xf]
  %v79 = vld [vmem:[%s1 + $0xa4] sm:$0xf]
  %v80 = vld [vmem:[%s1 + $0xa8] sm:$0xf]
  %v81 = vld [vmem:[%s1 + $0xac] sm:$0xf]
  %v82 = vld [vmem:[%s1 + $0xb0] sm:$0xf]
  %v83 = vld [vmem:[%s1 + $0xb4] sm:$0xf]
  %v84 = vld [vmem:[%s1 + $0xb8] sm:$0xf]
  %v85 = vld [vmem:[%s1 + $0xbc] sm:$0xf]
  %v86 = vld [vmem:[%s1 + $0xc0] sm:$0xf]
  %v87 = vld [vmem:[%s1 + $0xc4] sm:$0xf]
  %v88 = vld [vmem:[%s1 + $0xc8] sm:$0xf]
  %v89 = vld [vmem:[%s1 + $0xcc] sm:$0xf]
  %v90 = vld [vmem:[%s1 + $0xd0] sm:$0xf]
  %v91 = vld [vmem:[%s1 + $0xd4] sm:$0xf]
  %v92 = vld [vmem:[%s1 + $0xd8] sm:$0xf]
  %v93 = vld [vmem:[%s1 + $0xdc] sm:$0xf]
  %v94 = vld [vmem:[%s1 + $0xe0] sm:$0xf]
  %v95 = vld [vmem:[%s1 + $0xe4] sm:$0xf]
  %v96 = vld [vmem:[%s1 + $0xe8] sm:$0xf]
  %v97 = vld [vmem:[%s1 + $0xec] sm:$0xf]
  %v98 = vld [vmem:[%s1 + $0xf0] sm:$0xf]
  %v99 = vld [vmem:[%s1 + $0xf4] sm:$0xf]
  %v100 = vld [vmem:[%s1 + $0xf8] sm:$0xf]
  %v101 = vld [vmem:[%s1 + $0xfc] sm:$0xf]
  %v110 = vunpack.c.l.b16 %v26
  %v111 = vunpack.c.h.b16 %v26
  %v112 = vunpack.c.l.b16 %v27
  %v113 = vunpack.c.h.b16 %v27
  %v114 = vunpack.c.l.b16 %v28
  %v115 = vunpack.c.h.b16 %v28
  %v116 = vunpack.c.l.b16 %v29
  %v117 = vunpack.c.h.b16 %v29
  %v118 = vunpack.c.l.b16 %v30
  %v119 = vunpack.c.h.b16 %v30
  %v120 = vunpack.c.l.b16 %v31
  %v121 = vunpack.c.h.b16 %v31
  %v122 = vunpack.c.l.b16 %v32
  %v123 = vunpack.c.h.b16 %v32
  %v124 = vunpack.c.l.b16 %v33
  %v125 = vunpack.c.h.b16 %v33
  %v126 = vpack.c.b16 %v114, %v110
  %v127 = vpack.c.b16 %v115, %v111
  %v128 = vpack.c.b16 %v116, %v112
  %v129 = vpack.c.b16 %v117, %v113
  %v130 = vpack.c.b16 %v122, %v118
  %v131 = vpack.c.b16 %v123, %v119
  %v132 = vpack.c.b16 %v124, %v120
  %v133 = vpack.c.b16 %v125, %v121
  %v206 = vunpack.c.l.b16 %v38
  %v207 = vunpack.c.l.b16 %v39
  %v208 = vunpack.c.l.b16 %v40
  %v209 = vunpack.c.l.b16 %v41
  %v210 = vunpack.c.l.b16 %v42
  %v211 = vunpack.c.l.b16 %v43
  %v212 = vunpack.c.l.b16 %v44
  %v213 = vunpack.c.l.b16 %v45
  %v214 = vunpack.c.l.b16 %v46
  %v215 = vunpack.c.l.b16 %v47
  %v216 = vunpack.c.l.b16 %v48
  %v217 = vunpack.c.l.b16 %v49
  %v218 = vunpack.c.l.b16 %v50
  %v219 = vunpack.c.l.b16 %v51
  %v220 = vunpack.c.l.b16 %v52
  %v221 = vunpack.c.l.b16 %v53
  %v222 = vunpack.c.l.b16 %v54
  %v223 = vunpack.c.l.b16 %v55
  %v224 = vunpack.c.l.b16 %v56
  %v225 = vunpack.c.l.b16 %v57
  %v226 = vunpack.c.l.b16 %v58
  %v227 = vunpack.c.l.b16 %v59
  %v228 = vunpack.c.l.b16 %v60
  %v229 = vunpack.c.l.b16 %v61
  %v230 = vunpack.c.l.b16 %v62
  %v231 = vunpack.c.l.b16 %v63
  %v232 = vunpack.c.l.b16 %v64
  %v233 = vunpack.c.l.b16 %v65
  %v234 = vunpack.c.l.b16 %v66
  %v235 = vunpack.c.l.b16 %v67
  %v236 = vunpack.c.l.b16 %v68
  %v237 = vunpack.c.l.b16 %v69
  %v238 = vunpack.c.l.b16 %v70
  %v239 = vunpack.c.l.b16 %v71
  %v240 = vunpack.c.l.b16 %v72
  %v241 = vunpack.c.l.b16 %v73
  %v242 = vunpack.c.l.b16 %v74
  %v243 = vunpack.c.l.b16 %v75
  %v244 = vunpack.c.l.b16 %v76
  %v245 = vunpack.c.l.b16 %v77
  %v246 = vunpack.c.l.b16 %v78
  %v247 = vunpack.c.l.b16 %v79
  %v248 = vunpack.c.l.b16 %v80
  %v249 = vunpack.c.l.b16 %v81
  %v250 = vunpack.c.l.b16 %v82
  %v251 = vunpack.c.l.b16 %v83
  %v252 = vunpack.c.l.b16 %v84
  %v253 = vunpack.c.l.b16 %v85
  %v254 = vunpack.c.l.b16 %v86
  %v255 = vunpack.c.l.b16 %v87
  %v256 = vunpack.c.l.b16 %v88
  %v257 = vunpack.c.l.b16 %v89
  %v258 = vunpack.c.l.b16 %v90
  %v259 = vunpack.c.l.b16 %v91
  %v260 = vunpack.c.l.b16 %v92
  %v261 = vunpack.c.l.b16 %v93
  %v262 = vunpack.c.l.b16 %v94
  %v263 = vunpack.c.l.b16 %v95
  %v264 = vunpack.c.l.b16 %v96
  %v265 = vunpack.c.l.b16 %v97
  %v266 = vunpack.c.l.b16 %v98
  %v267 = vunpack.c.l.b16 %v99
  %v268 = vunpack.c.l.b16 %v100
  %v269 = vunpack.c.l.b16 %v101
  %v270 = vpack.c.b16 %v207, %v206
  %v271 = vpack.c.b16 %v209, %v208
  %v272 = vpack.c.b16 %v211, %v210
  %v273 = vpack.c.b16 %v213, %v212
  %v274 = vpack.c.b16 %v215, %v214
  %v275 = vpack.c.b16 %v217, %v216
  %v276 = vpack.c.b16 %v219, %v218
  %v277 = vpack.c.b16 %v221, %v220
  %v278 = vpack.c.b16 %v223, %v222
  %v279 = vpack.c.b16 %v225, %v224
  %v280 = vpack.c.b16 %v227, %v226
  %v281 = vpack.c.b16 %v229, %v228
  %v282 = vpack.c.b16 %v231, %v230
  %v283 = vpack.c.b16 %v233, %v232
  %v284 = vpack.c.b16 %v235, %v234
  %v285 = vpack.c.b16 %v237, %v236
  %v286 = vpack.c.b16 %v239, %v238
  %v287 = vpack.c.b16 %v241, %v240
  %v288 = vpack.c.b16 %v243, %v242
  %v289 = vpack.c.b16 %v245, %v244
  %v290 = vpack.c.b16 %v247, %v246
  %v291 = vpack.c.b16 %v249, %v248
  %v292 = vpack.c.b16 %v251, %v250
  %v293 = vpack.c.b16 %v253, %v252
  %v294 = vpack.c.b16 %v255, %v254
  %v295 = vpack.c.b16 %v257, %v256
  %v296 = vpack.c.b16 %v259, %v258
  %v297 = vpack.c.b16 %v261, %v260
  %v298 = vpack.c.b16 %v263, %v262
  %v299 = vpack.c.b16 %v265, %v264
  %v300 = vpack.c.b16 %v267, %v266
  %v301 = vpack.c.b16 %v269, %v268
  %334 = vmatprep.subr.bf16.mxu0 0
  %335 = vmatpush1.bf16.msra.mxu0 %v277
  %336 = vmatprep.subr.bf16.mxu0 0
  %337 = vmatpush1.bf16.msra.mxu0 %v276
  %338 = vmatprep.subr.bf16.mxu0 0
  %339 = vmatpush1.bf16.msra.mxu0 %v275
  %340 = vmatprep.subr.bf16.mxu0 0
  %341 = vmatpush1.bf16.msra.mxu0 %v274
  %342 = vmatprep.subr.bf16.mxu0 0
  %343 = vmatpush1.bf16.msra.mxu0 %v273
  %344 = vmatprep.subr.bf16.mxu0 0
  %345 = vmatpush1.bf16.msra.mxu0 %v272
  %346 = vmatprep.subr.bf16.mxu0 0
  %347 = vmatpush1.bf16.msra.mxu0 %v271
  %348 = vmatprep.subr.bf16.mxu0 0
  %349 = vmatpush1.bf16.msra.mxu0 %v270
  %350 = vmatprep.subr.bf16.mxu0 0
  %351 = vmatpush2.bf16.msra.mxu0 %v285
  %352 = vmatprep.subr.bf16.mxu0 0
  %353 = vmatpush2.bf16.msra.mxu0 %v284
  %354 = vmatprep.subr.bf16.mxu0 0
  %355 = vmatpush2.bf16.msra.mxu0 %v283
  %356 = vmatprep.subr.bf16.mxu0 0
  %357 = vmatpush2.bf16.msra.mxu0 %v282
  %358 = vmatprep.subr.bf16.mxu0 0
  %359 = vmatpush2.bf16.msra.mxu0 %v281
  %360 = vmatprep.subr.bf16.mxu0 0
  %361 = vmatpush2.bf16.msra.mxu0 %v280
  %362 = vmatprep.subr.bf16.mxu0 0
  %363 = vmatpush2.bf16.msra.mxu0 %v279
  %364 = vmatprep.subr.bf16.mxu0 0
  %365 = vmatpush2.bf16.msra.mxu0 %v278
  %366 = vmatprep.mubr.bf16.mxu0 %v127
  %367 = vmatmul.mubr.bf16.gmra.mxu0 %v126
  %v368 = vpop.f32.mrf.mxu0
  %v369 = vadd.f32 0.0, %v368
  %v370 = vpop.f32.mrf.mxu0
  %v371 = vpop.f32.mrf.mxu0
  %v372 = vadd.f32 0.0, %v371
  %v373 = vpop.f32.mrf.mxu0
  %374 = vmatprep.mubr.bf16.mxu0 %v131
  %375 = vmatmul.mubr.bf16.gmra.mxu0 %v130
  %v376 = vpop.f32.mrf.mxu0
  %v377 = vadd.f32 0.0, %v376
  %v378 = vpop.f32.mrf.mxu0
  %v379 = vpop.f32.mrf.mxu0
  %v380 = vadd.f32 0.0, %v379
  %v381 = vpop.f32.mrf.mxu0
  %382 = vdwg.mxu0
  %383 = vmatprep.subr.bf16.mxu0 0
  %384 = vmatpush1.bf16.msra.mxu0 %v293
  %385 = vmatprep.subr.bf16.mxu0 0
  %386 = vmatpush1.bf16.msra.mxu0 %v292
  %387 = vmatprep.subr.bf16.mxu0 0
  %388 = vmatpush1.bf16.msra.mxu0 %v291
  %389 = vmatprep.subr.bf16.mxu0 0
  %390 = vmatpush1.bf16.msra.mxu0 %v290
  %391 = vmatprep.subr.bf16.mxu0 0
  %392 = vmatpush1.bf16.msra.mxu0 %v289
  %393 = vmatprep.subr.bf16.mxu0 0
  %394 = vmatpush1.bf16.msra.mxu0 %v288
  %395 = vmatprep.subr.bf16.mxu0 0
  %396 = vmatpush1.bf16.msra.mxu0 %v287
  %397 = vmatprep.subr.bf16.mxu0 0
  %398 = vmatpush1.bf16.msra.mxu0 %v286
  %399 = vmatprep.subr.bf16.mxu0 0
  %400 = vmatpush2.bf16.msra.mxu0 %v301
  %401 = vmatprep.subr.bf16.mxu0 0
  %402 = vmatpush2.bf16.msra.mxu0 %v300
  %403 = vmatprep.subr.bf16.mxu0 0
  %404 = vmatpush2.bf16.msra.mxu0 %v299
  %405 = vmatprep.subr.bf16.mxu0 0
  %406 = vmatpush2.bf16.msra.mxu0 %v298
  %407 = vmatprep.subr.bf16.mxu0 0
  %408 = vmatpush2.bf16.msra.mxu0 %v297
  %409 = vmatprep.subr.bf16.mxu0 0
  %410 = vmatpush2.bf16.msra.mxu0 %v296
  %411 = vmatprep.subr.bf16.mxu0 0
  %412 = vmatpush2.bf16.msra.mxu0 %v295
  %413 = vmatprep.subr.bf16.mxu0 0
  %414 = vmatpush2.bf16.msra.mxu0 %v294
  %415 = vmatprep.mubr.bf16.mxu0 %v129
  %416 = vmatmul.mubr.bf16.gmra.mxu0 %v128
  %v417 = vpop.f32.mrf.mxu0
  %v418 = vadd.f32 %v369, %v417
  %v419 = vpop.f32.mrf.mxu0
  %v420 = vpop.f32.mrf.mxu0
  %v421 = vadd.f32 %v372, %v420
  %v422 = vpop.f32.mrf.mxu0
  %423 = vmatprep.mubr.bf16.mxu0 %v133
  %424 = vmatmul.mubr.bf16.gmra.mxu0 %v132
  %v425 = vpop.f32.mrf.mxu0
  %v426 = vadd.f32 %v377, %v425
  %v427 = vpop.f32.mrf.mxu0
  %v428 = vpop.f32.mrf.mxu0
  %v429 = vadd.f32 %v380, %v428
  %v430 = vpop.f32.mrf.mxu0
  %431 = vdwg.mxu0
  %v432 = vadd.f32 %v34, %v418
  %v433 = vadd.f32 %v35, %v421
  %v434 = vadd.f32 %v36, %v426
  %v435 = vadd.f32 %v37, %v429
  %436 = vst [vmem:[#allocation2] sm:$0xff] %v432
  %437 = vst [vmem:[#allocation2 + $0x8] sm:$0xff] %v433
  %438 = vst [vmem:[#allocation2 + $0x10] sm:$0xff] %v434
  %439 = vst [vmem:[#allocation2 + $0x18] sm:$0xff] %v435
  // Predicated region
  $region22: #{mae_decoder_forward.17} parent=0 // pred_check
    %p440 = pneg %p18
  $region23: #{mae_decoder_forward.17} parent=0 // pred_check_branch
    %442 = sbr.rel (%p440) target = $region25
  $region24: #{mae_decoder_forward.17} parent=0 // pred_region
    %v443 = vld [vmem:[#allocation2] sm:$0xff]
    %v444 = vld [vmem:[#allocation2 + $0x8] sm:$0xff]
    %v445 = vld [vmem:[#allocation2 + $0x10] sm:$0xff]
    %v446 = vld [vmem:[#allocation2 + $0x18] sm:$0xff]
    %v447 = vld [vmem:[%s2] sm:$0x1]
    %v449 = vlaneseq
    %v450 = vshrl.u32 %v449, 7
    %v451 = vsub.s32 0, %v450
    %v452 = vrot.slane %v447, %v451
    %v454 = vadd.f32 %v443, %v452
    %v455 = vadd.f32 %v444, %v452
    %v456 = vadd.f32 %v445, %v452
    %v457 = vadd.f32 %v446, %v452
    %v458 = vld [vmem:[%s3] sm:$0xf]
    %v459 = vld [vmem:[%s3 + $0x4] sm:$0xf]
    %v460 = vld [vmem:[%s3 + $0x8] sm:$0xf]
    %v461 = vld [vmem:[%s3 + $0xc] sm:$0xf]
    %v462 = vunpack.c.l.bf16 %v458
    %v463 = vunpack.c.l.bf16 %v459
    %v464 = vunpack.c.l.bf16 %v460
    %v465 = vunpack.c.l.bf16 %v461
    %v466 = vadd.f32 %v454, %v462
    %v467 = vadd.f32 %v455, %v463
    %v468 = vadd.f32 %v456, %v464
    %v469 = vadd.f32 %v457, %v465
    %v470 = vpack.c.bf16 %v467, %v466
    %v471 = vpack.c.bf16 %v469, %v468
    %v474 = vunpack.c.l.b16 %v470
    %v475 = vunpack.c.h.b16 %v470
    %v476 = vunpack.c.l.b16 %v471
    %v477 = vunpack.c.h.b16 %v471
    %v478 = vpack.c.b16 %v474, %v474
    %v479 = vpack.c.b16 %v475, %v475
    %v480 = vpack.c.b16 %v476, %v476
    %v481 = vpack.c.b16 %v477, %v477
    %486 = vst [vmem:[%s4] sm:$0xf] %v478
    %487 = vst [vmem:[%s4 + $0x4] sm:$0xf] %v479
    %488 = vst [vmem:[%s4 + $0x8] sm:$0xf] %v480
    %489 = vst [vmem:[%s4 + $0xc] sm:$0xf] %v481
  $region25: #{mae_decoder_forward.17} parent=0 // pred_fallthru
    _
  // Predicated region
  $region26: #{mae_decoder_forward.17} parent=0 // pred_check
    _
  $region27: #{mae_decoder_forward.17} parent=0 // pred_check_branch
    %491 = sbr.rel (0) target = $region29
  $region28: #{mae_decoder_forward.17} parent=0 // pred_region
    _
  $region29: #{mae_decoder_forward.17} parent=0 // pred_fallthru
    _
  // Predicated region
  $region30: #{mae_decoder_forward.17} parent=0 // pred_check
    _
  $region31: #{mae_decoder_forward.17} parent=0 // pred_check_branch
    %493 = sbr.rel (0) target = $region33
  $region32: #{mae_decoder_forward.17} parent=0 // pred_region
    _
  $region33: #{mae_decoder_forward.17} parent=0 // pred_fallthru
    _

// kernel: mae_decoder_forward.23
$region0: #{mae_decoder_forward.23}
  #allocation0 [shape = 'u32[]', space=smem, size = 0x4, offset = 0x4, fixed_abs, tag = 'smem constant byte address 0x4 - core index']
  #allocation1 [shape = 'u32[144,128]{1,0:T(1,128)}', space=vmem, size = 0x12000, scoped, tag = 'internal scratch']
  #allocation2 [shape = 'f32[32,8]{1,0:T(8,128)}', space=vmem, size = 0x4000, scoped, tag = 'scratch operand']
  %s0 = inlined_call_operand.vmem [shape: bf16[32,128], index: 0, kind: input, shape index: {}]
  %s1 = inlined_call_operand.vmem [shape: f32[1,128], index: 1, kind: input, shape index: {}]
  %s2 = inlined_call_operand.vmem [shape: f32[1,128], index: 2, kind: input, shape index: {}]
  %s3 = inlined_call_operand.vmem [shape: f32[1,128], index: 3, kind: input, shape index: {}]
  %s4 = inlined_call_operand.vmem [shape: f32[1,128], index: 4, kind: input, shape index: {}]
  %s5 = inlined_call_operand.vmem [shape: bf16[128,8], index: 5, kind: input, shape index: {}]
  %s6 = inlined_call_operand.vmem [shape: f32[1,8], index: 6, kind: input, shape index: {}]
  %s7 = inlined_call_operand.vmem [shape: f32[32,8], index: 7, kind: output, shape index: {}]
  %s8 = sld [smem:[#allocation0]]
  $region46: #{mae_decoder_forward.23} parent=0
    _
  %s10 = ssub.s32 1, %s8
  %s11 = scalar_select 0, %s10, %s8
  // Predicated region
  $region2: #{mae_decoder_forward.23} parent=0 // pred_check
    _
  $region3: #{mae_decoder_forward.23} parent=0 // pred_check_branch
    %13 = sbr.rel (0) target = $region5
  $region4: #{mae_decoder_forward.23} parent=0 // pred_region
    _
  $region5: #{mae_decoder_forward.23} parent=0 // pred_fallthru
    _
  // Predicated region
  $region6: #{mae_decoder_forward.23} parent=0 // pred_check
    _
  $region7: #{mae_decoder_forward.23} parent=0 // pred_check_branch
    %15 = sbr.rel (0) target = $region9
  $region8: #{mae_decoder_forward.23} parent=0 // pred_region
    _
  $region9: #{mae_decoder_forward.23} parent=0 // pred_fallthru
    _
  // Predicated region
  $region10: #{mae_decoder_forward.23} parent=0 // pred_check
    _
  $region11: #{mae_decoder_forward.23} parent=0 // pred_check_branch
    %17 = sbr.rel (0) target = $region13
  $region12: #{mae_decoder_forward.23} parent=0 // pred_region
    _
  $region13: #{mae_decoder_forward.23} parent=0 // pred_fallthru
    _
  // Predicated region
  $region14: #{mae_decoder_forward.23} parent=0 // pred_check
    _
  $region15: #{mae_decoder_forward.23} parent=0 // pred_check_branch
    %19 = sbr.rel (0) target = $region17
  $region16: #{mae_decoder_forward.23} parent=0 // pred_region
    _
  $region17: #{mae_decoder_forward.23} parent=0 // pred_fallthru
    _
  // Predicated region
  $region18: #{mae_decoder_forward.23} parent=0 // pred_check
    _
  $region19: #{mae_decoder_forward.23} parent=0 // pred_check_branch
    %21 = sbr.rel (0) target = $region21
  $region20: #{mae_decoder_forward.23} parent=0 // pred_region
    _
  $region21: #{mae_decoder_forward.23} parent=0 // pred_fallthru
    _
  // Predicated region
  $region22: #{mae_decoder_forward.23} parent=0 // pred_check
    _
  $region23: #{mae_decoder_forward.23} parent=0 // pred_check_branch
    %23 = sbr.rel (0) target = $region25
  $region24: #{mae_decoder_forward.23} parent=0 // pred_region
    _
  $region25: #{mae_decoder_forward.23} parent=0 // pred_fallthru
    _
  // Predicated region
  $region26: #{mae_decoder_forward.23} parent=0 // pred_check
    _
  $region27: #{mae_decoder_forward.23} parent=0 // pred_check_branch
    %25 = sbr.rel (0) target = $region29
  $region28: #{mae_decoder_forward.23} parent=0 // pred_region
    _
  $region29: #{mae_decoder_forward.23} parent=0 // pred_fallthru
    _
  %p27 = scmp.eq.s32.totalorder 0, 0
  // Predicated region
  $region30: #{mae_decoder_forward.23} parent=0 // pred_check
    %p28 = pneg %p27
  $region31: #{mae_decoder_forward.23} parent=0 // pred_check_branch
    %30 = sbr.rel (%p28) target = $region33
  $region32: #{mae_decoder_forward.23} parent=0 // pred_region
    %vm31 = vcmask 64512
    %32 = vst.msk [vmem:[#allocation2] sm:$0xff] %vm31, 0.0
    %33 = vst.msk [vmem:[#allocation2 + $0x8] sm:$0xff] %vm31, 0.0
    %34 = vst.msk [vmem:[#allocation2 + $0x10] sm:$0xff] %vm31, 0.0
    %35 = vst.msk [vmem:[#allocation2 + $0x18] sm:$0xff] %vm31, 0.0
  $region33: #{mae_decoder_forward.23} parent=0 // pred_fallthru
    _
  %v36 = vld [vmem:[%s0] sm:$0xf]
  %v37 = vld [vmem:[%s0 + $0x4] sm:$0xf]
  %v38 = vld [vmem:[%s0 + $0x8] sm:$0xf]
  %v39 = vld [vmem:[%s0 + $0xc] sm:$0xf]
  %v40 = vunpack.c.l.bf16 %v36
  %v41 = vunpack.c.l.bf16 %v37
  %v42 = vunpack.c.l.bf16 %v38
  %v43 = vunpack.c.l.bf16 %v39
  %v44 = vld [vmem:[%s1] sm:$0x1]
  %v45 = vld [vmem:[%s2] sm:$0x1]
  %46 = vadd.xlane.f32.xlu0 %v40
  %v47 = vpop.xlane.xlu0 %46
  %48 = vadd.xlane.f32.xlu0 %v41
  %v49 = vpop.xlane.xlu0 %48
  %50 = vadd.xlane.f32.xlu0 %v42
  %v51 = vpop.xlane.xlu0 %50
  %52 = vadd.xlane.f32.xlu0 %v43
  %v53 = vpop.xlane.xlu0 %52
  %v54 = vrcp.pop 128.0
  %v55 = vmul.f32 %v47, %v54
  %v56 = vmul.f32 %v49, %v54
  %v57 = vmul.f32 %v51, %v54
  %v58 = vmul.f32 %v53, %v54
  %v59 = vsub.f32 %v40, %v55
  %v60 = vsub.f32 %v41, %v56
  %v61 = vsub.f32 %v42, %v57
  %v62 = vsub.f32 %v43, %v58
  %v63 = vmul.f32 %v59, %v59
  %v64 = vmul.f32 %v60, %v60
  %v65 = vmul.f32 %v61, %v61
  %v66 = vmul.f32 %v62, %v62
  %67 = vadd.xlane.f32.xlu0 %v63
  %v68 = vpop.xlane.xlu0 %67
  %69 = vadd.xlane.f32.xlu0 %v64
  %v70 = vpop.xlane.xlu0 %69
  %71 = vadd.xlane.f32.xlu0 %v65
  %v72 = vpop.xlane.xlu0 %71
  %73 = vadd.xlane.f32.xlu0 %v66
  %v74 = vpop.xlane.xlu0 %73
  %v75 = vmul.f32 %v68, %v54
  %v76 = vmul.f32 %v70, %v54
  %v77 = vmul.f32 %v72, %v54
  %v78 = vmul.f32 %v74, %v54
  %v79 = vadd.f32 %v75, 1e-06
  %v80 = vadd.f32 %v76, 1e-06
  %v81 = vadd.f32 %v77, 1e-06
  %v82 = vadd.f32 %v78, 1e-06
  %v83 = vrsqrt.pop %v79
  %v84 = vrsqrt.pop %v80
  %v85 = vrsqrt.pop %v81
  %v86 = vrsqrt.pop %v82
  %v87 = vmul.f32 %v59, %v83
  %v88 = vmul.f32 %v60, %v84
  %v89 = vmul.f32 %v61, %v85
  %v90 = vmul.f32 %v62, %v86
  %v92 = vlaneseq
  %v93 = vshrl.u32 %v92, 7
  %v94 = vsub.s32 0, %v93
  %v95 = vrot.slane %v44, %v94
  %v97 = vmul.f32 %v87, %v95
  %v98 = vmul.f32 %v88, %v95
  %v99 = vmul.f32 %v89, %v95
  %v100 = vmul.f32 %v90, %v95
  %v102 = vlaneseq
  %v103 = vshrl.u32 %v102, 7
  %v104 = vsub.s32 0, %v103
  %v105 = vrot.slane %v45, %v104
  %v107 = vadd.f32 %v97, %v105
  %v108 = vadd.f32 %v98, %v105
  %v109 = vadd.f32 %v99, %v105
  %v110 = vadd.f32 %v100, %v105
  %v111 = vld [vmem:[%s3] sm:$0x1]
  %v112 = vld [vmem:[%s4] sm:$0x1]
  %113 = vadd.xlane.f32.xlu0 %v107
  %v114 = vpop.xlane.xlu0 %113
  %115 = vadd.xlane.f32.xlu0 %v108
  %v116 = vpop.xlane.xlu0 %115
  %117 = vadd.xlane.f32.xlu0 %v109
  %v118 = vpop.xlane.xlu0 %117
  %119 = vadd.xlane.f32.xlu0 %v110
  %v120 = vpop.xlane.xlu0 %119
  %v121 = vmul.f32 %v114, %v54
  %v122 = vmul.f32 %v116, %v54
  %v123 = vmul.f32 %v118, %v54
  %v124 = vmul.f32 %v120, %v54
  %v125 = vsub.f32 %v107, %v121
  %v126 = vsub.f32 %v108, %v122
  %v127 = vsub.f32 %v109, %v123
  %v128 = vsub.f32 %v110, %v124
  %v129 = vmul.f32 %v125, %v125
  %v130 = vmul.f32 %v126, %v126
  %v131 = vmul.f32 %v127, %v127
  %v132 = vmul.f32 %v128, %v128
  %133 = vadd.xlane.f32.xlu0 %v129
  %v134 = vpop.xlane.xlu0 %133
  %135 = vadd.xlane.f32.xlu0 %v130
  %v136 = vpop.xlane.xlu0 %135
  %137 = vadd.xlane.f32.xlu0 %v131
  %v138 = vpop.xlane.xlu0 %137
  %139 = vadd.xlane.f32.xlu0 %v132
  %v140 = vpop.xlane.xlu0 %139
  %v141 = vmul.f32 %v134, %v54
  %v142 = vmul.f32 %v136, %v54
  %v143 = vmul.f32 %v138, %v54
  %v144 = vmul.f32 %v140, %v54
  %v145 = vadd.f32 %v141, 1e-06
  %v146 = vadd.f32 %v142, 1e-06
  %v147 = vadd.f32 %v143, 1e-06
  %v148 = vadd.f32 %v144, 1e-06
  %v149 = vrsqrt.pop %v145
  %v150 = vrsqrt.pop %v146
  %v151 = vrsqrt.pop %v147
  %v152 = vrsqrt.pop %v148
  %v153 = vmul.f32 %v125, %v149
  %v154 = vmul.f32 %v126, %v150
  %v155 = vmul.f32 %v127, %v151
  %v156 = vmul.f32 %v128, %v152
  %v158 = vlaneseq
  %v159 = vshrl.u32 %v158, 7
  %v160 = vsub.s32 0, %v159
  %v161 = vrot.slane %v111, %v160
  %v163 = vmul.f32 %v153, %v161
  %v164 = vmul.f32 %v154, %v161
  %v165 = vmul.f32 %v155, %v161
  %v166 = vmul.f32 %v156, %v161
  %v168 = vlaneseq
  %v169 = vshrl.u32 %v168, 7
  %v170 = vsub.s32 0, %v169
  %v171 = vrot.slane %v112, %v170
  %v173 = vadd.f32 %v163, %v171
  %v174 = vadd.f32 %v164, %v171
  %v175 = vadd.f32 %v165, %v171
  %v176 = vadd.f32 %v166, %v171
  %v177 = vpack.c.bf16 %v174, %v173
  %v178 = vpack.c.bf16 %v176, %v175
  %v179 = vld [vmem:[#allocation2] sm:$0xff]
  %v180 = vld [vmem:[#allocation2 + $0x8] sm:$0xff]
  %v181 = vld [vmem:[#allocation2 + $0x10] sm:$0xff]
  %v182 = vld [vmem:[#allocation2 + $0x18] sm:$0xff]
  %v183 = vld [vmem:[%s5] sm:$0xf]
  %v184 = vld [vmem:[%s5 + $0x4] sm:$0xf]
  %v185 = vld [vmem:[%s5 + $0x8] sm:$0xf]
  %v186 = vld [vmem:[%s5 + $0xc] sm:$0xf]
  %v187 = vld [vmem:[%s5 + $0x10] sm:$0xf]
  %v188 = vld [vmem:[%s5 + $0x14] sm:$0xf]
  %v189 = vld [vmem:[%s5 + $0x18] sm:$0xf]
  %v190 = vld [vmem:[%s5 + $0x1c] sm:$0xf]
  %v191 = vld [vmem:[%s5 + $0x20] sm:$0xf]
  %v192 = vld [vmem:[%s5 + $0x24] sm:$0xf]
  %v193 = vld [vmem:[%s5 + $0x28] sm:$0xf]
  %v194 = vld [vmem:[%s5 + $0x2c] sm:$0xf]
  %v195 = vld [vmem:[%s5 + $0x30] sm:$0xf]
  %v196 = vld [vmem:[%s5 + $0x34] sm:$0xf]
  %v197 = vld [vmem:[%s5 + $0x38] sm:$0xf]
  %v198 = vld [vmem:[%s5 + $0x3c] sm:$0xf]
  %v215 = vunpack.c.l.b16 %v183
  %v216 = vunpack.c.l.b16 %v184
  %v217 = vunpack.c.l.b16 %v185
  %v218 = vunpack.c.l.b16 %v186
  %v219 = vunpack.c.l.b16 %v187
  %v220 = vunpack.c.l.b16 %v188
  %v221 = vunpack.c.l.b16 %v189
  %v222 = vunpack.c.l.b16 %v190
  %v223 = vunpack.c.l.b16 %v191
  %v224 = vunpack.c.l.b16 %v192
  %v225 = vunpack.c.l.b16 %v193
  %v226 = vunpack.c.l.b16 %v194
  %v227 = vunpack.c.l.b16 %v195
  %v228 = vunpack.c.l.b16 %v196
  %v229 = vunpack.c.l.b16 %v197
  %v230 = vunpack.c.l.b16 %v198
  %v231 = vpack.c.b16 %v216, %v215
  %v232 = vpack.c.b16 %v218, %v217
  %v233 = vpack.c.b16 %v220, %v219
  %v234 = vpack.c.b16 %v222, %v221
  %v235 = vpack.c.b16 %v224, %v223
  %v236 = vpack.c.b16 %v226, %v225
  %v237 = vpack.c.b16 %v228, %v227
  %v238 = vpack.c.b16 %v230, %v229
  %247 = vmatprep.subr.bf16.mxu0 0
  %248 = vmatpush1.bf16.msra.mxu0 %v238
  %249 = vmatprep.subr.bf16.mxu0 0
  %250 = vmatpush1.bf16.msra.mxu0 %v237
  %251 = vmatprep.subr.bf16.mxu0 0
  %252 = vmatpush1.bf16.msra.mxu0 %v236
  %253 = vmatprep.subr.bf16.mxu0 0
  %254 = vmatpush1.bf16.msra.mxu0 %v235
  %255 = vmatprep.subr.bf16.mxu0 0
  %256 = vmatpush1.bf16.msra.mxu0 %v234
  %257 = vmatprep.subr.bf16.mxu0 0
  %258 = vmatpush1.bf16.msra.mxu0 %v233
  %259 = vmatprep.subr.bf16.mxu0 0
  %260 = vmatpush1.bf16.msra.mxu0 %v232
  %261 = vmatprep.subr.bf16.mxu0 0
  %262 = vmatpush1.bf16.msra.mxu0 %v231
  %263 = vmatprep.subr.bf16.mxu0 0
  %264 = vmatpush2.bf16.msra.mxu0 0
  %265 = vmatprep.subr.bf16.mxu0 0
  %266 = vmatpush2.bf16.msra.mxu0 0
  %267 = vmatprep.subr.bf16.mxu0 0
  %268 = vmatpush2.bf16.msra.mxu0 0
  %269 = vmatprep.subr.bf16.mxu0 0
  %270 = vmatpush2.bf16.msra.mxu0 0
  %271 = vmatprep.subr.bf16.mxu0 0
  %272 = vmatpush2.bf16.msra.mxu0 0
  %273 = vmatprep.subr.bf16.mxu0 0
  %274 = vmatpush2.bf16.msra.mxu0 0
  %275 = vmatprep.subr.bf16.mxu0 0
  %276 = vmatpush2.bf16.msra.mxu0 0
  %277 = vmatprep.subr.bf16.mxu0 0
  %278 = vmatpush2.bf16.msra.mxu0 0
  %279 = vmatprep.mubr.bf16.mxu0 0
  %280 = vmatmul.mubr.bf16.gmra.mxu0 %v177
  %v281 = vpop.f32.mrf.mxu0
  %v282 = vadd.f32 0.0, %v281
  %v283 = vpop.f32.mrf.mxu0
  %v284 = vpop.f32.mrf.mxu0
  %v285 = vadd.f32 0.0, %v284
  %v286 = vpop.f32.mrf.mxu0
  %287 = vmatprep.mubr.bf16.mxu0 0
  %288 = vmatmul.mubr.bf16.gmra.mxu0 %v178
  %v289 = vpop.f32.mrf.mxu0
  %v290 = vadd.f32 0.0, %v289
  %v291 = vpop.f32.mrf.mxu0
  %v292 = vpop.f32.mrf.mxu0
  %v293 = vadd.f32 0.0, %v292
  %v294 = vpop.f32.mrf.mxu0
  %295 = vdwg.mxu0
  %v296 = vadd.f32 %v179, %v282
  %v297 = vadd.f32 %v180, %v285
  %v298 = vadd.f32 %v181, %v290
  %v299 = vadd.f32 %v182, %v293
  %vm300 = vcmask 64512
  %301 = vst.msk [vmem:[#allocation2] sm:$0xff] %vm300, %v296
  %302 = vst.msk [vmem:[#allocation2 + $0x8] sm:$0xff] %vm300, %v297
  %303 = vst.msk [vmem:[#allocation2 + $0x10] sm:$0xff] %vm300, %v298
  %304 = vst.msk [vmem:[#allocation2 + $0x18] sm:$0xff] %vm300, %v299
  // Predicated region
  $region34: #{mae_decoder_forward.23} parent=0 // pred_check
    %p305 = pneg %p27
  $region35: #{mae_decoder_forward.23} parent=0 // pred_check_branch
    %307 = sbr.rel (%p305) target = $region37
  $region36: #{mae_decoder_forward.23} parent=0 // pred_region
    %v308 = vld [vmem:[#allocation2] sm:$0xff]
    %v309 = vld [vmem:[#allocation2 + $0x8] sm:$0xff]
    %v310 = vld [vmem:[#allocation2 + $0x10] sm:$0xff]
    %v311 = vld [vmem:[#allocation2 + $0x18] sm:$0xff]
    %v312 = vld [vmem:[%s6] sm:$0x1]
    %v314 = vlaneseq
    %v315 = vshrl.u32 %v314, 7
    %v316 = vsub.s32 0, %v315
    %v317 = vrot.slane %v312, %v316
    %v319 = vadd.f32 %v308, %v317
    %v320 = vadd.f32 %v309, %v317
    %v321 = vadd.f32 %v310, %v317
    %v322 = vadd.f32 %v311, %v317
    %323 = vst.msk [vmem:[%s7] sm:$0xff] %vm300, %v319
    %324 = vst.msk [vmem:[%s7 + $0x8] sm:$0xff] %vm300, %v320
    %325 = vst.msk [vmem:[%s7 + $0x10] sm:$0xff] %vm300, %v321
    %326 = vst.msk [vmem:[%s7 + $0x18] sm:$0xff] %vm300, %v322
  $region37: #{mae_decoder_forward.23} parent=0 // pred_fallthru
    _
  // Predicated region
  $region38: #{mae_decoder_forward.23} parent=0 // pred_check
    _
  $region39: #{mae_decoder_forward.23} parent=0 // pred_check_branch
    %328 = sbr.rel (0) target = $region41
  $region40: #{mae_decoder_forward.23} parent=0 // pred_region
    _
  $region41: #{mae_decoder_forward.23} parent=0 // pred_fallthru
    _
  // Predicated region
  $region42: #{mae_decoder_forward.23} parent=0 // pred_check
    _
  $region43: #{mae_decoder_forward.23} parent=0 // pred_check_branch
    %330 = sbr.rel (0) target = $region45
  $region44: #{mae_decoder_forward.23} parent=0 // pred_region
    _
  $region45: #{mae_decoder_forward.23} parent=0 // pred_fallthru
    _

</llo_original>
